<compile_context>
chip_gen: v5e
topology: v5e:2x2
jax: 0.10.0
libtpu: 0.0.40
codegen_flags: <defaults>
</compile_context>

<pallas_src>
import functools

import jax
import jax.numpy as jnp
from jax.experimental import pallas as pl
from jax.experimental.pallas import tpu as pltpu

_LP = 8          # left W halo of the conv2 im2col scratch (sublane aligned)
_RP = 8          # right W halo (>= 1; 8 keeps the zero store unmasked when W % 8 == 0)


def _convblock_kernel(xk_ref, w1_ref, b1_ref, s1_ref, t1_ref,
                      w2_ref, b2_ref, s2_ref, t2_ref,
                      out_ref,
                      xpad_ref, y1col_ref, hpool_ref):
    Nb, H, W, K1 = xk_ref.shape            # K1 = 3 * Cin (kx folded in the wrapper)
    Cp = w1_ref.shape[2]                   # lane-padded channel count
    K2 = w2_ref.shape[1]                   # 3 * Cp
    Ho, Wo = H // 2, W // 2
    M = Nb * H * W
    mmdt = w1_ref.dtype                    # dtype feeding the MXU (bf16 or f32)

    # ---- conv1: stage the kx-expanded input with a zero ky halo (untiled dim) ----
    zrow1 = jnp.zeros((Nb, 1, W, K1), xpad_ref.dtype)
    xpad_ref[:, 0:1, :, :] = zrow1
    xpad_ref[:, H + 1:H + 2, :, :] = zrow1
    xpad_ref[:, 1:H + 1, :, :] = xk_ref[...]

    acc1 = jnp.zeros((M, Cp), jnp.float32)
    for ky in range(3):                    # 3 MXU pushes, K = 3*Cin, f32 accumulation
        lhs = xpad_ref[:, ky:ky + H, :, :].reshape(M, K1)
        acc1 = acc1 + jnp.dot(lhs, w1_ref[ky],
                              preferred_element_type=jnp.float32)

    # ReLU + BN1 (unfolded, f32: no gamma~0 / tiny-scale hazard)
    y1 = jnp.maximum(acc1 + b1_ref[...], 0.0) * s1_ref[...] + t1_ref[...]

    # ---- conv2 im2col: 3 kx slots at 128-aligned lane offsets ---------------------
    zrow2 = jnp.zeros((Nb, 1, W + _LP + _RP, 3 * Cp), jnp.float32)
    y1col_ref[:, 0:1, :, :] = zrow2                      # ky = 0 halo row
    y1col_ref[:, H + 1:H + 2, :, :] = zrow2              # ky = 2 halo row
    # zero the centre slot's W halo (read by the shifted-slot copies below)
    y1col_ref[:, :, 0:_LP, Cp:2 * Cp] = jnp.zeros((Nb, H + 2, _LP, Cp), jnp.float32)
    y1col_ref[:, :, _LP + W:_LP + W + _RP, Cp:2 * Cp] = (
        jnp.zeros((Nb, H + 2, _RP, Cp), jnp.float32))
    # centre slot (kx = 1): lane- and sublane-aligned, unmasked store
    y1col_ref[:, 1:H + 1, _LP:_LP + W, Cp:2 * Cp] = y1.reshape(Nb, H, W, Cp)
    # left slot (kx = 0, reads w-1) / right slot (kx = 2, reads w+1): the +-1 shift
    # is realised as a sublane-offset *read* of the centre slot; stores stay aligned.
    y1col_ref[:, 1:H + 1, _LP:_LP + W, 0:Cp] = (
        y1col_ref[:, 1:H + 1, _LP - 1:_LP - 1 + W, Cp:2 * Cp])
    y1col_ref[:, 1:H + 1, _LP:_LP + W, 2 * Cp:3 * Cp] = (
        y1col_ref[:, 1:H + 1, _LP + 1:_LP + 1 + W, Cp:2 * Cp])

    # ---- conv2 + ReLU + BN2: 3 MXU pushes, K = 3*Cp -------------------------------
    acc2 = jnp.zeros((M, Cp), jnp.float32)
    for ky in range(3):
        lhs = y1col_ref[:, ky:ky + H, _LP:_LP + W, :].reshape(M, K2).astype(mmdt)
        acc2 = acc2 + jnp.dot(lhs, w2_ref[ky],
                              preferred_element_type=jnp.float32)

    y2 = jnp.maximum(acc2 + b2_ref[...], 0.0) * s2_ref[...] + t2_ref[...]

    # ---- 2x2 max pool (stride 2): H in-register, W via proven strided ref reads ---
    y2 = y2.reshape(Nb, Ho, 2, W, Cp)
    hpool_ref[...] = jnp.maximum(y2[:, :, 0], y2[:, :, 1])       # (Nb, Ho, W, Cp)
    wl = hpool_ref[:, :, pl.ds(0, Wo, 2), :]
    wr = hpool_ref[:, :, pl.ds(1, Wo, 2), :]
    out_ref[...] = jnp.maximum(wl, wr).astype(out_ref.dtype)     # lane-dense store

    # Dropout(p=0.25) is the identity in inference mode.
    # TODO(synk): training-mode dropout / batch-statistics BatchNorm are not emulated.


def _round_up(x, m):
    return (x + m - 1) // m * m


def _phys_bytes(shape, dtype):
    """Physical VMEM bytes of a (>=2-D) buffer under (sublane, 128-lane) tiling."""
    itemsize = jnp.dtype(dtype).itemsize
    sublane = (32 // (8 * itemsize)) * 8      # 8 rows for f32, 16 for bf16
    lead = 1
    for d in shape[:-2]:
        lead *= d
    return lead * _round_up(shape[-2], sublane) * _round_up(shape[-1], 128) * itemsize


def _step_vmem_bytes(nb, H, W, Cin, Cp, mm_dtype):
    """Physical per-grid-step VMEM: double-buffered blocks + scratches + live values."""
    Ho = H // 2
    Wo = W // 2
    K1, K2 = 3 * Cin, 3 * Cp
    M = nb * H * W
    f32 = jnp.float32
    b = 0
    b += 2 * _phys_bytes((nb, H, W, K1), mm_dtype)            # input block
    b += 2 * _phys_bytes((nb, Ho, Wo, Cp), f32)               # output block
    b += 2 * (_phys_bytes((3, K1, Cp), mm_dtype)              # weights + BN vectors
              + _phys_bytes((3, K2, Cp), mm_dtype)
              + 6 * _phys_bytes((1, Cp), f32))
    b += _phys_bytes((nb, H + 2, W, K1), mm_dtype)            # conv1 halo scratch
    b += _phys_bytes((nb, H + 2, W + _LP + _RP, K2), f32)     # conv2 im2col scratch
    b += _phys_bytes((nb, Ho, W, Cp), f32)                    # H-pooled partial
    b += 3 * _phys_bytes((M, Cp), f32)                        # live accumulators
    b += _phys_bytes((M, K2), f32)                            # conv2 LHS slab
    return b


def _tpu_policy():
    """(vmem_limit_bytes, per-step VMEM budget, single_tensorcore) for the local TPU."""
    kind = ""
    try:
        kind = jax.devices()[0].device_kind.lower()
    except Exception:
        pass
    if "7" in kind:                                   # v7x: 64 MiB VMEM per TC, 2 TCs
        return 48 << 20, 20 << 20, False
    if any(t in kind for t in ("v5 lite", "v5e", "v6 lite", "v6e")):
        return 96 << 20, 32 << 20, True               # 128 MiB VMEM, single TC
    return 64 << 20, 24 << 20, False                  # unknown / v4 / v5p: conservative


def _pick_block_n(N, H, W, Cin, Cp, mm_dtype, budget_bytes, max_nb):
    """Largest divisor of N (<= max_nb) whose physical per-step footprint fits."""
    best = 1
    for nb in range(1, N + 1):
        if N % nb or nb > max_nb:
            continue
        if _step_vmem_bytes(nb, H, W, Cin, Cp, mm_dtype) <= budget_bytes:
            best = nb
    return best


@functools.partial(jax.jit, static_argnames=("matmul_dtype", "block_n"))
def conv_block_forward(x_nchw, params, *, matmul_dtype=jnp.bfloat16, block_n=None):
    """Inference-mode ConvBlock forward.  NCHW in / NCHW out, like the PyTorch module.

    matmul_dtype feeds the MXU only (inputs + weights); accumulation and all
    elementwise math stay float32.  bfloat16 is the recommended default on every TPU
    generation (the v5e MXU is bf16-native too); float32 tracks PyTorch most closely.
    """
    eps = 1e-5
    N, Cin, H, W = x_nchw.shape
    Cout = params["w1"].shape[0]
    if H % 2 or W % 2:
        raise ValueError("ConvBlock kernel assumes even H and W (MaxPool2d(2)).")
    Ho, Wo = H // 2, W // 2
    Cp = Cout if Cout >= 128 else 128        # lane-dense channel width

    vmem_limit, vmem_budget, single_tc = _tpu_policy()
    if block_n is None:
        max_nb = N if single_tc else max(1, N // 2)   # keep >=2 steps for 2-TC parts
        block_n = _pick_block_n(N, H, W, Cin, Cp, matmul_dtype, vmem_budget, max_nb)
    if N % block_n:
        raise ValueError("block_n must divide the batch size")
    Nb = block_n

    x = jnp.transpose(x_nchw, (0, 2, 3, 1)).astype(jnp.float32)   # NCHW -> NHWC
    # Fold conv1's kx window into the contraction dim (K = 3*Cin) here: a pad+concat
    # of the smallest tensor; removes conv1's W halo from the kernel entirely.
    xp = jnp.pad(x, ((0, 0), (0, 0), (1, 1), (0, 0)))
    xk = jnp.concatenate([xp[:, :, kx:kx + W, :] for kx in range(3)],
                         axis=-1).astype(matmul_dtype)            # (N, H, W, 3*Cin)

    s1 = params["gamma1"] / jnp.sqrt(params["var1"] + eps)
    t1 = params["beta1"] - params["mean1"] * s1
    s2 = params["gamma2"] / jnp.sqrt(params["var2"] + eps)
    t2 = params["beta2"] - params["mean2"] * s2

    # OIHW -> HWIO, kx folded into K, channels zero-padded to the lane width Cp.
    w1_hwio = jnp.transpose(params["w1"], (2, 3, 1, 0))           # (3, 3, Cin, Cout)
    w1col = jnp.pad(w1_hwio.reshape(3, 3 * Cin, Cout),
                    ((0, 0), (0, 0), (0, Cp - Cout))).astype(matmul_dtype)
    w2_hwio = jnp.transpose(params["w2"], (2, 3, 1, 0))           # (3, 3, Cout, Cout)
    w2p = jnp.zeros((3, 3, Cp, Cp), jnp.float32).at[:, :, :Cout, :Cout].set(w2_hwio)
    w2col = w2p.reshape(3, 3 * Cp, Cp).astype(matmul_dtype)

    def vec(v):                                # (Cout,) -> zero-padded (1, Cp) f32
        return jnp.pad(v.astype(jnp.float32), (0, Cp - Cout)).reshape(1, Cp)

    vec_spec = pl.BlockSpec((1, Cp), lambda n: (0, 0))

    out_padded = pl.pallas_call(
        _convblock_kernel,
        out_shape=jax.ShapeDtypeStruct((N, Ho, Wo, Cp), jnp.float32),
        grid_spec=pltpu.PrefetchScalarGridSpec(
            num_scalar_prefetch=0,
            grid=(N // Nb,),
            in_specs=[
                pl.BlockSpec((Nb, H, W, 3 * Cin), lambda n: (n, 0, 0, 0)),
                pl.BlockSpec((3, 3 * Cin, Cp), lambda n: (0, 0, 0)),
                vec_spec, vec_spec, vec_spec,
                pl.BlockSpec((3, 3 * Cp, Cp), lambda n: (0, 0, 0)),
                vec_spec, vec_spec, vec_spec,
            ],
            out_specs=pl.BlockSpec((Nb, Ho, Wo, Cp), lambda n: (n, 0, 0, 0)),
            scratch_shapes=[
                pltpu.VMEM((Nb, H + 2, W, 3 * Cin), matmul_dtype),           # conv1 halo
                pltpu.VMEM((Nb, H + 2, W + _LP + _RP, 3 * Cp), jnp.float32),  # conv2 im2col
                pltpu.VMEM((Nb, Ho, W, Cp), jnp.float32),                    # H-pooled
            ],
        ),
        compiler_params=pltpu.CompilerParams(
            dimension_semantics=("parallel",),
            vmem_limit_bytes=vmem_limit,
        ),
    )(xk, w1col, vec(params["b1"]), vec(s1), vec(t1),
      w2col, vec(params["b2"]), vec(s2), vec(t2))

    out = out_padded[..., :Cout]                 # drop the lane padding
    return jnp.transpose(out, (0, 3, 1, 2))      # NHWC -> NCHW


def _ref_forward(x_nchw, params):
    """Pure-JAX reference of the same inference-mode forward pass (f32, HIGHEST)."""
    eps = 1e-5
    x = jnp.transpose(x_nchw, (0, 2, 3, 1)).astype(jnp.float32)

    def conv3x3(x, w_oihw, b):
        H, W = x.shape[1], x.shape[2]
        w = jnp.transpose(w_oihw, (2, 3, 1, 0))
        xp = jnp.pad(x, ((0, 0), (1, 1), (1, 1), (0, 0)))
        acc = jnp.zeros(x.shape[:3] + (w.shape[-1],), jnp.float32)
        for ky in range(3):
            for kx in range(3):
                acc = acc + jnp.einsum("nhwc,co->nhwo",
                                       xp[:, ky:ky + H, kx:kx + W, :], w[ky, kx],
                                       precision=jax.lax.Precision.HIGHEST)
        return acc + b

    def bn(x, g, bta, m, v):
        return (x - m) / jnp.sqrt(v + eps) * g + bta

    y = bn(jnp.maximum(conv3x3(x, params["w1"], params["b1"]), 0.0),
           params["gamma1"], params["beta1"], params["mean1"], params["var1"])
    y = bn(jnp.maximum(conv3x3(y, params["w2"], params["b2"]), 0.0),
           params["gamma2"], params["beta2"], params["mean2"], params["var2"])
    N, H, W, C = y.shape
    y = y.reshape(N, H // 2, 2, W // 2, 2, C).max(axis=(2, 4))
    return jnp.transpose(y, (0, 3, 1, 2))


if __name__ == "__main__":
    N, Cin, Cout, H, W = 2, 4, 8, 16, 16
    ks = jax.random.split(jax.random.PRNGKey(0), 13)
    params = {
        "w1": 0.2 * jax.random.normal(ks[0], (Cout, Cin, 3, 3), jnp.float32),
        "b1": 0.1 * jax.random.normal(ks[1], (Cout,), jnp.float32),
        "gamma1": 1.0 + 0.1 * jax.random.normal(ks[2], (Cout,), jnp.float32),
        "beta1": 0.1 * jax.random.normal(ks[3], (Cout,), jnp.float32),
        "mean1": 0.1 * jax.random.normal(ks[4], (Cout,), jnp.float32),
        "var1": 0.5 + jnp.abs(jax.random.normal(ks[5], (Cout,), jnp.float32)),
        "w2": 0.2 * jax.random.normal(ks[6], (Cout, Cout, 3, 3), jnp.float32),
        "b2": 0.1 * jax.random.normal(ks[7], (Cout,), jnp.float32),
        "gamma2": 1.0 + 0.1 * jax.random.normal(ks[8], (Cout,), jnp.float32),
        "beta2": 0.1 * jax.random.normal(ks[9], (Cout,), jnp.float32),
        "mean2": 0.1 * jax.random.normal(ks[10], (Cout,), jnp.float32),
        "var2": 0.5 + jnp.abs(jax.random.normal(ks[11], (Cout,), jnp.float32)),
    }
    x = jax.random.normal(ks[12], (N, Cin, H, W), jnp.float32)

    ref = _ref_forward(x, params)

    # f32 MXU path: tracks the Precision.HIGHEST reference tightly (small headroom
    # for the TPU's default f32 matmul decomposition).
    out_f32 = jax.block_until_ready(
        conv_block_forward(x, params, matmul_dtype=jnp.float32))
    assert out_f32.shape == (N, Cout, H // 2, W // 2), out_f32.shape
    err_f32 = float(jnp.max(jnp.abs(out_f32 - ref)))
    if err_f32 > 2e-3:
        raise AssertionError(f"f32 kernel/reference mismatch, max abs err = {err_f32}")

    # Default (bf16) MXU path: only matmul inputs are bf16; accumulation and all
    # elementwise math stay f32.  Tolerance sized for bf16 input rounding (~0.4%)
    # through two 3x3 convs of O(1..10) activations.
    out_bf16 = jax.block_until_ready(conv_block_forward(x, params))
    err_bf16 = float(jnp.max(jnp.abs(out_bf16 - ref)))
    if err_bf16 > 1.5e-1:
        raise AssertionError(f"bf16 kernel/reference mismatch, max abs err = {err_bf16}")

    print("KERNEL_OK")
</pallas_src>

<mosaic_0001>
module attributes {stable_mosaic.version = 11 : i64} {
  func.func @_convblock_kernel(%arg0: i32, %arg1: memref<1x16x16x12xf32, #tpu.memory_space<vmem>>, %arg2: memref<3x12x128xf32, #tpu.memory_space<vmem>>, %arg3: memref<1x128xf32, #tpu.memory_space<vmem>>, %arg4: memref<1x128xf32, #tpu.memory_space<vmem>>, %arg5: memref<1x128xf32, #tpu.memory_space<vmem>>, %arg6: memref<3x384x128xf32, #tpu.memory_space<vmem>>, %arg7: memref<1x128xf32, #tpu.memory_space<vmem>>, %arg8: memref<1x128xf32, #tpu.memory_space<vmem>>, %arg9: memref<1x128xf32, #tpu.memory_space<vmem>>, %arg10: memref<1x8x8x128xf32, #tpu.memory_space<vmem>>, %arg11: memref<1x18x16x12xf32, #tpu.memory_space<vmem>>, %arg12: memref<1x18x32x384xf32, #tpu.memory_space<vmem>>, %arg13: memref<1x8x16x128xf32, #tpu.memory_space<vmem>>) attributes {dimension_semantics = [#tpu.dimension_semantics<parallel>], iteration_bounds = array<i64: 2>, scalar_prefetch = 0 : i64, scratch_operands = 3 : i64, tpu.core_type = #tpu.core_type<tc>, window_params = [{transform_indices = @transform_0, window_bounds = array<i64: 1, 16, 16, 12>}, {pipeline_mode = #tpu.pipeline_mode<synchronous>, transform_indices = @transform_1, window_bounds = array<i64: 3, 12, 128>}, {pipeline_mode = #tpu.pipeline_mode<synchronous>, transform_indices = @transform_2, window_bounds = array<i64: 1, 128>}, {pipeline_mode = #tpu.pipeline_mode<synchronous>, transform_indices = @transform_3, window_bounds = array<i64: 1, 128>}, {pipeline_mode = #tpu.pipeline_mode<synchronous>, transform_indices = @transform_4, window_bounds = array<i64: 1, 128>}, {pipeline_mode = #tpu.pipeline_mode<synchronous>, transform_indices = @transform_5, window_bounds = array<i64: 3, 384, 128>}, {pipeline_mode = #tpu.pipeline_mode<synchronous>, transform_indices = @transform_6, window_bounds = array<i64: 1, 128>}, {pipeline_mode = #tpu.pipeline_mode<synchronous>, transform_indices = @transform_7, window_bounds = array<i64: 1, 128>}, {pipeline_mode = #tpu.pipeline_mode<synchronous>, transform_indices = @transform_8, window_bounds = array<i64: 1, 128>}, {transform_indices = @transform_9, window_bounds = array<i64: 1, 8, 8, 128>}]} {
    %cst = arith.constant 0.000000e+00 : f32
    %0 = vector.broadcast %cst : f32 to vector<1x1x16x12xf32>
    %c0 = arith.constant 0 : index
    %c0_0 = arith.constant 0 : index
    %c0_1 = arith.constant 0 : index
    %c0_2 = arith.constant 0 : index
    %1 = vector.load %arg11[%c0, %c0_0, %c0_1, %c0_2] : memref<1x18x16x12xf32, #tpu.memory_space<vmem>>, vector<1x1x16x12xf32>
    tpu.vector_store %arg11[%c0, %c0_0, %c0_1, %c0_2], %0 {strides = array<i32>} : memref<1x18x16x12xf32, #tpu.memory_space<vmem>>, vector<1x1x16x12xf32>,
    %c0_3 = arith.constant 0 : index
    %c17 = arith.constant 17 : index
    %c0_4 = arith.constant 0 : index
    %c0_5 = arith.constant 0 : index
    %2 = vector.load %arg11[%c0_3, %c17, %c0_4, %c0_5] : memref<1x18x16x12xf32, #tpu.memory_space<vmem>>, vector<1x1x16x12xf32>
    tpu.vector_store %arg11[%c0_3, %c17, %c0_4, %c0_5], %0 {strides = array<i32>} : memref<1x18x16x12xf32, #tpu.memory_space<vmem>>, vector<1x1x16x12xf32>,
    %c0_6 = arith.constant 0 : index
    %c0_7 = arith.constant 0 : index
    %c0_8 = arith.constant 0 : index
    %c0_9 = arith.constant 0 : index
    %3 = vector.load %arg1[%c0_6, %c0_7, %c0_8, %c0_9] : memref<1x16x16x12xf32, #tpu.memory_space<vmem>>, vector<1x16x16x12xf32>
    %c0_10 = arith.constant 0 : index
    %c1 = arith.constant 1 : index
    %c0_11 = arith.constant 0 : index
    %c0_12 = arith.constant 0 : index
    %4 = vector.load %arg11[%c0_10, %c1, %c0_11, %c0_12] : memref<1x18x16x12xf32, #tpu.memory_space<vmem>>, vector<1x16x16x12xf32>
    tpu.vector_store %arg11[%c0_10, %c1, %c0_11, %c0_12], %3 {strides = array<i32>} : memref<1x18x16x12xf32, #tpu.memory_space<vmem>>, vector<1x16x16x12xf32>,
    %cst_13 = arith.constant 0.000000e+00 : f32
    %5 = vector.broadcast %cst_13 : f32 to vector<256x128xf32>
    %c0_14 = arith.constant 0 : index
    %c0_15 = arith.constant 0 : index
    %c0_16 = arith.constant 0 : index
    %c0_17 = arith.constant 0 : index
    %6 = vector.load %arg11[%c0_14, %c0_15, %c0_16, %c0_17] : memref<1x18x16x12xf32, #tpu.memory_space<vmem>>, vector<1x16x16x12xf32>
    %7 = vector.shape_cast %6 : vector<1x16x16x12xf32> to vector<256x12xf32>
    %c0_18 = arith.constant 0 : index
    %c0_19 = arith.constant 0 : index
    %c0_20 = arith.constant 0 : index
    %8 = vector.load %arg2[%c0_18, %c0_19, %c0_20] : memref<3x12x128xf32, #tpu.memory_space<vmem>>, vector<1x12x128xf32>
    %9 = vector.shape_cast %8 : vector<1x12x128xf32> to vector<12x128xf32>
    %cst_21 = arith.constant dense<0.000000e+00> : vector<256x128xf32>
    %10 = tpu.matmul %7, %9, %cst_21 {dimension_numbers = #tpu.dot_dimension_numbers<[1], [0], [0], [1], [0, 0, 1, 1], [], []>} : vector<256x12xf32>, vector<12x128xf32>, vector<256x128xf32> -> vector<256x128xf32>
    %11 = arith.addf %5, %10 : vector<256x128xf32>
    %c0_22 = arith.constant 0 : index
    %c1_23 = arith.constant 1 : index
    %c0_24 = arith.constant 0 : index
    %c0_25 = arith.constant 0 : index
    %12 = vector.load %arg11[%c0_22, %c1_23, %c0_24, %c0_25] : memref<1x18x16x12xf32, #tpu.memory_space<vmem>>, vector<1x16x16x12xf32>
    %13 = vector.shape_cast %12 : vector<1x16x16x12xf32> to vector<256x12xf32>
    %c1_26 = arith.constant 1 : index
    %c0_27 = arith.constant 0 : index
    %c0_28 = arith.constant 0 : index
    %14 = vector.load %arg2[%c1_26, %c0_27, %c0_28] : memref<3x12x128xf32, #tpu.memory_space<vmem>>, vector<1x12x128xf32>
    %15 = vector.shape_cast %14 : vector<1x12x128xf32> to vector<12x128xf32>
    %cst_29 = arith.constant dense<0.000000e+00> : vector<256x128xf32>
    %16 = tpu.matmul %13, %15, %cst_29 {dimension_numbers = #tpu.dot_dimension_numbers<[1], [0], [0], [1], [0, 0, 1, 1], [], []>} : vector<256x12xf32>, vector<12x128xf32>, vector<256x128xf32> -> vector<256x128xf32>
    %17 = arith.addf %11, %16 : vector<256x128xf32>
    %c0_30 = arith.constant 0 : index
    %c2 = arith.constant 2 : index
    %c0_31 = arith.constant 0 : index
    %c0_32 = arith.constant 0 : index
    %18 = vector.load %arg11[%c0_30, %c2, %c0_31, %c0_32] : memref<1x18x16x12xf32, #tpu.memory_space<vmem>>, vector<1x16x16x12xf32>
    %19 = vector.shape_cast %18 : vector<1x16x16x12xf32> to vector<256x12xf32>
    %c2_33 = arith.constant 2 : index
    %c0_34 = arith.constant 0 : index
    %c0_35 = arith.constant 0 : index
    %20 = vector.load %arg2[%c2_33, %c0_34, %c0_35] : memref<3x12x128xf32, #tpu.memory_space<vmem>>, vector<1x12x128xf32>
    %21 = vector.shape_cast %20 : vector<1x12x128xf32> to vector<12x128xf32>
    %cst_36 = arith.constant dense<0.000000e+00> : vector<256x128xf32>
    %22 = tpu.matmul %19, %21, %cst_36 {dimension_numbers = #tpu.dot_dimension_numbers<[1], [0], [0], [1], [0, 0, 1, 1], [], []>} : vector<256x12xf32>, vector<12x128xf32>, vector<256x128xf32> -> vector<256x128xf32>
    %23 = arith.addf %17, %22 : vector<256x128xf32>
    %c0_37 = arith.constant 0 : index
    %c0_38 = arith.constant 0 : index
    %24 = vector.load %arg3[%c0_37, %c0_38] : memref<1x128xf32, #tpu.memory_space<vmem>>, vector<1x128xf32>
    %25 = vector.broadcast %24 : vector<1x128xf32> to vector<256x128xf32>
    %26 = arith.addf %23, %25 : vector<256x128xf32>
    %cst_39 = arith.constant 0.000000e+00 : f32
    %27 = vector.broadcast %cst_39 : f32 to vector<256x128xf32>
    %28 = arith.maximumf %26, %27 : vector<256x128xf32>
    %c0_40 = arith.constant 0 : index
    %c0_41 = arith.constant 0 : index
    %29 = vector.load %arg4[%c0_40, %c0_41] : memref<1x128xf32, #tpu.memory_space<vmem>>, vector<1x128xf32>
    %30 = vector.broadcast %29 : vector<1x128xf32> to vector<256x128xf32>
    %31 = arith.mulf %28, %30 : vector<256x128xf32>
    %c0_42 = arith.constant 0 : index
    %c0_43 = arith.constant 0 : index
    %32 = vector.load %arg5[%c0_42, %c0_43] : memref<1x128xf32, #tpu.memory_space<vmem>>, vector<1x128xf32>
    %33 = vector.broadcast %32 : vector<1x128xf32> to vector<256x128xf32>
    %34 = arith.addf %31, %33 : vector<256x128xf32>
    %cst_44 = arith.constant 0.000000e+00 : f32
    %35 = vector.broadcast %cst_44 : f32 to vector<1x1x32x384xf32>
    %c0_45 = arith.constant 0 : index
    %c0_46 = arith.constant 0 : index
    %c0_47 = arith.constant 0 : index
    %c0_48 = arith.constant 0 : index
    %36 = vector.load %arg12[%c0_45, %c0_46, %c0_47, %c0_48] : memref<1x18x32x384xf32, #tpu.memory_space<vmem>>, vector<1x1x32x384xf32>
    tpu.vector_store %arg12[%c0_45, %c0_46, %c0_47, %c0_48], %35 {strides = array<i32>} : memref<1x18x32x384xf32, #tpu.memory_space<vmem>>, vector<1x1x32x384xf32>,
    %c0_49 = arith.constant 0 : index
    %c17_50 = arith.constant 17 : index
    %c0_51 = arith.constant 0 : index
    %c0_52 = arith.constant 0 : index
    %37 = vector.load %arg12[%c0_49, %c17_50, %c0_51, %c0_52] : memref<1x18x32x384xf32, #tpu.memory_space<vmem>>, vector<1x1x32x384xf32>
    tpu.vector_store %arg12[%c0_49, %c17_50, %c0_51, %c0_52], %35 {strides = array<i32>} : memref<1x18x32x384xf32, #tpu.memory_space<vmem>>, vector<1x1x32x384xf32>,
    %cst_53 = arith.constant 0.000000e+00 : f32
    %38 = vector.broadcast %cst_53 : f32 to vector<1x18x8x128xf32>
    %c0_54 = arith.constant 0 : index
    %c0_55 = arith.constant 0 : index
    %c0_56 = arith.constant 0 : index
    %c128 = arith.constant 128 : index
    %39 = vector.load %arg12[%c0_54, %c0_55, %c0_56, %c128] : memref<1x18x32x384xf32, #tpu.memory_space<vmem>>, vector<1x18x8x128xf32>
    tpu.vector_store %arg12[%c0_54, %c0_55, %c0_56, %c128], %38 {strides = array<i32>} : memref<1x18x32x384xf32, #tpu.memory_space<vmem>>, vector<1x18x8x128xf32>,
    %cst_57 = arith.constant 0.000000e+00 : f32
    %40 = vector.broadcast %cst_57 : f32 to vector<1x18x8x128xf32>
    %c0_58 = arith.constant 0 : index
    %c0_59 = arith.constant 0 : index
    %c24 = arith.constant 24 : index
    %c128_60 = arith.constant 128 : index
    %41 = vector.load %arg12[%c0_58, %c0_59, %c24, %c128_60] : memref<1x18x32x384xf32, #tpu.memory_space<vmem>>, vector<1x18x8x128xf32>
    tpu.vector_store %arg12[%c0_58, %c0_59, %c24, %c128_60], %40 {strides = array<i32>} : memref<1x18x32x384xf32, #tpu.memory_space<vmem>>, vector<1x18x8x128xf32>,
    %42 = vector.shape_cast %34 : vector<256x128xf32> to vector<1x16x16x128xf32>
    %c0_61 = arith.constant 0 : index
    %c1_62 = arith.constant 1 : index
    %c8 = arith.constant 8 : index
    %c128_63 = arith.constant 128 : index
    %43 = vector.load %arg12[%c0_61, %c1_62, %c8, %c128_63] : memref<1x18x32x384xf32, #tpu.memory_space<vmem>>, vector<1x16x16x128xf32>
    tpu.vector_store %arg12[%c0_61, %c1_62, %c8, %c128_63], %42 {strides = array<i32>} : memref<1x18x32x384xf32, #tpu.memory_space<vmem>>, vector<1x16x16x128xf32>,
    %c0_64 = arith.constant 0 : index
    %c1_65 = arith.constant 1 : index
    %c7 = arith.constant 7 : index
    %c128_66 = arith.constant 128 : index
    %44 = vector.load %arg12[%c0_64, %c1_65, %c7, %c128_66] : memref<1x18x32x384xf32, #tpu.memory_space<vmem>>, vector<1x16x16x128xf32>
    %c0_67 = arith.constant 0 : index
    %c1_68 = arith.constant 1 : index
    %c8_69 = arith.constant 8 : index
    %c0_70 = arith.constant 0 : index
    %45 = vector.load %arg12[%c0_67, %c1_68, %c8_69, %c0_70] : memref<1x18x32x384xf32, #tpu.memory_space<vmem>>, vector<1x16x16x128xf32>
    tpu.vector_store %arg12[%c0_67, %c1_68, %c8_69, %c0_70], %44 {strides = array<i32>} : memref<1x18x32x384xf32, #tpu.memory_space<vmem>>, vector<1x16x16x128xf32>,
    %c0_71 = arith.constant 0 : index
    %c1_72 = arith.constant 1 : index
    %c9 = arith.constant 9 : index
    %c128_73 = arith.constant 128 : index
    %46 = vector.load %arg12[%c0_71, %c1_72, %c9, %c128_73] : memref<1x18x32x384xf32, #tpu.memory_space<vmem>>, vector<1x16x16x128xf32>
    %c0_74 = arith.constant 0 : index
    %c1_75 = arith.constant 1 : index
    %c8_76 = arith.constant 8 : index
    %c256 = arith.constant 256 : index
    %47 = vector.load %arg12[%c0_74, %c1_75, %c8_76, %c256] : memref<1x18x32x384xf32, #tpu.memory_space<vmem>>, vector<1x16x16x128xf32>
    tpu.vector_store %arg12[%c0_74, %c1_75, %c8_76, %c256], %46 {strides = array<i32>} : memref<1x18x32x384xf32, #tpu.memory_space<vmem>>, vector<1x16x16x128xf32>,
    %cst_77 = arith.constant 0.000000e+00 : f32
    %48 = vector.broadcast %cst_77 : f32 to vector<256x128xf32>
    %c0_78 = arith.constant 0 : index
    %c0_79 = arith.constant 0 : index
    %c8_80 = arith.constant 8 : index
    %c0_81 = arith.constant 0 : index
    %49 = vector.load %arg12[%c0_78, %c0_79, %c8_80, %c0_81] : memref<1x18x32x384xf32, #tpu.memory_space<vmem>>, vector<1x16x16x384xf32>
    %50 = vector.shape_cast %49 : vector<1x16x16x384xf32> to vector<256x384xf32>
    %c0_82 = arith.constant 0 : index
    %c0_83 = arith.constant 0 : index
    %c0_84 = arith.constant 0 : index
    %51 = vector.load %arg6[%c0_82, %c0_83, %c0_84] : memref<3x384x128xf32, #tpu.memory_space<vmem>>, vector<1x384x128xf32>
    %52 = vector.shape_cast %51 : vector<1x384x128xf32> to vector<384x128xf32>
    %cst_85 = arith.constant dense<0.000000e+00> : vector<256x128xf32>
    %53 = tpu.matmul %50, %52, %cst_85 {dimension_numbers = #tpu.dot_dimension_numbers<[1], [0], [0], [1], [0, 0, 1, 1], [], []>} : vector<256x384xf32>, vector<384x128xf32>, vector<256x128xf32> -> vector<256x128xf32>
    %54 = arith.addf %48, %53 : vector<256x128xf32>
    %c0_86 = arith.constant 0 : index
    %c1_87 = arith.constant 1 : index
    %c8_88 = arith.constant 8 : index
    %c0_89 = arith.constant 0 : index
    %55 = vector.load %arg12[%c0_86, %c1_87, %c8_88, %c0_89] : memref<1x18x32x384xf32, #tpu.memory_space<vmem>>, vector<1x16x16x384xf32>
    %56 = vector.shape_cast %55 : vector<1x16x16x384xf32> to vector<256x384xf32>
    %c1_90 = arith.constant 1 : index
    %c0_91 = arith.constant 0 : index
    %c0_92 = arith.constant 0 : index
    %57 = vector.load %arg6[%c1_90, %c0_91, %c0_92] : memref<3x384x128xf32, #tpu.memory_space<vmem>>, vector<1x384x128xf32>
    %58 = vector.shape_cast %57 : vector<1x384x128xf32> to vector<384x128xf32>
    %cst_93 = arith.constant dense<0.000000e+00> : vector<256x128xf32>
    %59 = tpu.matmul %56, %58, %cst_93 {dimension_numbers = #tpu.dot_dimension_numbers<[1], [0], [0], [1], [0, 0, 1, 1], [], []>} : vector<256x384xf32>, vector<384x128xf32>, vector<256x128xf32> -> vector<256x128xf32>
    %60 = arith.addf %54, %59 : vector<256x128xf32>
    %c0_94 = arith.constant 0 : index
    %c2_95 = arith.constant 2 : index
    %c8_96 = arith.constant 8 : index
    %c0_97 = arith.constant 0 : index
    %61 = vector.load %arg12[%c0_94, %c2_95, %c8_96, %c0_97] : memref<1x18x32x384xf32, #tpu.memory_space<vmem>>, vector<1x16x16x384xf32>
    %62 = vector.shape_cast %61 : vector<1x16x16x384xf32> to vector<256x384xf32>
    %c2_98 = arith.constant 2 : index
    %c0_99 = arith.constant 0 : index
    %c0_100 = arith.constant 0 : index
    %63 = vector.load %arg6[%c2_98, %c0_99, %c0_100] : memref<3x384x128xf32, #tpu.memory_space<vmem>>, vector<1x384x128xf32>
    %64 = vector.shape_cast %63 : vector<1x384x128xf32> to vector<384x128xf32>
    %cst_101 = arith.constant dense<0.000000e+00> : vector<256x128xf32>
    %65 = tpu.matmul %62, %64, %cst_101 {dimension_numbers = #tpu.dot_dimension_numbers<[1], [0], [0], [1], [0, 0, 1, 1], [], []>} : vector<256x384xf32>, vector<384x128xf32>, vector<256x128xf32> -> vector<256x128xf32>
    %66 = arith.addf %60, %65 : vector<256x128xf32>
    %c0_102 = arith.constant 0 : index
    %c0_103 = arith.constant 0 : index
    %67 = vector.load %arg7[%c0_102, %c0_103] : memref<1x128xf32, #tpu.memory_space<vmem>>, vector<1x128xf32>
    %68 = vector.broadcast %67 : vector<1x128xf32> to vector<256x128xf32>
    %69 = arith.addf %66, %68 : vector<256x128xf32>
    %cst_104 = arith.constant 0.000000e+00 : f32
    %70 = vector.broadcast %cst_104 : f32 to vector<256x128xf32>
    %71 = arith.maximumf %69, %70 : vector<256x128xf32>
    %c0_105 = arith.constant 0 : index
    %c0_106 = arith.constant 0 : index
    %72 = vector.load %arg8[%c0_105, %c0_106] : memref<1x128xf32, #tpu.memory_space<vmem>>, vector<1x128xf32>
    %73 = vector.broadcast %72 : vector<1x128xf32> to vector<256x128xf32>
    %74 = arith.mulf %71, %73 : vector<256x128xf32>
    %c0_107 = arith.constant 0 : index
    %c0_108 = arith.constant 0 : index
    %75 = vector.load %arg9[%c0_107, %c0_108] : memref<1x128xf32, #tpu.memory_space<vmem>>, vector<1x128xf32>
    %76 = vector.broadcast %75 : vector<1x128xf32> to vector<256x128xf32>
    %77 = arith.addf %74, %76 : vector<256x128xf32>
    %78 = vector.shape_cast %77 : vector<256x128xf32> to vector<1x8x2x16x128xf32>
    %79 = vector.extract_strided_slice %78 {offsets = [0, 0, 0, 0, 0], sizes = [1, 8, 1, 16, 128], strides = [1, 1, 1, 1, 1]} : vector<1x8x2x16x128xf32> to vector<1x8x1x16x128xf32>
    %80 = vector.shape_cast %79 : vector<1x8x1x16x128xf32> to vector<1x8x16x128xf32>
    %81 = vector.extract_strided_slice %78 {offsets = [0, 0, 1, 0, 0], sizes = [1, 8, 1, 16, 128], strides = [1, 1, 1, 1, 1]} : vector<1x8x2x16x128xf32> to vector<1x8x1x16x128xf32>
    %82 = vector.shape_cast %81 : vector<1x8x1x16x128xf32> to vector<1x8x16x128xf32>
    %83 = arith.maximumf %80, %82 : vector<1x8x16x128xf32>
    %c0_109 = arith.constant 0 : index
    %c0_110 = arith.constant 0 : index
    %c0_111 = arith.constant 0 : index
    %c0_112 = arith.constant 0 : index
    %84 = vector.load %arg13[%c0_109, %c0_110, %c0_111, %c0_112] : memref<1x8x16x128xf32, #tpu.memory_space<vmem>>, vector<1x8x16x128xf32>
    tpu.vector_store %arg13[%c0_109, %c0_110, %c0_111, %c0_112], %83 {strides = array<i32>} : memref<1x8x16x128xf32, #tpu.memory_space<vmem>>, vector<1x8x16x128xf32>,
    %c0_113 = arith.constant 0 : index
    %c0_114 = arith.constant 0 : index
    %c0_115 = arith.constant 0 : index
    %c0_116 = arith.constant 0 : index
    %85 = tpu.strided_load %arg13[%c0_113, %c0_114, %c0_115, %c0_116] {strides = array<i32: 1, 1, 2, 1>} : memref<1x8x16x128xf32, #tpu.memory_space<vmem>>, vector<1x8x8x128xf32>
    %c0_117 = arith.constant 0 : index
    %c0_118 = arith.constant 0 : index
    %c1_119 = arith.constant 1 : index
    %c0_120 = arith.constant 0 : index
    %86 = tpu.strided_load %arg13[%c0_117, %c0_118, %c1_119, %c0_120] {strides = array<i32: 1, 1, 2, 1>} : memref<1x8x16x128xf32, #tpu.memory_space<vmem>>, vector<1x8x8x128xf32>
    %87 = arith.maximumf %85, %86 : vector<1x8x8x128xf32>
    %c0_121 = arith.constant 0 : index
    %c0_122 = arith.constant 0 : index
    %c0_123 = arith.constant 0 : index
    %c0_124 = arith.constant 0 : index
    %88 = vector.load %arg10[%c0_121, %c0_122, %c0_123, %c0_124] : memref<1x8x8x128xf32, #tpu.memory_space<vmem>>, vector<1x8x8x128xf32>
    tpu.vector_store %arg10[%c0_121, %c0_122, %c0_123, %c0_124], %87 {strides = array<i32>} : memref<1x8x8x128xf32, #tpu.memory_space<vmem>>, vector<1x8x8x128xf32>,
    return
  }
  func.func @transform_0(%arg0: i32) -> (i32, i32, i32, i32) {
    %c0_i32 = arith.constant 0 : i32
    %c0_i32_0 = arith.constant 0 : i32
    %c0_i32_1 = arith.constant 0 : i32
    %c0_i32_2 = arith.constant 0 : i32
    return %arg0, %c0_i32, %c0_i32_0, %c0_i32_1 : i32, i32, i32, i32
  }
  func.func @transform_1(%arg0: i32) -> (i32, i32, i32) {
    %c0_i32 = arith.constant 0 : i32
    %c0_i32_0 = arith.constant 0 : i32
    %c0_i32_1 = arith.constant 0 : i32
    %c0_i32_2 = arith.constant 0 : i32
    return %c0_i32, %c0_i32_0, %c0_i32_1 : i32, i32, i32
  }
  func.func @transform_2(%arg0: i32) -> (i32, i32) {
    %c0_i32 = arith.constant 0 : i32
    %c0_i32_0 = arith.constant 0 : i32
    %c0_i32_1 = arith.constant 0 : i32
    return %c0_i32, %c0_i32_0 : i32, i32
  }
  func.func @transform_3(%arg0: i32) -> (i32, i32) {
    %c0_i32 = arith.constant 0 : i32
    %c0_i32_0 = arith.constant 0 : i32
    %c0_i32_1 = arith.constant 0 : i32
    return %c0_i32, %c0_i32_0 : i32, i32
  }
  func.func @transform_4(%arg0: i32) -> (i32, i32) {
    %c0_i32 = arith.constant 0 : i32
    %c0_i32_0 = arith.constant 0 : i32
    %c0_i32_1 = arith.constant 0 : i32
    return %c0_i32, %c0_i32_0 : i32, i32
  }
  func.func @transform_5(%arg0: i32) -> (i32, i32, i32) {
    %c0_i32 = arith.constant 0 : i32
    %c0_i32_0 = arith.constant 0 : i32
    %c0_i32_1 = arith.constant 0 : i32
    %c0_i32_2 = arith.constant 0 : i32
    return %c0_i32, %c0_i32_0, %c0_i32_1 : i32, i32, i32
  }
  func.func @transform_6(%arg0: i32) -> (i32, i32) {
    %c0_i32 = arith.constant 0 : i32
    %c0_i32_0 = arith.constant 0 : i32
    %c0_i32_1 = arith.constant 0 : i32
    return %c0_i32, %c0_i32_0 : i32, i32
  }
  func.func @transform_7(%arg0: i32) -> (i32, i32) {
    %c0_i32 = arith.constant 0 : i32
    %c0_i32_0 = arith.constant 0 : i32
    %c0_i32_1 = arith.constant 0 : i32
    return %c0_i32, %c0_i32_0 : i32, i32
  }
  func.func @transform_8(%arg0: i32) -> (i32, i32) {
    %c0_i32 = arith.constant 0 : i32
    %c0_i32_0 = arith.constant 0 : i32
    %c0_i32_1 = arith.constant 0 : i32
    return %c0_i32, %c0_i32_0 : i32, i32
  }
  func.func @transform_9(%arg0: i32) -> (i32, i32, i32, i32) {
    %c0_i32 = arith.constant 0 : i32
    %c0_i32_0 = arith.constant 0 : i32
    %c0_i32_1 = arith.constant 0 : i32
    %c0_i32_2 = arith.constant 0 : i32
    return %arg0, %c0_i32, %c0_i32_0, %c0_i32_1 : i32, i32, i32, i32
  }
}

</mosaic_0001>

<llo_original>
// kernel: conv_block_forward.1
$region0: #{conv_block_forward.1}
  #allocation0 [shape = 'u32[]', space=smem, size = 0x4, offset = 0x4, fixed_abs, tag = 'smem constant byte address 0x4 - core index']
  #allocation1 [shape = 'u32[72,128]{1,0:T(1,128)}', space=vmem, size = 0x9000, scoped, tag = 'internal scratch']
  #allocation2 [shape = 'f32[1,18,16,12]{3,2,1,0:T(8,128)}', space=vmem, size = 0x24000, scoped, tag = 'scratch operand']
  #allocation3 [shape = 'f32[1,18,32,384]{3,2,1,0:T(8,128)}', space=vmem, size = 0xd8000, scoped, tag = 'scratch operand']
  #allocation4 [shape = 'f32[1,8,16,128]{3,2,1,0:T(8,128)}', space=vmem, size = 0x10000, scoped, tag = 'scratch operand']
  %s0 = inlined_call_operand.vmem [shape: f32[2,16,16,12], index: 0, kind: input, shape index: {}]
  %s1 = inlined_call_operand.vmem [shape: f32[3,12,128], index: 1, kind: input, shape index: {}]
  %s2 = inlined_call_operand.vmem [shape: f32[1,128], index: 2, kind: input, shape index: {}]
  %s3 = inlined_call_operand.vmem [shape: f32[1,128], index: 3, kind: input, shape index: {}]
  %s4 = inlined_call_operand.vmem [shape: f32[1,128], index: 4, kind: input, shape index: {}]
  %s5 = inlined_call_operand.vmem [shape: f32[3,384,128], index: 5, kind: input, shape index: {}]
  %s6 = inlined_call_operand.vmem [shape: f32[1,128], index: 6, kind: input, shape index: {}]
  %s7 = inlined_call_operand.vmem [shape: f32[1,128], index: 7, kind: input, shape index: {}]
  %s8 = inlined_call_operand.vmem [shape: f32[1,128], index: 8, kind: input, shape index: {}]
  %s9 = inlined_call_operand.vmem [shape: f32[2,8,8,128], index: 9, kind: output, shape index: {}]
  %s10 = sld [smem:[#allocation0]]
  $region69: #{conv_block_forward.1} parent=0
    _
  %s12 = ssub.s32 1, %s10
  %s13 = scalar_select 0, %s12, %s10
  loop: start=0, step=1, limit=4
  $region2: #{conv_block_forward.1} parent=0 // loop_pre_header
    _
  $region3: #{conv_block_forward.1} parent=0 // loop_header
    %s15 = sphi 0, %s19
    %p16 = scmp.ge.s32.totalorder %s15, 4
    %s25 = sphi 0, %s27
    %s28 = sphi 0, %s25
    %s29 = sphi 0, %s28
    %s45 = sphi 0, %s29
    %s49 = sphi 0, %s49
    %s51 = sphi 0, %s49
    %s52 = sphi 0, %s51
    %s66 = sphi 0, %s52
    %s70 = sphi 0, %s70
    %s72 = sphi 0, %s70
    %s73 = sphi 0, %s72
    %s87 = sphi 0, %s73
    %s91 = sphi 0, %s91
    %s93 = sphi 0, %s91
    %s94 = sphi 0, %s93
    %s108 = sphi 0, %s94
    %s112 = sphi 0, %s112
    %s114 = sphi 0, %s112
    %s115 = sphi 0, %s114
    %s129 = sphi 0, %s115
    %s133 = sphi 0, %s133
    %s135 = sphi 0, %s133
    %s136 = sphi 0, %s135
    %s150 = sphi 0, %s136
    %s154 = sphi 0, %s154
    %s156 = sphi 0, %s154
    %s157 = sphi 0, %s156
    %s171 = sphi 0, %s157
    %s175 = sphi 0, %s175
    %s177 = sphi 0, %s175
    %s178 = sphi 0, %s177
    %s192 = sphi 0, %s178
    %s196 = sphi 0, %s196
    %s198 = sphi 0, %s196
    %s199 = sphi 0, %s198
    %s213 = sphi 0, %s199
    %s219 = sphi 0, %s221
    %s222 = sphi 0, %s219
    %s223 = sphi 0, %s222
    %s239 = sphi 0, %s223
  $region4: #{conv_block_forward.1} parent=0 // loop_header_branch
    %18 = sbr.rel (%p16) target = $region8
  $region5: #{conv_block_forward.1} parent=0 // loop_body
    %s20 = ssub.s32 %s15, 1
    %s21 = ssub.s32 %s15, 2
    %s22 = sadd.s32 %s15, 1
    %s23 = ssub.s32 %s15, %s22
    %p24 = scmp.eq.s32.totalorder %s23, 0
    %s26 = sadd.s32 %s25, 1
    %s27 = scalar_select %p24, %s25, %s26
    %p30 = pneg %p24
    %p31 = scmp.eq.s32.totalorder %s15, 1
    %p32 = por %p30, %p31
    %p33 = scmp.ne.s32.totalorder %s25, %s28
    %p34 = scmp.eq.s32.totalorder %s15, 0
    %p35 = por %p33, %p34
    %p36 = scmp.ne.s32.totalorder %s25, %s28
    %p37 = scmp.eq.s32.totalorder %s20, 1
    %p38 = por %p36, %p37
    %p39 = scmp.ne.s32.totalorder %s28, %s29
    %p40 = scmp.eq.s32.totalorder %s20, 0
    %p41 = por %p39, %p40
    %p42 = scmp.ne.s32.totalorder %s28, %s29
    %p43 = scmp.eq.s32.totalorder %s21, 1
    %p44 = por %p42, %p43
    %p46 = scmp.ne.s32.totalorder %s29, %s45
    %p47 = scmp.eq.s32.totalorder %s21, 0
    %p48 = por %p46, %p47
    %s50 = sadd.s32 %s49, 1
    %p53 = scmp.eq.s32.totalorder %s15, 1
    %p54 = scmp.ne.s32.totalorder %s49, %s51
    %p55 = scmp.eq.s32.totalorder %s15, 0
    %p56 = por %p54, %p55
    %p57 = scmp.ne.s32.totalorder %s49, %s51
    %p58 = scmp.eq.s32.totalorder %s20, 1
    %p59 = por %p57, %p58
    %p60 = scmp.ne.s32.totalorder %s51, %s52
    %p61 = scmp.eq.s32.totalorder %s20, 0
    %p62 = por %p60, %p61
    %p63 = scmp.ne.s32.totalorder %s51, %s52
    %p64 = scmp.eq.s32.totalorder %s21, 1
    %p65 = por %p63, %p64
    %p67 = scmp.ne.s32.totalorder %s52, %s66
    %p68 = scmp.eq.s32.totalorder %s21, 0
    %p69 = por %p67, %p68
    %s71 = sadd.s32 %s70, 1
    %p74 = scmp.eq.s32.totalorder %s15, 1
    %p75 = scmp.ne.s32.totalorder %s70, %s72
    %p76 = scmp.eq.s32.totalorder %s15, 0
    %p77 = por %p75, %p76
    %p78 = scmp.ne.s32.totalorder %s70, %s72
    %p79 = scmp.eq.s32.totalorder %s20, 1
    %p80 = por %p78, %p79
    %p81 = scmp.ne.s32.totalorder %s72, %s73
    %p82 = scmp.eq.s32.totalorder %s20, 0
    %p83 = por %p81, %p82
    %p84 = scmp.ne.s32.totalorder %s72, %s73
    %p85 = scmp.eq.s32.totalorder %s21, 1
    %p86 = por %p84, %p85
    %p88 = scmp.ne.s32.totalorder %s73, %s87
    %p89 = scmp.eq.s32.totalorder %s21, 0
    %p90 = por %p88, %p89
    %s92 = sadd.s32 %s91, 1
    %p95 = scmp.eq.s32.totalorder %s15, 1
    %p96 = scmp.ne.s32.totalorder %s91, %s93
    %p97 = scmp.eq.s32.totalorder %s15, 0
    %p98 = por %p96, %p97
    %p99 = scmp.ne.s32.totalorder %s91, %s93
    %p100 = scmp.eq.s32.totalorder %s20, 1
    %p101 = por %p99, %p100
    %p102 = scmp.ne.s32.totalorder %s93, %s94
    %p103 = scmp.eq.s32.totalorder %s20, 0
    %p104 = por %p102, %p103
    %p105 = scmp.ne.s32.totalorder %s93, %s94
    %p106 = scmp.eq.s32.totalorder %s21, 1
    %p107 = por %p105, %p106
    %p109 = scmp.ne.s32.totalorder %s94, %s108
    %p110 = scmp.eq.s32.totalorder %s21, 0
    %p111 = por %p109, %p110
    %s113 = sadd.s32 %s112, 1
    %p116 = scmp.eq.s32.totalorder %s15, 1
    %p117 = scmp.ne.s32.totalorder %s112, %s114
    %p118 = scmp.eq.s32.totalorder %s15, 0
    %p119 = por %p117, %p118
    %p120 = scmp.ne.s32.totalorder %s112, %s114
    %p121 = scmp.eq.s32.totalorder %s20, 1
    %p122 = por %p120, %p121
    %p123 = scmp.ne.s32.totalorder %s114, %s115
    %p124 = scmp.eq.s32.totalorder %s20, 0
    %p125 = por %p123, %p124
    %p126 = scmp.ne.s32.totalorder %s114, %s115
    %p127 = scmp.eq.s32.totalorder %s21, 1
    %p128 = por %p126, %p127
    %p130 = scmp.ne.s32.totalorder %s115, %s129
    %p131 = scmp.eq.s32.totalorder %s21, 0
    %p132 = por %p130, %p131
    %s134 = sadd.s32 %s133, 1
    %p137 = scmp.eq.s32.totalorder %s15, 1
    %p138 = scmp.ne.s32.totalorder %s133, %s135
    %p139 = scmp.eq.s32.totalorder %s15, 0
    %p140 = por %p138, %p139
    %p141 = scmp.ne.s32.totalorder %s133, %s135
    %p142 = scmp.eq.s32.totalorder %s20, 1
    %p143 = por %p141, %p142
    %p144 = scmp.ne.s32.totalorder %s135, %s136
    %p145 = scmp.eq.s32.totalorder %s20, 0
    %p146 = por %p144, %p145
    %p147 = scmp.ne.s32.totalorder %s135, %s136
    %p148 = scmp.eq.s32.totalorder %s21, 1
    %p149 = por %p147, %p148
    %p151 = scmp.ne.s32.totalorder %s136, %s150
    %p152 = scmp.eq.s32.totalorder %s21, 0
    %p153 = por %p151, %p152
    %s155 = sadd.s32 %s154, 1
    %p158 = scmp.eq.s32.totalorder %s15, 1
    %p159 = scmp.ne.s32.totalorder %s154, %s156
    %p160 = scmp.eq.s32.totalorder %s15, 0
    %p161 = por %p159, %p160
    %p162 = scmp.ne.s32.totalorder %s154, %s156
    %p163 = scmp.eq.s32.totalorder %s20, 1
    %p164 = por %p162, %p163
    %p165 = scmp.ne.s32.totalorder %s156, %s157
    %p166 = scmp.eq.s32.totalorder %s20, 0
    %p167 = por %p165, %p166
    %p168 = scmp.ne.s32.totalorder %s156, %s157
    %p169 = scmp.eq.s32.totalorder %s21, 1
    %p170 = por %p168, %p169
    %p172 = scmp.ne.s32.totalorder %s157, %s171
    %p173 = scmp.eq.s32.totalorder %s21, 0
    %p174 = por %p172, %p173
    %s176 = sadd.s32 %s175, 1
    %p179 = scmp.eq.s32.totalorder %s15, 1
    %p180 = scmp.ne.s32.totalorder %s175, %s177
    %p181 = scmp.eq.s32.totalorder %s15, 0
    %p182 = por %p180, %p181
    %p183 = scmp.ne.s32.totalorder %s175, %s177
    %p184 = scmp.eq.s32.totalorder %s20, 1
    %p185 = por %p183, %p184
    %p186 = scmp.ne.s32.totalorder %s177, %s178
    %p187 = scmp.eq.s32.totalorder %s20, 0
    %p188 = por %p186, %p187
    %p189 = scmp.ne.s32.totalorder %s177, %s178
    %p190 = scmp.eq.s32.totalorder %s21, 1
    %p191 = por %p189, %p190
    %p193 = scmp.ne.s32.totalorder %s178, %s192
    %p194 = scmp.eq.s32.totalorder %s21, 0
    %p195 = por %p193, %p194
    %s197 = sadd.s32 %s196, 1
    %p200 = scmp.eq.s32.totalorder %s15, 1
    %p201 = scmp.ne.s32.totalorder %s196, %s198
    %p202 = scmp.eq.s32.totalorder %s15, 0
    %p203 = por %p201, %p202
    %p204 = scmp.ne.s32.totalorder %s196, %s198
    %p205 = scmp.eq.s32.totalorder %s20, 1
    %p206 = por %p204, %p205
    %p207 = scmp.ne.s32.totalorder %s198, %s199
    %p208 = scmp.eq.s32.totalorder %s20, 0
    %p209 = por %p207, %p208
    %p210 = scmp.ne.s32.totalorder %s198, %s199
    %p211 = scmp.eq.s32.totalorder %s21, 1
    %p212 = por %p210, %p211
    %p214 = scmp.ne.s32.totalorder %s199, %s213
    %p215 = scmp.eq.s32.totalorder %s21, 0
    %p216 = por %p214, %p215
    %s217 = ssub.s32 %s15, %s22
    %p218 = scmp.eq.s32.totalorder %s217, 0
    %s220 = sadd.s32 %s219, 1
    %s221 = scalar_select %p218, %s219, %s220
    %p224 = pneg %p218
    %p225 = scmp.eq.s32.totalorder %s15, 1
    %p226 = por %p224, %p225
    %p227 = scmp.ne.s32.totalorder %s219, %s222
    %p228 = scmp.eq.s32.totalorder %s15, 0
    %p229 = por %p227, %p228
    %p230 = scmp.ne.s32.totalorder %s219, %s222
    %p231 = scmp.eq.s32.totalorder %s20, 1
    %p232 = por %p230, %p231
    %p233 = scmp.ne.s32.totalorder %s222, %s223
    %p234 = scmp.eq.s32.totalorder %s20, 0
    %p235 = por %p233, %p234
    %p236 = scmp.ne.s32.totalorder %s222, %s223
    %p237 = scmp.eq.s32.totalorder %s21, 1
    %p238 = por %p236, %p237
    %p240 = scmp.ne.s32.totalorder %s223, %s239
    %p241 = scmp.eq.s32.totalorder %s21, 0
    %p242 = por %p240, %p241
    %p243 = scmp.le.s32.totalorder 1, %s15
    %p244 = scmp.lt.s32.totalorder %s15, 3
    %p245 = pnand %p243, %p244
    %p246 = pneg %p245
    // Predicated region
    $region9: #{conv_block_forward.1} parent=5 // pred_check
      _
    $region10: #{conv_block_forward.1} parent=5 // pred_check_branch
      %248 = sbr.rel (%p245) target = $region12
    $region11: #{conv_block_forward.1} parent=5 // pred_region
      %s249 = ssub.s32 %s15, 1
      // Predicated region
      $region13: #{conv_block_forward.1} parent=11 // pred_check
        %p250 = pneg %p62
      $region14: #{conv_block_forward.1} parent=11 // pred_check_branch
        %252 = sbr.rel (%p250) target = $region16
      $region15: #{conv_block_forward.1} parent=11 // pred_region
        _
      $region16: #{conv_block_forward.1} parent=11 // pred_fallthru
        _
      // Predicated region
      $region17: #{conv_block_forward.1} parent=11 // pred_check
        %p253 = pneg %p83
      $region18: #{conv_block_forward.1} parent=11 // pred_check_branch
        %255 = sbr.rel (%p253) target = $region20
      $region19: #{conv_block_forward.1} parent=11 // pred_region
        _
      $region20: #{conv_block_forward.1} parent=11 // pred_fallthru
        _
      // Predicated region
      $region21: #{conv_block_forward.1} parent=11 // pred_check
        %p256 = pneg %p104
      $region22: #{conv_block_forward.1} parent=11 // pred_check_branch
        %258 = sbr.rel (%p256) target = $region24
      $region23: #{conv_block_forward.1} parent=11 // pred_region
        _
      $region24: #{conv_block_forward.1} parent=11 // pred_fallthru
        _
      // Predicated region
      $region25: #{conv_block_forward.1} parent=11 // pred_check
        %p259 = pneg %p125
      $region26: #{conv_block_forward.1} parent=11 // pred_check_branch
        %261 = sbr.rel (%p259) target = $region28
      $region27: #{conv_block_forward.1} parent=11 // pred_region
        _
      $region28: #{conv_block_forward.1} parent=11 // pred_fallthru
        _
      // Predicated region
      $region29: #{conv_block_forward.1} parent=11 // pred_check
        %p262 = pneg %p146
      $region30: #{conv_block_forward.1} parent=11 // pred_check_branch
        %264 = sbr.rel (%p262) target = $region32
      $region31: #{conv_block_forward.1} parent=11 // pred_region
        _
      $region32: #{conv_block_forward.1} parent=11 // pred_fallthru
        _
      // Predicated region
      $region33: #{conv_block_forward.1} parent=11 // pred_check
        %p265 = pneg %p167
      $region34: #{conv_block_forward.1} parent=11 // pred_check_branch
        %267 = sbr.rel (%p265) target = $region36
      $region35: #{conv_block_forward.1} parent=11 // pred_region
        _
      $region36: #{conv_block_forward.1} parent=11 // pred_fallthru
        _
      // Predicated region
      $region37: #{conv_block_forward.1} parent=11 // pred_check
        %p268 = pneg %p188
      $region38: #{conv_block_forward.1} parent=11 // pred_check_branch
        %270 = sbr.rel (%p268) target = $region40
      $region39: #{conv_block_forward.1} parent=11 // pred_region
        _
      $region40: #{conv_block_forward.1} parent=11 // pred_fallthru
        _
      // Predicated region
      $region41: #{conv_block_forward.1} parent=11 // pred_check
        %p271 = pneg %p209
      $region42: #{conv_block_forward.1} parent=11 // pred_check_branch
        %273 = sbr.rel (%p271) target = $region44
      $region43: #{conv_block_forward.1} parent=11 // pred_region
        _
      $region44: #{conv_block_forward.1} parent=11 // pred_fallthru
        _
    $region12: #{conv_block_forward.1} parent=5 // pred_fallthru
      _
    %p274 = scmp.lt.s32.totalorder %s15, 2
    // Predicated region
    $region45: #{conv_block_forward.1} parent=5 // pred_check
      %p275 = pneg %p274
    $region46: #{conv_block_forward.1} parent=5 // pred_check_branch
      %277 = sbr.rel (%p275) target = $region48
    $region47: #{conv_block_forward.1} parent=5 // pred_region
      // Predicated region
      $region49: #{conv_block_forward.1} parent=47 // pred_check
        %p278 = pneg %p35
      $region50: #{conv_block_forward.1} parent=47 // pred_check_branch
        %280 = sbr.rel (%p278) target = $region52
      $region51: #{conv_block_forward.1} parent=47 // pred_region
        %p281 = scmp.lt.s32.totalorder %s15, 1
        %s282 = scalar_select %p281, %s15, 1
        %s283 = smul.addr %s282, 32
        %s284 = smul.addr %s283, 8
        %s285 = scalar_lea.vmem %s0, %s284
      $region52: #{conv_block_forward.1} parent=47 // pred_fallthru
        _
    $region48: #{conv_block_forward.1} parent=5 // pred_fallthru
      _
    %p286 = scmp.le.s32.totalorder 1, %s15
    %p287 = scmp.lt.s32.totalorder %s15, 3
    %p288 = pnand %p286, %p287
    %p289 = pneg %p288
    // Predicated region
    $region53: #{conv_block_forward.1} parent=5 // pred_check
      _
    $region54: #{conv_block_forward.1} parent=5 // pred_check_branch
      %291 = sbr.rel (%p288) target = $region56
    $region55: #{conv_block_forward.1} parent=5 // pred_region
      %s292 = ssub.s32 %s15, 1
      %p293 = scmp.lt.s32.totalorder %s20, 1
      %s294 = scalar_select %p293, %s20, 1
      %s295 = smul.addr %s294, 32
      %s296 = smul.addr %s295, 8
      %s297 = scalar_lea.vmem %s0, %s296
      %p298 = pneg %p41
      %p299 = pneg %p38
      %p300 = pneg %p62
      %p301 = pneg %p59
      %p302 = pneg %p83
      %p303 = pneg %p80
      %p304 = pneg %p104
      %p305 = pneg %p101
      %p306 = pneg %p125
      %p307 = pneg %p122
      %p308 = pneg %p146
      %p309 = pneg %p143
      %p310 = pneg %p167
      %p311 = pneg %p164
      %p312 = pneg %p188
      %p313 = pneg %p185
      %p314 = pneg %p209
      %p315 = pneg %p206
      %p316 = pneg %p235
      %p317 = pneg %p232
      %p318 = scmp.lt.s32.totalorder %s20, 1
      %s319 = scalar_select %p318, %s20, 1
      %s320 = smul.addr %s319, 8
      %s321 = smul.addr %s320, 8
      %s322 = scalar_lea.vmem %s9, %s321
      %p323 = scmp.lt.s32.totalorder %s20, 1
      %s324 = scalar_select %p323, %s20, 1
      %s325 = smul.addr %s324, 32
      %s326 = smul.addr %s325, 8
      %s327 = scalar_lea.vmem %s0, %s326
      %p328 = scmp.lt.s32.totalorder %s20, 1
      %s329 = scalar_select %p328, %s20, 1
      %s330 = smul.addr %s329, 8
      %s331 = smul.addr %s330, 8
      %s332 = scalar_lea.vmem %s9, %s331
      %vm333 = vcmask 97280
      %334 = vst.msk [vmem:[#allocation2] sm:$0xff] %vm333, 0.0
      %335 = vst.msk [vmem:[#allocation2 + $0x8] sm:$0xff] %vm333, 0.0
      %s336 = scalar_lea.vmem [#allocation2], 272
      %337 = vst.msk [vmem:[%s336] sm:$0xff] %vm333, 0.0
      %338 = vst.msk [vmem:[%s336 + $0x8] sm:$0xff] %vm333, 0.0
      %v339 = vld [vmem:[%s327] sm:$0xff]
      %v340 = vld [vmem:[%s327 + $0x8] sm:$0xff]
      %v341 = vld [vmem:[%s327 + $0x10] sm:$0xff]
      %v342 = vld [vmem:[%s327 + $0x18] sm:$0xff]
      %v343 = vld [vmem:[%s327 + $0x20] sm:$0xff]
      %v344 = vld [vmem:[%s327 + $0x28] sm:$0xff]
      %v345 = vld [vmem:[%s327 + $0x30] sm:$0xff]
      %v346 = vld [vmem:[%s327 + $0x38] sm:$0xff]
      %v347 = vld [vmem:[%s327 + $0x40] sm:$0xff]
      %v348 = vld [vmem:[%s327 + $0x48] sm:$0xff]
      %v349 = vld [vmem:[%s327 + $0x50] sm:$0xff]
      %v350 = vld [vmem:[%s327 + $0x58] sm:$0xff]
      %v351 = vld [vmem:[%s327 + $0x60] sm:$0xff]
      %v352 = vld [vmem:[%s327 + $0x68] sm:$0xff]
      %v353 = vld [vmem:[%s327 + $0x70] sm:$0xff]
      %v354 = vld [vmem:[%s327 + $0x78] sm:$0xff]
      %v355 = vld [vmem:[%s327 + $0x80] sm:$0xff]
      %v356 = vld [vmem:[%s327 + $0x88] sm:$0xff]
      %v357 = vld [vmem:[%s327 + $0x90] sm:$0xff]
      %v358 = vld [vmem:[%s327 + $0x98] sm:$0xff]
      %v359 = vld [vmem:[%s327 + $0xa0] sm:$0xff]
      %v360 = vld [vmem:[%s327 + $0xa8] sm:$0xff]
      %v361 = vld [vmem:[%s327 + $0xb0] sm:$0xff]
      %v362 = vld [vmem:[%s327 + $0xb8] sm:$0xff]
      %v363 = vld [vmem:[%s327 + $0xc0] sm:$0xff]
      %v364 = vld [vmem:[%s327 + $0xc8] sm:$0xff]
      %v365 = vld [vmem:[%s327 + $0xd0] sm:$0xff]
      %v366 = vld [vmem:[%s327 + $0xd8] sm:$0xff]
      %v367 = vld [vmem:[%s327 + $0xe0] sm:$0xff]
      %v368 = vld [vmem:[%s327 + $0xe8] sm:$0xff]
      %v369 = vld [vmem:[%s327 + $0xf0] sm:$0xff]
      %v370 = vld [vmem:[%s327 + $0xf8] sm:$0xff]
      %s371 = scalar_lea.vmem [#allocation2], 16
      %372 = vst.msk [vmem:[%s371] sm:$0xff] %vm333, %v339
      %373 = vst.msk [vmem:[%s371 + $0x8] sm:$0xff] %vm333, %v340
      %374 = vst.msk [vmem:[%s371 + $0x10] sm:$0xff] %vm333, %v341
      %375 = vst.msk [vmem:[%s371 + $0x18] sm:$0xff] %vm333, %v342
      %376 = vst.msk [vmem:[%s371 + $0x20] sm:$0xff] %vm333, %v343
      %377 = vst.msk [vmem:[%s371 + $0x28] sm:$0xff] %vm333, %v344
      %378 = vst.msk [vmem:[%s371 + $0x30] sm:$0xff] %vm333, %v345
      %379 = vst.msk [vmem:[%s371 + $0x38] sm:$0xff] %vm333, %v346
      %380 = vst.msk [vmem:[%s371 + $0x40] sm:$0xff] %vm333, %v347
      %381 = vst.msk [vmem:[%s371 + $0x48] sm:$0xff] %vm333, %v348
      %382 = vst.msk [vmem:[%s371 + $0x50] sm:$0xff] %vm333, %v349
      %383 = vst.msk [vmem:[%s371 + $0x58] sm:$0xff] %vm333, %v350
      %384 = vst.msk [vmem:[%s371 + $0x60] sm:$0xff] %vm333, %v351
      %385 = vst.msk [vmem:[%s371 + $0x68] sm:$0xff] %vm333, %v352
      %386 = vst.msk [vmem:[%s371 + $0x70] sm:$0xff] %vm333, %v353
      %387 = vst.msk [vmem:[%s371 + $0x78] sm:$0xff] %vm333, %v354
      %388 = vst.msk [vmem:[%s371 + $0x80] sm:$0xff] %vm333, %v355
      %389 = vst.msk [vmem:[%s371 + $0x88] sm:$0xff] %vm333, %v356
      %390 = vst.msk [vmem:[%s371 + $0x90] sm:$0xff] %vm333, %v357
      %391 = vst.msk [vmem:[%s371 + $0x98] sm:$0xff] %vm333, %v358
      %392 = vst.msk [vmem:[%s371 + $0xa0] sm:$0xff] %vm333, %v359
      %393 = vst.msk [vmem:[%s371 + $0xa8] sm:$0xff] %vm333, %v360
      %394 = vst.msk [vmem:[%s371 + $0xb0] sm:$0xff] %vm333, %v361
      %395 = vst.msk [vmem:[%s371 + $0xb8] sm:$0xff] %vm333, %v362
      %396 = vst.msk [vmem:[%s371 + $0xc0] sm:$0xff] %vm333, %v363
      %397 = vst.msk [vmem:[%s371 + $0xc8] sm:$0xff] %vm333, %v364
      %398 = vst.msk [vmem:[%s371 + $0xd0] sm:$0xff] %vm333, %v365
      %399 = vst.msk [vmem:[%s371 + $0xd8] sm:$0xff] %vm333, %v366
      %400 = vst.msk [vmem:[%s371 + $0xe0] sm:$0xff] %vm333, %v367
      %401 = vst.msk [vmem:[%s371 + $0xe8] sm:$0xff] %vm333, %v368
      %402 = vst.msk [vmem:[%s371 + $0xf0] sm:$0xff] %vm333, %v369
      %403 = vst.msk [vmem:[%s371 + $0xf8] sm:$0xff] %vm333, %v370
      %v404 = vld [vmem:[#allocation2] sm:$0xff]
      %v405 = vld [vmem:[#allocation2 + $0x8] sm:$0xff]
      %v406 = vld [vmem:[#allocation2 + $0x10] sm:$0xff]
      %v407 = vld [vmem:[#allocation2 + $0x18] sm:$0xff]
      %v408 = vld [vmem:[#allocation2 + $0x20] sm:$0xff]
      %v409 = vld [vmem:[#allocation2 + $0x28] sm:$0xff]
      %v410 = vld [vmem:[#allocation2 + $0x30] sm:$0xff]
      %v411 = vld [vmem:[#allocation2 + $0x38] sm:$0xff]
      %v412 = vld [vmem:[#allocation2 + $0x40] sm:$0xff]
      %v413 = vld [vmem:[#allocation2 + $0x48] sm:$0xff]
      %v414 = vld [vmem:[#allocation2 + $0x50] sm:$0xff]
      %v415 = vld [vmem:[#allocation2 + $0x58] sm:$0xff]
      %v416 = vld [vmem:[#allocation2 + $0x60] sm:$0xff]
      %v417 = vld [vmem:[#allocation2 + $0x68] sm:$0xff]
      %v418 = vld [vmem:[#allocation2 + $0x70] sm:$0xff]
      %v419 = vld [vmem:[#allocation2 + $0x78] sm:$0xff]
      %v420 = vld [vmem:[#allocation2 + $0x80] sm:$0xff]
      %v421 = vld [vmem:[#allocation2 + $0x88] sm:$0xff]
      %v422 = vld [vmem:[#allocation2 + $0x90] sm:$0xff]
      %v423 = vld [vmem:[#allocation2 + $0x98] sm:$0xff]
      %v424 = vld [vmem:[#allocation2 + $0xa0] sm:$0xff]
      %v425 = vld [vmem:[#allocation2 + $0xa8] sm:$0xff]
      %v426 = vld [vmem:[#allocation2 + $0xb0] sm:$0xff]
      %v427 = vld [vmem:[#allocation2 + $0xb8] sm:$0xff]
      %v428 = vld [vmem:[#allocation2 + $0xc0] sm:$0xff]
      %v429 = vld [vmem:[#allocation2 + $0xc8] sm:$0xff]
      %v430 = vld [vmem:[#allocation2 + $0xd0] sm:$0xff]
      %v431 = vld [vmem:[#allocation2 + $0xd8] sm:$0xff]
      %v432 = vld [vmem:[#allocation2 + $0xe0] sm:$0xff]
      %v433 = vld [vmem:[#allocation2 + $0xe8] sm:$0xff]
      %v434 = vld [vmem:[#allocation2 + $0xf0] sm:$0xff]
      %v435 = vld [vmem:[#allocation2 + $0xf8] sm:$0xff]
      %v436 = vld [vmem:[%s1] sm:$0xff]
      %v437 = vld [vmem:[%s1 + $0x8] sm:$0xf]
      %v438 = vld [vmem:[%s371] sm:$0xff]
      %v439 = vld [vmem:[%s371 + $0x8] sm:$0xff]
      %v440 = vld [vmem:[%s371 + $0x10] sm:$0xff]
      %v441 = vld [vmem:[%s371 + $0x18] sm:$0xff]
      %v442 = vld [vmem:[%s371 + $0x20] sm:$0xff]
      %v443 = vld [vmem:[%s371 + $0x28] sm:$0xff]
      %v444 = vld [vmem:[%s371 + $0x30] sm:$0xff]
      %v445 = vld [vmem:[%s371 + $0x38] sm:$0xff]
      %v446 = vld [vmem:[%s371 + $0x40] sm:$0xff]
      %v447 = vld [vmem:[%s371 + $0x48] sm:$0xff]
      %v448 = vld [vmem:[%s371 + $0x50] sm:$0xff]
      %v449 = vld [vmem:[%s371 + $0x58] sm:$0xff]
      %v450 = vld [vmem:[%s371 + $0x60] sm:$0xff]
      %v451 = vld [vmem:[%s371 + $0x68] sm:$0xff]
      %v452 = vld [vmem:[%s371 + $0x70] sm:$0xff]
      %v453 = vld [vmem:[%s371 + $0x78] sm:$0xff]
      %v454 = vld [vmem:[%s371 + $0x80] sm:$0xff]
      %v455 = vld [vmem:[%s371 + $0x88] sm:$0xff]
      %v456 = vld [vmem:[%s371 + $0x90] sm:$0xff]
      %v457 = vld [vmem:[%s371 + $0x98] sm:$0xff]
      %v458 = vld [vmem:[%s371 + $0xa0] sm:$0xff]
      %v459 = vld [vmem:[%s371 + $0xa8] sm:$0xff]
      %v460 = vld [vmem:[%s371 + $0xb0] sm:$0xff]
      %v461 = vld [vmem:[%s371 + $0xb8] sm:$0xff]
      %v462 = vld [vmem:[%s371 + $0xc0] sm:$0xff]
      %v463 = vld [vmem:[%s371 + $0xc8] sm:$0xff]
      %v464 = vld [vmem:[%s371 + $0xd0] sm:$0xff]
      %v465 = vld [vmem:[%s371 + $0xd8] sm:$0xff]
      %v466 = vld [vmem:[%s371 + $0xe0] sm:$0xff]
      %v467 = vld [vmem:[%s371 + $0xe8] sm:$0xff]
      %v468 = vld [vmem:[%s371 + $0xf0] sm:$0xff]
      %v469 = vld [vmem:[%s371 + $0xf8] sm:$0xff]
      %s470 = scalar_lea.vmem %s1, 16
      %v471 = vld [vmem:[%s470] sm:$0xff]
      %v472 = vld [vmem:[%s470 + $0x8] sm:$0xf]
      %v474 = vsel %vm333, %v438, 0
      %v477 = vsel %vm333, %v439, 0
      %v480 = vsel %vm333, %v440, 0
      %v483 = vsel %vm333, %v441, 0
      %v486 = vsel %vm333, %v442, 0
      %v489 = vsel %vm333, %v443, 0
      %v492 = vsel %vm333, %v444, 0
      %v495 = vsel %vm333, %v445, 0
      %v498 = vsel %vm333, %v446, 0
      %v501 = vsel %vm333, %v447, 0
      %v504 = vsel %vm333, %v448, 0
      %v507 = vsel %vm333, %v449, 0
      %v510 = vsel %vm333, %v450, 0
      %v513 = vsel %vm333, %v451, 0
      %v516 = vsel %vm333, %v452, 0
      %v519 = vsel %vm333, %v453, 0
      %v522 = vsel %vm333, %v454, 0
      %v525 = vsel %vm333, %v455, 0
      %v528 = vsel %vm333, %v456, 0
      %v531 = vsel %vm333, %v457, 0
      %v534 = vsel %vm333, %v458, 0
      %v537 = vsel %vm333, %v459, 0
      %v540 = vsel %vm333, %v460, 0
      %v543 = vsel %vm333, %v461, 0
      %v546 = vsel %vm333, %v462, 0
      %v549 = vsel %vm333, %v463, 0
      %v552 = vsel %vm333, %v464, 0
      %v555 = vsel %vm333, %v465, 0
      %v558 = vsel %vm333, %v466, 0
      %v561 = vsel %vm333, %v467, 0
      %v564 = vsel %vm333, %v468, 0
      %v567 = vsel %vm333, %v469, 0
      %vm569 = vcmask 1043456
      %v571 = vsel %vm569, %v472, 0
      %573 = vmatpush.msra.mxu0 0.0
      %574 = vmatpush.msra.mxu0 0.0
      %575 = vmatpush.msra.mxu0 0.0
      %576 = vmatpush.msra.mxu0 0.0
      %577 = vmatpush.msra.mxu0 0.0
      %578 = vmatpush.msra.mxu0 0.0
      %579 = vmatpush.msra.mxu0 0.0
      %580 = vmatpush.msra.mxu0 0.0
      %581 = vmatpush.msra.mxu0 0.0
      %582 = vmatpush.msra.mxu0 0.0
      %583 = vmatpush.msra.mxu0 0.0
      %584 = vmatpush.msra.mxu0 0.0
      %585 = vmatpush.msra.mxu0 0.0
      %586 = vmatpush.msra.mxu0 0.0
      %587 = vmatpush.msra.mxu0 %v571
      %588 = vmatpush.msra.mxu0 %v471
      %589 = vmatmul.f32.gmra.mxu0 %v474
      %v590 = vpop.f32.mrf.mxu0
      %v591 = vadd.f32 0.0, %v590
      %592 = vmatmul.f32.gmra.mxu0 %v477
      %v593 = vpop.f32.mrf.mxu0
      %v594 = vadd.f32 0.0, %v593
      %595 = vmatmul.f32.gmra.mxu0 %v480
      %v596 = vpop.f32.mrf.mxu0
      %v597 = vadd.f32 0.0, %v596
      %598 = vmatmul.f32.gmra.mxu0 %v483
      %v599 = vpop.f32.mrf.mxu0
      %v600 = vadd.f32 0.0, %v599
      %601 = vmatmul.f32.gmra.mxu0 %v486
      %v602 = vpop.f32.mrf.mxu0
      %v603 = vadd.f32 0.0, %v602
      %604 = vmatmul.f32.gmra.mxu0 %v489
      %v605 = vpop.f32.mrf.mxu0
      %v606 = vadd.f32 0.0, %v605
      %607 = vmatmul.f32.gmra.mxu0 %v492
      %v608 = vpop.f32.mrf.mxu0
      %v609 = vadd.f32 0.0, %v608
      %610 = vmatmul.f32.gmra.mxu0 %v495
      %v611 = vpop.f32.mrf.mxu0
      %v612 = vadd.f32 0.0, %v611
      %613 = vmatmul.f32.gmra.mxu0 %v498
      %v614 = vpop.f32.mrf.mxu0
      %v615 = vadd.f32 0.0, %v614
      %616 = vmatmul.f32.gmra.mxu0 %v501
      %v617 = vpop.f32.mrf.mxu0
      %v618 = vadd.f32 0.0, %v617
      %619 = vmatmul.f32.gmra.mxu0 %v504
      %v620 = vpop.f32.mrf.mxu0
      %v621 = vadd.f32 0.0, %v620
      %622 = vmatmul.f32.gmra.mxu0 %v507
      %v623 = vpop.f32.mrf.mxu0
      %v624 = vadd.f32 0.0, %v623
      %625 = vmatmul.f32.gmra.mxu0 %v510
      %v626 = vpop.f32.mrf.mxu0
      %v627 = vadd.f32 0.0, %v626
      %628 = vmatmul.f32.gmra.mxu0 %v513
      %v629 = vpop.f32.mrf.mxu0
      %v630 = vadd.f32 0.0, %v629
      %631 = vmatmul.f32.gmra.mxu0 %v516
      %v632 = vpop.f32.mrf.mxu0
      %v633 = vadd.f32 0.0, %v632
      %634 = vmatmul.f32.gmra.mxu0 %v519
      %v635 = vpop.f32.mrf.mxu0
      %v636 = vadd.f32 0.0, %v635
      %637 = vmatmul.f32.gmra.mxu0 %v522
      %v638 = vpop.f32.mrf.mxu0
      %v639 = vadd.f32 0.0, %v638
      %640 = vmatmul.f32.gmra.mxu0 %v525
      %v641 = vpop.f32.mrf.mxu0
      %v642 = vadd.f32 0.0, %v641
      %643 = vmatmul.f32.gmra.mxu0 %v528
      %v644 = vpop.f32.mrf.mxu0
      %v645 = vadd.f32 0.0, %v644
      %646 = vmatmul.f32.gmra.mxu0 %v531
      %v647 = vpop.f32.mrf.mxu0
      %v648 = vadd.f32 0.0, %v647
      %649 = vmatmul.f32.gmra.mxu0 %v534
      %v650 = vpop.f32.mrf.mxu0
      %v651 = vadd.f32 0.0, %v650
      %652 = vmatmul.f32.gmra.mxu0 %v537
      %v653 = vpop.f32.mrf.mxu0
      %v654 = vadd.f32 0.0, %v653
      %655 = vmatmul.f32.gmra.mxu0 %v540
      %v656 = vpop.f32.mrf.mxu0
      %v657 = vadd.f32 0.0, %v656
      %658 = vmatmul.f32.gmra.mxu0 %v543
      %v659 = vpop.f32.mrf.mxu0
      %v660 = vadd.f32 0.0, %v659
      %661 = vmatmul.f32.gmra.mxu0 %v546
      %v662 = vpop.f32.mrf.mxu0
      %v663 = vadd.f32 0.0, %v662
      %664 = vmatmul.f32.gmra.mxu0 %v549
      %v665 = vpop.f32.mrf.mxu0
      %v666 = vadd.f32 0.0, %v665
      %667 = vmatmul.f32.gmra.mxu0 %v552
      %v668 = vpop.f32.mrf.mxu0
      %v669 = vadd.f32 0.0, %v668
      %670 = vmatmul.f32.gmra.mxu0 %v555
      %v671 = vpop.f32.mrf.mxu0
      %v672 = vadd.f32 0.0, %v671
      %673 = vmatmul.f32.gmra.mxu0 %v558
      %v674 = vpop.f32.mrf.mxu0
      %v675 = vadd.f32 0.0, %v674
      %676 = vmatmul.f32.gmra.mxu0 %v561
      %v677 = vpop.f32.mrf.mxu0
      %v678 = vadd.f32 0.0, %v677
      %679 = vmatmul.f32.gmra.mxu0 %v564
      %v680 = vpop.f32.mrf.mxu0
      %v681 = vadd.f32 0.0, %v680
      %682 = vmatmul.f32.gmra.mxu0 %v567
      %v683 = vpop.f32.mrf.mxu0
      %v684 = vadd.f32 0.0, %v683
      %685 = vdwg.mxu0
      %v687 = vsel %vm333, %v404, 0
      %v690 = vsel %vm333, %v405, 0
      %v693 = vsel %vm333, %v406, 0
      %v696 = vsel %vm333, %v407, 0
      %v699 = vsel %vm333, %v408, 0
      %v702 = vsel %vm333, %v409, 0
      %v705 = vsel %vm333, %v410, 0
      %v708 = vsel %vm333, %v411, 0
      %v711 = vsel %vm333, %v412, 0
      %v714 = vsel %vm333, %v413, 0
      %v717 = vsel %vm333, %v414, 0
      %v720 = vsel %vm333, %v415, 0
      %v723 = vsel %vm333, %v416, 0
      %v726 = vsel %vm333, %v417, 0
      %v729 = vsel %vm333, %v418, 0
      %v732 = vsel %vm333, %v419, 0
      %v735 = vsel %vm333, %v420, 0
      %v738 = vsel %vm333, %v421, 0
      %v741 = vsel %vm333, %v422, 0
      %v744 = vsel %vm333, %v423, 0
      %v747 = vsel %vm333, %v424, 0
      %v750 = vsel %vm333, %v425, 0
      %v753 = vsel %vm333, %v426, 0
      %v756 = vsel %vm333, %v427, 0
      %v759 = vsel %vm333, %v428, 0
      %v762 = vsel %vm333, %v429, 0
      %v765 = vsel %vm333, %v430, 0
      %v768 = vsel %vm333, %v431, 0
      %v771 = vsel %vm333, %v432, 0
      %v774 = vsel %vm333, %v433, 0
      %v777 = vsel %vm333, %v434, 0
      %v780 = vsel %vm333, %v435, 0
      %v783 = vsel %vm569, %v437, 0
      %785 = vmatpush.msra.mxu0 0.0
      %786 = vmatpush.msra.mxu0 0.0
      %787 = vmatpush.msra.mxu0 0.0
      %788 = vmatpush.msra.mxu0 0.0
      %789 = vmatpush.msra.mxu0 0.0
      %790 = vmatpush.msra.mxu0 0.0
      %791 = vmatpush.msra.mxu0 0.0
      %792 = vmatpush.msra.mxu0 0.0
      %793 = vmatpush.msra.mxu0 0.0
      %794 = vmatpush.msra.mxu0 0.0
      %795 = vmatpush.msra.mxu0 0.0
      %796 = vmatpush.msra.mxu0 0.0
      %797 = vmatpush.msra.mxu0 0.0
      %798 = vmatpush.msra.mxu0 0.0
      %799 = vmatpush.msra.mxu0 %v783
      %800 = vmatpush.msra.mxu0 %v436
      %801 = vmatmul.f32.gmra.mxu0 %v687
      %v802 = vpop.f32.mrf.mxu0
      %v803 = vadd.f32 %v591, %v802
      %804 = vmatmul.f32.gmra.mxu0 %v690
      %v805 = vpop.f32.mrf.mxu0
      %v806 = vadd.f32 %v594, %v805
      %807 = vmatmul.f32.gmra.mxu0 %v693
      %v808 = vpop.f32.mrf.mxu0
      %v809 = vadd.f32 %v597, %v808
      %810 = vmatmul.f32.gmra.mxu0 %v696
      %v811 = vpop.f32.mrf.mxu0
      %v812 = vadd.f32 %v600, %v811
      %813 = vmatmul.f32.gmra.mxu0 %v699
      %v814 = vpop.f32.mrf.mxu0
      %v815 = vadd.f32 %v603, %v814
      %816 = vmatmul.f32.gmra.mxu0 %v702
      %v817 = vpop.f32.mrf.mxu0
      %v818 = vadd.f32 %v606, %v817
      %819 = vmatmul.f32.gmra.mxu0 %v705
      %v820 = vpop.f32.mrf.mxu0
      %v821 = vadd.f32 %v609, %v820
      %822 = vmatmul.f32.gmra.mxu0 %v708
      %v823 = vpop.f32.mrf.mxu0
      %v824 = vadd.f32 %v612, %v823
      %825 = vmatmul.f32.gmra.mxu0 %v711
      %v826 = vpop.f32.mrf.mxu0
      %v827 = vadd.f32 %v615, %v826
      %828 = vmatmul.f32.gmra.mxu0 %v714
      %v829 = vpop.f32.mrf.mxu0
      %v830 = vadd.f32 %v618, %v829
      %831 = vmatmul.f32.gmra.mxu0 %v717
      %v832 = vpop.f32.mrf.mxu0
      %v833 = vadd.f32 %v621, %v832
      %834 = vmatmul.f32.gmra.mxu0 %v720
      %v835 = vpop.f32.mrf.mxu0
      %v836 = vadd.f32 %v624, %v835
      %837 = vmatmul.f32.gmra.mxu0 %v723
      %v838 = vpop.f32.mrf.mxu0
      %v839 = vadd.f32 %v627, %v838
      %840 = vmatmul.f32.gmra.mxu0 %v726
      %v841 = vpop.f32.mrf.mxu0
      %v842 = vadd.f32 %v630, %v841
      %843 = vmatmul.f32.gmra.mxu0 %v729
      %v844 = vpop.f32.mrf.mxu0
      %v845 = vadd.f32 %v633, %v844
      %846 = vmatmul.f32.gmra.mxu0 %v732
      %v847 = vpop.f32.mrf.mxu0
      %v848 = vadd.f32 %v636, %v847
      %849 = vmatmul.f32.gmra.mxu0 %v735
      %v850 = vpop.f32.mrf.mxu0
      %v851 = vadd.f32 %v639, %v850
      %852 = vmatmul.f32.gmra.mxu0 %v738
      %v853 = vpop.f32.mrf.mxu0
      %v854 = vadd.f32 %v642, %v853
      %855 = vmatmul.f32.gmra.mxu0 %v741
      %v856 = vpop.f32.mrf.mxu0
      %v857 = vadd.f32 %v645, %v856
      %858 = vmatmul.f32.gmra.mxu0 %v744
      %v859 = vpop.f32.mrf.mxu0
      %v860 = vadd.f32 %v648, %v859
      %861 = vmatmul.f32.gmra.mxu0 %v747
      %v862 = vpop.f32.mrf.mxu0
      %v863 = vadd.f32 %v651, %v862
      %864 = vmatmul.f32.gmra.mxu0 %v750
      %v865 = vpop.f32.mrf.mxu0
      %v866 = vadd.f32 %v654, %v865
      %867 = vmatmul.f32.gmra.mxu0 %v753
      %v868 = vpop.f32.mrf.mxu0
      %v869 = vadd.f32 %v657, %v868
      %870 = vmatmul.f32.gmra.mxu0 %v756
      %v871 = vpop.f32.mrf.mxu0
      %v872 = vadd.f32 %v660, %v871
      %873 = vmatmul.f32.gmra.mxu0 %v759
      %v874 = vpop.f32.mrf.mxu0
      %v875 = vadd.f32 %v663, %v874
      %876 = vmatmul.f32.gmra.mxu0 %v762
      %v877 = vpop.f32.mrf.mxu0
      %v878 = vadd.f32 %v666, %v877
      %879 = vmatmul.f32.gmra.mxu0 %v765
      %v880 = vpop.f32.mrf.mxu0
      %v881 = vadd.f32 %v669, %v880
      %882 = vmatmul.f32.gmra.mxu0 %v768
      %v883 = vpop.f32.mrf.mxu0
      %v884 = vadd.f32 %v672, %v883
      %885 = vmatmul.f32.gmra.mxu0 %v771
      %v886 = vpop.f32.mrf.mxu0
      %v887 = vadd.f32 %v675, %v886
      %888 = vmatmul.f32.gmra.mxu0 %v774
      %v889 = vpop.f32.mrf.mxu0
      %v890 = vadd.f32 %v678, %v889
      %891 = vmatmul.f32.gmra.mxu0 %v777
      %v892 = vpop.f32.mrf.mxu0
      %v893 = vadd.f32 %v681, %v892
      %894 = vmatmul.f32.gmra.mxu0 %v780
      %v895 = vpop.f32.mrf.mxu0
      %v896 = vadd.f32 %v684, %v895
      %897 = vdwg.mxu0
      %s898 = scalar_lea.vmem [#allocation2], 32
      %v899 = vld [vmem:[%s898] sm:$0xff]
      %v900 = vld [vmem:[%s898 + $0x8] sm:$0xff]
      %v901 = vld [vmem:[%s898 + $0x10] sm:$0xff]
      %v902 = vld [vmem:[%s898 + $0x18] sm:$0xff]
      %v903 = vld [vmem:[%s898 + $0x20] sm:$0xff]
      %v904 = vld [vmem:[%s898 + $0x28] sm:$0xff]
      %v905 = vld [vmem:[%s898 + $0x30] sm:$0xff]
      %v906 = vld [vmem:[%s898 + $0x38] sm:$0xff]
      %v907 = vld [vmem:[%s898 + $0x40] sm:$0xff]
      %v908 = vld [vmem:[%s898 + $0x48] sm:$0xff]
      %v909 = vld [vmem:[%s898 + $0x50] sm:$0xff]
      %v910 = vld [vmem:[%s898 + $0x58] sm:$0xff]
      %v911 = vld [vmem:[%s898 + $0x60] sm:$0xff]
      %v912 = vld [vmem:[%s898 + $0x68] sm:$0xff]
      %v913 = vld [vmem:[%s898 + $0x70] sm:$0xff]
      %v914 = vld [vmem:[%s898 + $0x78] sm:$0xff]
      %v915 = vld [vmem:[%s898 + $0x80] sm:$0xff]
      %v916 = vld [vmem:[%s898 + $0x88] sm:$0xff]
      %v917 = vld [vmem:[%s898 + $0x90] sm:$0xff]
      %v918 = vld [vmem:[%s898 + $0x98] sm:$0xff]
      %v919 = vld [vmem:[%s898 + $0xa0] sm:$0xff]
      %v920 = vld [vmem:[%s898 + $0xa8] sm:$0xff]
      %v921 = vld [vmem:[%s898 + $0xb0] sm:$0xff]
      %v922 = vld [vmem:[%s898 + $0xb8] sm:$0xff]
      %v923 = vld [vmem:[%s898 + $0xc0] sm:$0xff]
      %v924 = vld [vmem:[%s898 + $0xc8] sm:$0xff]
      %v925 = vld [vmem:[%s898 + $0xd0] sm:$0xff]
      %v926 = vld [vmem:[%s898 + $0xd8] sm:$0xff]
      %v927 = vld [vmem:[%s898 + $0xe0] sm:$0xff]
      %v928 = vld [vmem:[%s898 + $0xe8] sm:$0xff]
      %v929 = vld [vmem:[%s898 + $0xf0] sm:$0xff]
      %v930 = vld [vmem:[%s898 + $0xf8] sm:$0xff]
      %s931 = scalar_lea.vmem %s1, 32
      %v932 = vld [vmem:[%s931] sm:$0xff]
      %v933 = vld [vmem:[%s931 + $0x8] sm:$0xf]
      %v935 = vsel %vm333, %v899, 0
      %v938 = vsel %vm333, %v900, 0
      %v941 = vsel %vm333, %v901, 0
      %v944 = vsel %vm333, %v902, 0
      %v947 = vsel %vm333, %v903, 0
      %v950 = vsel %vm333, %v904, 0
      %v953 = vsel %vm333, %v905, 0
      %v956 = vsel %vm333, %v906, 0
      %v959 = vsel %vm333, %v907, 0
      %v962 = vsel %vm333, %v908, 0
      %v965 = vsel %vm333, %v909, 0
      %v968 = vsel %vm333, %v910, 0
      %v971 = vsel %vm333, %v911, 0
      %v974 = vsel %vm333, %v912, 0
      %v977 = vsel %vm333, %v913, 0
      %v980 = vsel %vm333, %v914, 0
      %v983 = vsel %vm333, %v915, 0
      %v986 = vsel %vm333, %v916, 0
      %v989 = vsel %vm333, %v917, 0
      %v992 = vsel %vm333, %v918, 0
      %v995 = vsel %vm333, %v919, 0
      %v998 = vsel %vm333, %v920, 0
      %v1001 = vsel %vm333, %v921, 0
      %v1004 = vsel %vm333, %v922, 0
      %v1007 = vsel %vm333, %v923, 0
      %v1010 = vsel %vm333, %v924, 0
      %v1013 = vsel %vm333, %v925, 0
      %v1016 = vsel %vm333, %v926, 0
      %v1019 = vsel %vm333, %v927, 0
      %v1022 = vsel %vm333, %v928, 0
      %v1025 = vsel %vm333, %v929, 0
      %v1028 = vsel %vm333, %v930, 0
      %v1031 = vsel %vm569, %v933, 0
      %1033 = vmatpush.msra.mxu0 0.0
      %1034 = vmatpush.msra.mxu0 0.0
      %1035 = vmatpush.msra.mxu0 0.0
      %1036 = vmatpush.msra.mxu0 0.0
      %1037 = vmatpush.msra.mxu0 0.0
      %1038 = vmatpush.msra.mxu0 0.0
      %1039 = vmatpush.msra.mxu0 0.0
      %1040 = vmatpush.msra.mxu0 0.0
      %1041 = vmatpush.msra.mxu0 0.0
      %1042 = vmatpush.msra.mxu0 0.0
      %1043 = vmatpush.msra.mxu0 0.0
      %1044 = vmatpush.msra.mxu0 0.0
      %1045 = vmatpush.msra.mxu0 0.0
      %1046 = vmatpush.msra.mxu0 0.0
      %1047 = vmatpush.msra.mxu0 %v1031
      %1048 = vmatpush.msra.mxu0 %v932
      %1049 = vmatmul.f32.gmra.mxu0 %v935
      %v1050 = vpop.f32.mrf.mxu0
      %v1051 = vadd.f32 0.0, %v1050
      %1052 = vmatmul.f32.gmra.mxu0 %v938
      %v1053 = vpop.f32.mrf.mxu0
      %v1054 = vadd.f32 0.0, %v1053
      %1055 = vmatmul.f32.gmra.mxu0 %v941
      %v1056 = vpop.f32.mrf.mxu0
      %v1057 = vadd.f32 0.0, %v1056
      %1058 = vmatmul.f32.gmra.mxu0 %v944
      %v1059 = vpop.f32.mrf.mxu0
      %v1060 = vadd.f32 0.0, %v1059
      %1061 = vmatmul.f32.gmra.mxu0 %v947
      %v1062 = vpop.f32.mrf.mxu0
      %v1063 = vadd.f32 0.0, %v1062
      %1064 = vmatmul.f32.gmra.mxu0 %v950
      %v1065 = vpop.f32.mrf.mxu0
      %v1066 = vadd.f32 0.0, %v1065
      %1067 = vmatmul.f32.gmra.mxu0 %v953
      %v1068 = vpop.f32.mrf.mxu0
      %v1069 = vadd.f32 0.0, %v1068
      %1070 = vmatmul.f32.gmra.mxu0 %v956
      %v1071 = vpop.f32.mrf.mxu0
      %v1072 = vadd.f32 0.0, %v1071
      %1073 = vmatmul.f32.gmra.mxu0 %v959
      %v1074 = vpop.f32.mrf.mxu0
      %v1075 = vadd.f32 0.0, %v1074
      %1076 = vmatmul.f32.gmra.mxu0 %v962
      %v1077 = vpop.f32.mrf.mxu0
      %v1078 = vadd.f32 0.0, %v1077
      %1079 = vmatmul.f32.gmra.mxu0 %v965
      %v1080 = vpop.f32.mrf.mxu0
      %v1081 = vadd.f32 0.0, %v1080
      %1082 = vmatmul.f32.gmra.mxu0 %v968
      %v1083 = vpop.f32.mrf.mxu0
      %v1084 = vadd.f32 0.0, %v1083
      %1085 = vmatmul.f32.gmra.mxu0 %v971
      %v1086 = vpop.f32.mrf.mxu0
      %v1087 = vadd.f32 0.0, %v1086
      %1088 = vmatmul.f32.gmra.mxu0 %v974
      %v1089 = vpop.f32.mrf.mxu0
      %v1090 = vadd.f32 0.0, %v1089
      %1091 = vmatmul.f32.gmra.mxu0 %v977
      %v1092 = vpop.f32.mrf.mxu0
      %v1093 = vadd.f32 0.0, %v1092
      %1094 = vmatmul.f32.gmra.mxu0 %v980
      %v1095 = vpop.f32.mrf.mxu0
      %v1096 = vadd.f32 0.0, %v1095
      %1097 = vmatmul.f32.gmra.mxu0 %v983
      %v1098 = vpop.f32.mrf.mxu0
      %v1099 = vadd.f32 0.0, %v1098
      %1100 = vmatmul.f32.gmra.mxu0 %v986
      %v1101 = vpop.f32.mrf.mxu0
      %v1102 = vadd.f32 0.0, %v1101
      %1103 = vmatmul.f32.gmra.mxu0 %v989
      %v1104 = vpop.f32.mrf.mxu0
      %v1105 = vadd.f32 0.0, %v1104
      %1106 = vmatmul.f32.gmra.mxu0 %v992
      %v1107 = vpop.f32.mrf.mxu0
      %v1108 = vadd.f32 0.0, %v1107
      %1109 = vmatmul.f32.gmra.mxu0 %v995
      %v1110 = vpop.f32.mrf.mxu0
      %v1111 = vadd.f32 0.0, %v1110
      %1112 = vmatmul.f32.gmra.mxu0 %v998
      %v1113 = vpop.f32.mrf.mxu0
      %v1114 = vadd.f32 0.0, %v1113
      %1115 = vmatmul.f32.gmra.mxu0 %v1001
      %v1116 = vpop.f32.mrf.mxu0
      %v1117 = vadd.f32 0.0, %v1116
      %1118 = vmatmul.f32.gmra.mxu0 %v1004
      %v1119 = vpop.f32.mrf.mxu0
      %v1120 = vadd.f32 0.0, %v1119
      %1121 = vmatmul.f32.gmra.mxu0 %v1007
      %v1122 = vpop.f32.mrf.mxu0
      %v1123 = vadd.f32 0.0, %v1122
      %1124 = vmatmul.f32.gmra.mxu0 %v1010
      %v1125 = vpop.f32.mrf.mxu0
      %v1126 = vadd.f32 0.0, %v1125
      %1127 = vmatmul.f32.gmra.mxu0 %v1013
      %v1128 = vpop.f32.mrf.mxu0
      %v1129 = vadd.f32 0.0, %v1128
      %1130 = vmatmul.f32.gmra.mxu0 %v1016
      %v1131 = vpop.f32.mrf.mxu0
      %v1132 = vadd.f32 0.0, %v1131
      %1133 = vmatmul.f32.gmra.mxu0 %v1019
      %v1134 = vpop.f32.mrf.mxu0
      %v1135 = vadd.f32 0.0, %v1134
      %1136 = vmatmul.f32.gmra.mxu0 %v1022
      %v1137 = vpop.f32.mrf.mxu0
      %v1138 = vadd.f32 0.0, %v1137
      %1139 = vmatmul.f32.gmra.mxu0 %v1025
      %v1140 = vpop.f32.mrf.mxu0
      %v1141 = vadd.f32 0.0, %v1140
      %1142 = vmatmul.f32.gmra.mxu0 %v1028
      %v1143 = vpop.f32.mrf.mxu0
      %v1144 = vadd.f32 0.0, %v1143
      %1145 = vdwg.mxu0
      %v1146 = vadd.f32 %v803, %v1051
      %v1147 = vadd.f32 %v806, %v1054
      %v1148 = vadd.f32 %v809, %v1057
      %v1149 = vadd.f32 %v812, %v1060
      %v1150 = vadd.f32 %v815, %v1063
      %v1151 = vadd.f32 %v818, %v1066
      %v1152 = vadd.f32 %v821, %v1069
      %v1153 = vadd.f32 %v824, %v1072
      %v1154 = vadd.f32 %v827, %v1075
      %v1155 = vadd.f32 %v830, %v1078
      %v1156 = vadd.f32 %v833, %v1081
      %v1157 = vadd.f32 %v836, %v1084
      %v1158 = vadd.f32 %v839, %v1087
      %v1159 = vadd.f32 %v842, %v1090
      %v1160 = vadd.f32 %v845, %v1093
      %v1161 = vadd.f32 %v848, %v1096
      %v1162 = vadd.f32 %v851, %v1099
      %v1163 = vadd.f32 %v854, %v1102
      %v1164 = vadd.f32 %v857, %v1105
      %v1165 = vadd.f32 %v860, %v1108
      %v1166 = vadd.f32 %v863, %v1111
      %v1167 = vadd.f32 %v866, %v1114
      %v1168 = vadd.f32 %v869, %v1117
      %v1169 = vadd.f32 %v872, %v1120
      %v1170 = vadd.f32 %v875, %v1123
      %v1171 = vadd.f32 %v878, %v1126
      %v1172 = vadd.f32 %v881, %v1129
      %v1173 = vadd.f32 %v884, %v1132
      %v1174 = vadd.f32 %v887, %v1135
      %v1175 = vadd.f32 %v890, %v1138
      %v1176 = vadd.f32 %v893, %v1141
      %v1177 = vadd.f32 %v896, %v1144
      %v1178 = vld [vmem:[%s2] sm:$0x1]
      %v1180 = vperm.slane %v1178, 0
      %v1182 = vadd.f32 %v1146, %v1180
      %v1183 = vadd.f32 %v1147, %v1180
      %v1184 = vadd.f32 %v1148, %v1180
      %v1185 = vadd.f32 %v1149, %v1180
      %v1186 = vadd.f32 %v1150, %v1180
      %v1187 = vadd.f32 %v1151, %v1180
      %v1188 = vadd.f32 %v1152, %v1180
      %v1189 = vadd.f32 %v1153, %v1180
      %v1190 = vadd.f32 %v1154, %v1180
      %v1191 = vadd.f32 %v1155, %v1180
      %v1192 = vadd.f32 %v1156, %v1180
      %v1193 = vadd.f32 %v1157, %v1180
      %v1194 = vadd.f32 %v1158, %v1180
      %v1195 = vadd.f32 %v1159, %v1180
      %v1196 = vadd.f32 %v1160, %v1180
      %v1197 = vadd.f32 %v1161, %v1180
      %v1198 = vadd.f32 %v1162, %v1180
      %v1199 = vadd.f32 %v1163, %v1180
      %v1200 = vadd.f32 %v1164, %v1180
      %v1201 = vadd.f32 %v1165, %v1180
      %v1202 = vadd.f32 %v1166, %v1180
      %v1203 = vadd.f32 %v1167, %v1180
      %v1204 = vadd.f32 %v1168, %v1180
      %v1205 = vadd.f32 %v1169, %v1180
      %v1206 = vadd.f32 %v1170, %v1180
      %v1207 = vadd.f32 %v1171, %v1180
      %v1208 = vadd.f32 %v1172, %v1180
      %v1209 = vadd.f32 %v1173, %v1180
      %v1210 = vadd.f32 %v1174, %v1180
      %v1211 = vadd.f32 %v1175, %v1180
      %v1212 = vadd.f32 %v1176, %v1180
      %v1213 = vadd.f32 %v1177, %v1180
      %v1214 = vmax.f32 %v1182, 0.0
      %v1215 = vmax.f32 %v1183, 0.0
      %v1216 = vmax.f32 %v1184, 0.0
      %v1217 = vmax.f32 %v1185, 0.0
      %v1218 = vmax.f32 %v1186, 0.0
      %v1219 = vmax.f32 %v1187, 0.0
      %v1220 = vmax.f32 %v1188, 0.0
      %v1221 = vmax.f32 %v1189, 0.0
      %v1222 = vmax.f32 %v1190, 0.0
      %v1223 = vmax.f32 %v1191, 0.0
      %v1224 = vmax.f32 %v1192, 0.0
      %v1225 = vmax.f32 %v1193, 0.0
      %v1226 = vmax.f32 %v1194, 0.0
      %v1227 = vmax.f32 %v1195, 0.0
      %v1228 = vmax.f32 %v1196, 0.0
      %v1229 = vmax.f32 %v1197, 0.0
      %v1230 = vmax.f32 %v1198, 0.0
      %v1231 = vmax.f32 %v1199, 0.0
      %v1232 = vmax.f32 %v1200, 0.0
      %v1233 = vmax.f32 %v1201, 0.0
      %v1234 = vmax.f32 %v1202, 0.0
      %v1235 = vmax.f32 %v1203, 0.0
      %v1236 = vmax.f32 %v1204, 0.0
      %v1237 = vmax.f32 %v1205, 0.0
      %v1238 = vmax.f32 %v1206, 0.0
      %v1239 = vmax.f32 %v1207, 0.0
      %v1240 = vmax.f32 %v1208, 0.0
      %v1241 = vmax.f32 %v1209, 0.0
      %v1242 = vmax.f32 %v1210, 0.0
      %v1243 = vmax.f32 %v1211, 0.0
      %v1244 = vmax.f32 %v1212, 0.0
      %v1245 = vmax.f32 %v1213, 0.0
      %v1246 = vld [vmem:[%s3] sm:$0x1]
      %v1248 = vperm.slane %v1246, 0
      %v1250 = vmul.f32 %v1214, %v1248
      %v1251 = vmul.f32 %v1215, %v1248
      %v1252 = vmul.f32 %v1216, %v1248
      %v1253 = vmul.f32 %v1217, %v1248
      %v1254 = vmul.f32 %v1218, %v1248
      %v1255 = vmul.f32 %v1219, %v1248
      %v1256 = vmul.f32 %v1220, %v1248
      %v1257 = vmul.f32 %v1221, %v1248
      %v1258 = vmul.f32 %v1222, %v1248
      %v1259 = vmul.f32 %v1223, %v1248
      %v1260 = vmul.f32 %v1224, %v1248
      %v1261 = vmul.f32 %v1225, %v1248
      %v1262 = vmul.f32 %v1226, %v1248
      %v1263 = vmul.f32 %v1227, %v1248
      %v1264 = vmul.f32 %v1228, %v1248
      %v1265 = vmul.f32 %v1229, %v1248
      %v1266 = vmul.f32 %v1230, %v1248
      %v1267 = vmul.f32 %v1231, %v1248
      %v1268 = vmul.f32 %v1232, %v1248
      %v1269 = vmul.f32 %v1233, %v1248
      %v1270 = vmul.f32 %v1234, %v1248
      %v1271 = vmul.f32 %v1235, %v1248
      %v1272 = vmul.f32 %v1236, %v1248
      %v1273 = vmul.f32 %v1237, %v1248
      %v1274 = vmul.f32 %v1238, %v1248
      %v1275 = vmul.f32 %v1239, %v1248
      %v1276 = vmul.f32 %v1240, %v1248
      %v1277 = vmul.f32 %v1241, %v1248
      %v1278 = vmul.f32 %v1242, %v1248
      %v1279 = vmul.f32 %v1243, %v1248
      %v1280 = vmul.f32 %v1244, %v1248
      %v1281 = vmul.f32 %v1245, %v1248
      %v1282 = vld [vmem:[%s4] sm:$0x1]
      %v1284 = vperm.slane %v1282, 0
      %v1286 = vadd.f32 %v1250, %v1284
      %v1287 = vadd.f32 %v1251, %v1284
      %v1288 = vadd.f32 %v1252, %v1284
      %v1289 = vadd.f32 %v1253, %v1284
      %v1290 = vadd.f32 %v1254, %v1284
      %v1291 = vadd.f32 %v1255, %v1284
      %v1292 = vadd.f32 %v1256, %v1284
      %v1293 = vadd.f32 %v1257, %v1284
      %v1294 = vadd.f32 %v1258, %v1284
      %v1295 = vadd.f32 %v1259, %v1284
      %v1296 = vadd.f32 %v1260, %v1284
      %v1297 = vadd.f32 %v1261, %v1284
      %v1298 = vadd.f32 %v1262, %v1284
      %v1299 = vadd.f32 %v1263, %v1284
      %v1300 = vadd.f32 %v1264, %v1284
      %v1301 = vadd.f32 %v1265, %v1284
      %v1302 = vadd.f32 %v1266, %v1284
      %v1303 = vadd.f32 %v1267, %v1284
      %v1304 = vadd.f32 %v1268, %v1284
      %v1305 = vadd.f32 %v1269, %v1284
      %v1306 = vadd.f32 %v1270, %v1284
      %v1307 = vadd.f32 %v1271, %v1284
      %v1308 = vadd.f32 %v1272, %v1284
      %v1309 = vadd.f32 %v1273, %v1284
      %v1310 = vadd.f32 %v1274, %v1284
      %v1311 = vadd.f32 %v1275, %v1284
      %v1312 = vadd.f32 %v1276, %v1284
      %v1313 = vadd.f32 %v1277, %v1284
      %v1314 = vadd.f32 %v1278, %v1284
      %v1315 = vadd.f32 %v1279, %v1284
      %v1316 = vadd.f32 %v1280, %v1284
      %v1317 = vadd.f32 %v1281, %v1284
      %1318 = vst [vmem:[#allocation3] sm:$0xff] 0.0
      %1319 = vst [vmem:[#allocation3 + $0x8] sm:$0xff] 0.0
      %1320 = vst [vmem:[#allocation3 + $0x10] sm:$0xff] 0.0
      %1321 = vst [vmem:[#allocation3 + $0x18] sm:$0xff] 0.0
      %1322 = vst [vmem:[#allocation3 + $0x20] sm:$0xff] 0.0
      %1323 = vst [vmem:[#allocation3 + $0x28] sm:$0xff] 0.0
      %1324 = vst [vmem:[#allocation3 + $0x30] sm:$0xff] 0.0
      %1325 = vst [vmem:[#allocation3 + $0x38] sm:$0xff] 0.0
      %1326 = vst [vmem:[#allocation3 + $0x40] sm:$0xff] 0.0
      %1327 = vst [vmem:[#allocation3 + $0x48] sm:$0xff] 0.0
      %1328 = vst [vmem:[#allocation3 + $0x50] sm:$0xff] 0.0
      %1329 = vst [vmem:[#allocation3 + $0x58] sm:$0xff] 0.0
      %s1330 = scalar_lea.vmem [#allocation3], 1632
      %1331 = vst [vmem:[%s1330] sm:$0xff] 0.0
      %1332 = vst [vmem:[%s1330 + $0x8] sm:$0xff] 0.0
      %1333 = vst [vmem:[%s1330 + $0x10] sm:$0xff] 0.0
      %1334 = vst [vmem:[%s1330 + $0x18] sm:$0xff] 0.0
      %1335 = vst [vmem:[%s1330 + $0x20] sm:$0xff] 0.0
      %1336 = vst [vmem:[%s1330 + $0x28] sm:$0xff] 0.0
      %1337 = vst [vmem:[%s1330 + $0x30] sm:$0xff] 0.0
      %1338 = vst [vmem:[%s1330 + $0x38] sm:$0xff] 0.0
      %1339 = vst [vmem:[%s1330 + $0x40] sm:$0xff] 0.0
      %1340 = vst [vmem:[%s1330 + $0x48] sm:$0xff] 0.0
      %1341 = vst [vmem:[%s1330 + $0x50] sm:$0xff] 0.0
      %1342 = vst [vmem:[%s1330 + $0x58] sm:$0xff] 0.0
      %1343 = vst [vmem:[#allocation3 + $0x8] sm:$0xff] 0.0
      %1344 = vst [vmem:[#allocation3 + $0x68] sm:$0xff] 0.0
      %1345 = vst [vmem:[#allocation3 + $0xc8] sm:$0xff] 0.0
      %1346 = vst [vmem:[#allocation3 + $0x128] sm:$0xff] 0.0
      %1347 = vst [vmem:[#allocation3 + $0x188] sm:$0xff] 0.0
      %1348 = vst [vmem:[#allocation3 + $0x1e8] sm:$0xff] 0.0
      %1349 = vst [vmem:[#allocation3 + $0x248] sm:$0xff] 0.0
      %1350 = vst [vmem:[#allocation3 + $0x2a8] sm:$0xff] 0.0
      %1351 = vst [vmem:[#allocation3 + $0x308] sm:$0xff] 0.0
      %1352 = vst [vmem:[#allocation3 + $0x368] sm:$0xff] 0.0
      %1353 = vst [vmem:[#allocation3 + $0x3c8] sm:$0xff] 0.0
      %1354 = vst [vmem:[#allocation3 + $0x428] sm:$0xff] 0.0
      %1355 = vst [vmem:[#allocation3 + $0x488] sm:$0xff] 0.0
      %1356 = vst [vmem:[#allocation3 + $0x4e8] sm:$0xff] 0.0
      %1357 = vst [vmem:[#allocation3 + $0x548] sm:$0xff] 0.0
      %1358 = vst [vmem:[#allocation3 + $0x5a8] sm:$0xff] 0.0
      %1359 = vst [vmem:[#allocation3 + $0x608] sm:$0xff] 0.0
      %1360 = vst [vmem:[#allocation3 + $0x668] sm:$0xff] 0.0
      %1361 = vst [vmem:[#allocation3 + $0x50] sm:$0xff] 0.0
      %1362 = vst [vmem:[#allocation3 + $0xb0] sm:$0xff] 0.0
      %1363 = vst [vmem:[#allocation3 + $0x110] sm:$0xff] 0.0
      %1364 = vst [vmem:[#allocation3 + $0x170] sm:$0xff] 0.0
      %1365 = vst [vmem:[#allocation3 + $0x1d0] sm:$0xff] 0.0
      %1366 = vst [vmem:[#allocation3 + $0x230] sm:$0xff] 0.0
      %1367 = vst [vmem:[#allocation3 + $0x290] sm:$0xff] 0.0
      %1368 = vst [vmem:[#allocation3 + $0x2f0] sm:$0xff] 0.0
      %1369 = vst [vmem:[#allocation3 + $0x350] sm:$0xff] 0.0
      %1370 = vst [vmem:[#allocation3 + $0x3b0] sm:$0xff] 0.0
      %1371 = vst [vmem:[#allocation3 + $0x410] sm:$0xff] 0.0
      %1372 = vst [vmem:[#allocation3 + $0x470] sm:$0xff] 0.0
      %1373 = vst [vmem:[#allocation3 + $0x4d0] sm:$0xff] 0.0
      %1374 = vst [vmem:[#allocation3 + $0x530] sm:$0xff] 0.0
      %1375 = vst [vmem:[#allocation3 + $0x590] sm:$0xff] 0.0
      %1376 = vst [vmem:[#allocation3 + $0x5f0] sm:$0xff] 0.0
      %1377 = vst [vmem:[#allocation3 + $0x650] sm:$0xff] 0.0
      %1378 = vst [vmem:[#allocation3 + $0x6b0] sm:$0xff] 0.0
      %s1379 = scalar_lea.vmem [#allocation3], 96
      %1380 = vst [vmem:[%s1379 + $0x20] sm:$0xff] %v1286
      %1381 = vst [vmem:[%s1379 + $0x38] sm:$0xff] %v1287
      %1382 = vst [vmem:[%s1379 + $0x80] sm:$0xff] %v1288
      %1383 = vst [vmem:[%s1379 + $0x98] sm:$0xff] %v1289
      %1384 = vst [vmem:[%s1379 + $0xe0] sm:$0xff] %v1290
      %1385 = vst [vmem:[%s1379 + $0xf8] sm:$0xff] %v1291
      %1386 = vst [vmem:[%s1379 + $0x140] sm:$0xff] %v1292
      %1387 = vst [vmem:[%s1379 + $0x158] sm:$0xff] %v1293
      %1388 = vst [vmem:[%s1379 + $0x1a0] sm:$0xff] %v1294
      %1389 = vst [vmem:[%s1379 + $0x1b8] sm:$0xff] %v1295
      %1390 = vst [vmem:[%s1379 + $0x200] sm:$0xff] %v1296
      %1391 = vst [vmem:[%s1379 + $0x218] sm:$0xff] %v1297
      %1392 = vst [vmem:[%s1379 + $0x260] sm:$0xff] %v1298
      %1393 = vst [vmem:[%s1379 + $0x278] sm:$0xff] %v1299
      %1394 = vst [vmem:[%s1379 + $0x2c0] sm:$0xff] %v1300
      %1395 = vst [vmem:[%s1379 + $0x2d8] sm:$0xff] %v1301
      %1396 = vst [vmem:[%s1379 + $0x320] sm:$0xff] %v1302
      %1397 = vst [vmem:[%s1379 + $0x338] sm:$0xff] %v1303
      %1398 = vst [vmem:[%s1379 + $0x380] sm:$0xff] %v1304
      %1399 = vst [vmem:[%s1379 + $0x398] sm:$0xff] %v1305
      %1400 = vst [vmem:[%s1379 + $0x3e0] sm:$0xff] %v1306
      %1401 = vst [vmem:[%s1379 + $0x3f8] sm:$0xff] %v1307
      %1402 = vst [vmem:[%s1379 + $0x440] sm:$0xff] %v1308
      %1403 = vst [vmem:[%s1379 + $0x458] sm:$0xff] %v1309
      %1404 = vst [vmem:[%s1379 + $0x4a0] sm:$0xff] %v1310
      %1405 = vst [vmem:[%s1379 + $0x4b8] sm:$0xff] %v1311
      %1406 = vst [vmem:[%s1379 + $0x500] sm:$0xff] %v1312
      %1407 = vst [vmem:[%s1379 + $0x518] sm:$0xff] %v1313
      %1408 = vst [vmem:[%s1379 + $0x560] sm:$0xff] %v1314
      %1409 = vst [vmem:[%s1379 + $0x578] sm:$0xff] %v1315
      %1410 = vst [vmem:[%s1379 + $0x5c0] sm:$0xff] %v1316
      %1411 = vst [vmem:[%s1379 + $0x5d8] sm:$0xff] %v1317
      %v1412 = vld [vmem:[%s1379 + $0x8] sm:$0x80]
      %v1413 = vld [vmem:[%s1379 + $0x20] sm:$0xff]
      %v1414 = vld [vmem:[%s1379 + $0x38] sm:$0x7f]
      %v1415 = vld [vmem:[%s1379 + $0x68] sm:$0x80]
      %v1416 = vld [vmem:[%s1379 + $0x80] sm:$0xff]
      %v1417 = vld [vmem:[%s1379 + $0x98] sm:$0x7f]
      %v1418 = vld [vmem:[%s1379 + $0xc8] sm:$0x80]
      %v1419 = vld [vmem:[%s1379 + $0xe0] sm:$0xff]
      %v1420 = vld [vmem:[%s1379 + $0xf8] sm:$0x7f]
      %v1421 = vld [vmem:[%s1379 + $0x128] sm:$0x80]
      %v1422 = vld [vmem:[%s1379 + $0x140] sm:$0xff]
      %v1423 = vld [vmem:[%s1379 + $0x158] sm:$0x7f]
      %v1424 = vld [vmem:[%s1379 + $0x188] sm:$0x80]
      %v1425 = vld [vmem:[%s1379 + $0x1a0] sm:$0xff]
      %v1426 = vld [vmem:[%s1379 + $0x1b8] sm:$0x7f]
      %v1427 = vld [vmem:[%s1379 + $0x1e8] sm:$0x80]
      %v1428 = vld [vmem:[%s1379 + $0x200] sm:$0xff]
      %v1429 = vld [vmem:[%s1379 + $0x218] sm:$0x7f]
      %v1430 = vld [vmem:[%s1379 + $0x248] sm:$0x80]
      %v1431 = vld [vmem:[%s1379 + $0x260] sm:$0xff]
      %v1432 = vld [vmem:[%s1379 + $0x278] sm:$0x7f]
      %v1433 = vld [vmem:[%s1379 + $0x2a8] sm:$0x80]
      %v1434 = vld [vmem:[%s1379 + $0x2c0] sm:$0xff]
      %v1435 = vld [vmem:[%s1379 + $0x2d8] sm:$0x7f]
      %v1436 = vld [vmem:[%s1379 + $0x308] sm:$0x80]
      %v1437 = vld [vmem:[%s1379 + $0x320] sm:$0xff]
      %v1438 = vld [vmem:[%s1379 + $0x338] sm:$0x7f]
      %v1439 = vld [vmem:[%s1379 + $0x368] sm:$0x80]
      %v1440 = vld [vmem:[%s1379 + $0x380] sm:$0xff]
      %v1441 = vld [vmem:[%s1379 + $0x398] sm:$0x7f]
      %v1442 = vld [vmem:[%s1379 + $0x3c8] sm:$0x80]
      %v1443 = vld [vmem:[%s1379 + $0x3e0] sm:$0xff]
      %v1444 = vld [vmem:[%s1379 + $0x3f8] sm:$0x7f]
      %v1445 = vld [vmem:[%s1379 + $0x428] sm:$0x80]
      %v1446 = vld [vmem:[%s1379 + $0x440] sm:$0xff]
      %v1447 = vld [vmem:[%s1379 + $0x458] sm:$0x7f]
      %v1448 = vld [vmem:[%s1379 + $0x488] sm:$0x80]
      %v1449 = vld [vmem:[%s1379 + $0x4a0] sm:$0xff]
      %v1450 = vld [vmem:[%s1379 + $0x4b8] sm:$0x7f]
      %v1451 = vld [vmem:[%s1379 + $0x4e8] sm:$0x80]
      %v1452 = vld [vmem:[%s1379 + $0x500] sm:$0xff]
      %v1453 = vld [vmem:[%s1379 + $0x518] sm:$0x7f]
      %v1454 = vld [vmem:[%s1379 + $0x548] sm:$0x80]
      %v1455 = vld [vmem:[%s1379 + $0x560] sm:$0xff]
      %v1456 = vld [vmem:[%s1379 + $0x578] sm:$0x7f]
      %v1457 = vld [vmem:[%s1379 + $0x5a8] sm:$0x80]
      %v1458 = vld [vmem:[%s1379 + $0x5c0] sm:$0xff]
      %v1459 = vld [vmem:[%s1379 + $0x5d8] sm:$0x7f]
      %vm1508 = vcmask 1040384
      %v1509 = vrot.slane %v1412, 7
      %v1510 = vrot.slane %v1413, 7
      %v1511 = vsel %vm1508, %v1509, %v1510
      %v1512 = vrot.slane %v1414, 7
      %v1513 = vsel %vm1508, %v1510, %v1512
      %v1514 = vrot.slane %v1415, 7
      %v1515 = vrot.slane %v1416, 7
      %v1516 = vsel %vm1508, %v1514, %v1515
      %v1517 = vrot.slane %v1417, 7
      %v1518 = vsel %vm1508, %v1515, %v1517
      %v1519 = vrot.slane %v1418, 7
      %v1520 = vrot.slane %v1419, 7
      %v1521 = vsel %vm1508, %v1519, %v1520
      %v1522 = vrot.slane %v1420, 7
      %v1523 = vsel %vm1508, %v1520, %v1522
      %v1524 = vrot.slane %v1421, 7
      %v1525 = vrot.slane %v1422, 7
      %v1526 = vsel %vm1508, %v1524, %v1525
      %v1527 = vrot.slane %v1423, 7
      %v1528 = vsel %vm1508, %v1525, %v1527
      %v1529 = vrot.slane %v1424, 7
      %v1530 = vrot.slane %v1425, 7
      %v1531 = vsel %vm1508, %v1529, %v1530
      %v1532 = vrot.slane %v1426, 7
      %v1533 = vsel %vm1508, %v1530, %v1532
      %v1534 = vrot.slane %v1427, 7
      %v1535 = vrot.slane %v1428, 7
      %v1536 = vsel %vm1508, %v1534, %v1535
      %v1537 = vrot.slane %v1429, 7
      %v1538 = vsel %vm1508, %v1535, %v1537
      %v1539 = vrot.slane %v1430, 7
      %v1540 = vrot.slane %v1431, 7
      %v1541 = vsel %vm1508, %v1539, %v1540
      %v1542 = vrot.slane %v1432, 7
      %v1543 = vsel %vm1508, %v1540, %v1542
      %v1544 = vrot.slane %v1433, 7
      %v1545 = vrot.slane %v1434, 7
      %v1546 = vsel %vm1508, %v1544, %v1545
      %v1547 = vrot.slane %v1435, 7
      %v1548 = vsel %vm1508, %v1545, %v1547
      %v1549 = vrot.slane %v1436, 7
      %v1550 = vrot.slane %v1437, 7
      %v1551 = vsel %vm1508, %v1549, %v1550
      %v1552 = vrot.slane %v1438, 7
      %v1553 = vsel %vm1508, %v1550, %v1552
      %v1554 = vrot.slane %v1439, 7
      %v1555 = vrot.slane %v1440, 7
      %v1556 = vsel %vm1508, %v1554, %v1555
      %v1557 = vrot.slane %v1441, 7
      %v1558 = vsel %vm1508, %v1555, %v1557
      %v1559 = vrot.slane %v1442, 7
      %v1560 = vrot.slane %v1443, 7
      %v1561 = vsel %vm1508, %v1559, %v1560
      %v1562 = vrot.slane %v1444, 7
      %v1563 = vsel %vm1508, %v1560, %v1562
      %v1564 = vrot.slane %v1445, 7
      %v1565 = vrot.slane %v1446, 7
      %v1566 = vsel %vm1508, %v1564, %v1565
      %v1567 = vrot.slane %v1447, 7
      %v1568 = vsel %vm1508, %v1565, %v1567
      %v1569 = vrot.slane %v1448, 7
      %v1570 = vrot.slane %v1449, 7
      %v1571 = vsel %vm1508, %v1569, %v1570
      %v1572 = vrot.slane %v1450, 7
      %v1573 = vsel %vm1508, %v1570, %v1572
      %v1574 = vrot.slane %v1451, 7
      %v1575 = vrot.slane %v1452, 7
      %v1576 = vsel %vm1508, %v1574, %v1575
      %v1577 = vrot.slane %v1453, 7
      %v1578 = vsel %vm1508, %v1575, %v1577
      %v1579 = vrot.slane %v1454, 7
      %v1580 = vrot.slane %v1455, 7
      %v1581 = vsel %vm1508, %v1579, %v1580
      %v1582 = vrot.slane %v1456, 7
      %v1583 = vsel %vm1508, %v1580, %v1582
      %v1584 = vrot.slane %v1457, 7
      %v1585 = vrot.slane %v1458, 7
      %v1586 = vsel %vm1508, %v1584, %v1585
      %v1587 = vrot.slane %v1459, 7
      %v1588 = vsel %vm1508, %v1585, %v1587
      %1621 = vst [vmem:[%s1379 + $0x18] sm:$0xff] %v1511
      %1622 = vst [vmem:[%s1379 + $0x30] sm:$0xff] %v1513
      %1623 = vst [vmem:[%s1379 + $0x78] sm:$0xff] %v1516
      %1624 = vst [vmem:[%s1379 + $0x90] sm:$0xff] %v1518
      %1625 = vst [vmem:[%s1379 + $0xd8] sm:$0xff] %v1521
      %1626 = vst [vmem:[%s1379 + $0xf0] sm:$0xff] %v1523
      %1627 = vst [vmem:[%s1379 + $0x138] sm:$0xff] %v1526
      %1628 = vst [vmem:[%s1379 + $0x150] sm:$0xff] %v1528
      %1629 = vst [vmem:[%s1379 + $0x198] sm:$0xff] %v1531
      %1630 = vst [vmem:[%s1379 + $0x1b0] sm:$0xff] %v1533
      %1631 = vst [vmem:[%s1379 + $0x1f8] sm:$0xff] %v1536
      %1632 = vst [vmem:[%s1379 + $0x210] sm:$0xff] %v1538
      %1633 = vst [vmem:[%s1379 + $0x258] sm:$0xff] %v1541
      %1634 = vst [vmem:[%s1379 + $0x270] sm:$0xff] %v1543
      %1635 = vst [vmem:[%s1379 + $0x2b8] sm:$0xff] %v1546
      %1636 = vst [vmem:[%s1379 + $0x2d0] sm:$0xff] %v1548
      %1637 = vst [vmem:[%s1379 + $0x318] sm:$0xff] %v1551
      %1638 = vst [vmem:[%s1379 + $0x330] sm:$0xff] %v1553
      %1639 = vst [vmem:[%s1379 + $0x378] sm:$0xff] %v1556
      %1640 = vst [vmem:[%s1379 + $0x390] sm:$0xff] %v1558
      %1641 = vst [vmem:[%s1379 + $0x3d8] sm:$0xff] %v1561
      %1642 = vst [vmem:[%s1379 + $0x3f0] sm:$0xff] %v1563
      %1643 = vst [vmem:[%s1379 + $0x438] sm:$0xff] %v1566
      %1644 = vst [vmem:[%s1379 + $0x450] sm:$0xff] %v1568
      %1645 = vst [vmem:[%s1379 + $0x498] sm:$0xff] %v1571
      %1646 = vst [vmem:[%s1379 + $0x4b0] sm:$0xff] %v1573
      %1647 = vst [vmem:[%s1379 + $0x4f8] sm:$0xff] %v1576
      %1648 = vst [vmem:[%s1379 + $0x510] sm:$0xff] %v1578
      %1649 = vst [vmem:[%s1379 + $0x558] sm:$0xff] %v1581
      %1650 = vst [vmem:[%s1379 + $0x570] sm:$0xff] %v1583
      %1651 = vst [vmem:[%s1379 + $0x5b8] sm:$0xff] %v1586
      %1652 = vst [vmem:[%s1379 + $0x5d0] sm:$0xff] %v1588
      %v1653 = vld [vmem:[%s1379 + $0x20] sm:$0xfe]
      %v1654 = vld [vmem:[%s1379 + $0x38] sm:$0xff]
      %v1655 = vld [vmem:[%s1379 + $0x50] sm:$0x1]
      %v1656 = vld [vmem:[%s1379 + $0x80] sm:$0xfe]
      %v1657 = vld [vmem:[%s1379 + $0x98] sm:$0xff]
      %v1658 = vld [vmem:[%s1379 + $0xb0] sm:$0x1]
      %v1659 = vld [vmem:[%s1379 + $0xe0] sm:$0xfe]
      %v1660 = vld [vmem:[%s1379 + $0xf8] sm:$0xff]
      %v1661 = vld [vmem:[%s1379 + $0x110] sm:$0x1]
      %v1662 = vld [vmem:[%s1379 + $0x140] sm:$0xfe]
      %v1663 = vld [vmem:[%s1379 + $0x158] sm:$0xff]
      %v1664 = vld [vmem:[%s1379 + $0x170] sm:$0x1]
      %v1665 = vld [vmem:[%s1379 + $0x1a0] sm:$0xfe]
      %v1666 = vld [vmem:[%s1379 + $0x1b8] sm:$0xff]
      %v1667 = vld [vmem:[%s1379 + $0x1d0] sm:$0x1]
      %v1668 = vld [vmem:[%s1379 + $0x200] sm:$0xfe]
      %v1669 = vld [vmem:[%s1379 + $0x218] sm:$0xff]
      %v1670 = vld [vmem:[%s1379 + $0x230] sm:$0x1]
      %v1671 = vld [vmem:[%s1379 + $0x260] sm:$0xfe]
      %v1672 = vld [vmem:[%s1379 + $0x278] sm:$0xff]
      %v1673 = vld [vmem:[%s1379 + $0x290] sm:$0x1]
      %v1674 = vld [vmem:[%s1379 + $0x2c0] sm:$0xfe]
      %v1675 = vld [vmem:[%s1379 + $0x2d8] sm:$0xff]
      %v1676 = vld [vmem:[%s1379 + $0x2f0] sm:$0x1]
      %v1677 = vld [vmem:[%s1379 + $0x320] sm:$0xfe]
      %v1678 = vld [vmem:[%s1379 + $0x338] sm:$0xff]
      %v1679 = vld [vmem:[%s1379 + $0x350] sm:$0x1]
      %v1680 = vld [vmem:[%s1379 + $0x380] sm:$0xfe]
      %v1681 = vld [vmem:[%s1379 + $0x398] sm:$0xff]
      %v1682 = vld [vmem:[%s1379 + $0x3b0] sm:$0x1]
      %v1683 = vld [vmem:[%s1379 + $0x3e0] sm:$0xfe]
      %v1684 = vld [vmem:[%s1379 + $0x3f8] sm:$0xff]
      %v1685 = vld [vmem:[%s1379 + $0x410] sm:$0x1]
      %v1686 = vld [vmem:[%s1379 + $0x440] sm:$0xfe]
      %v1687 = vld [vmem:[%s1379 + $0x458] sm:$0xff]
      %v1688 = vld [vmem:[%s1379 + $0x470] sm:$0x1]
      %v1689 = vld [vmem:[%s1379 + $0x4a0] sm:$0xfe]
      %v1690 = vld [vmem:[%s1379 + $0x4b8] sm:$0xff]
      %v1691 = vld [vmem:[%s1379 + $0x4d0] sm:$0x1]
      %v1692 = vld [vmem:[%s1379 + $0x500] sm:$0xfe]
      %v1693 = vld [vmem:[%s1379 + $0x518] sm:$0xff]
      %v1694 = vld [vmem:[%s1379 + $0x530] sm:$0x1]
      %v1695 = vld [vmem:[%s1379 + $0x560] sm:$0xfe]
      %v1696 = vld [vmem:[%s1379 + $0x578] sm:$0xff]
      %v1697 = vld [vmem:[%s1379 + $0x590] sm:$0x1]
      %v1698 = vld [vmem:[%s1379 + $0x5c0] sm:$0xfe]
      %v1699 = vld [vmem:[%s1379 + $0x5d8] sm:$0xff]
      %v1700 = vld [vmem:[%s1379 + $0x5f0] sm:$0x1]
      %vm1749 = vcmask 1046528
      %v1750 = vrot.slane %v1653, 1
      %v1751 = vrot.slane %v1654, 1
      %v1752 = vsel %vm1749, %v1750, %v1751
      %v1753 = vrot.slane %v1655, 1
      %v1754 = vsel %vm1749, %v1751, %v1753
      %v1755 = vrot.slane %v1656, 1
      %v1756 = vrot.slane %v1657, 1
      %v1757 = vsel %vm1749, %v1755, %v1756
      %v1758 = vrot.slane %v1658, 1
      %v1759 = vsel %vm1749, %v1756, %v1758
      %v1760 = vrot.slane %v1659, 1
      %v1761 = vrot.slane %v1660, 1
      %v1762 = vsel %vm1749, %v1760, %v1761
      %v1763 = vrot.slane %v1661, 1
      %v1764 = vsel %vm1749, %v1761, %v1763
      %v1765 = vrot.slane %v1662, 1
      %v1766 = vrot.slane %v1663, 1
      %v1767 = vsel %vm1749, %v1765, %v1766
      %v1768 = vrot.slane %v1664, 1
      %v1769 = vsel %vm1749, %v1766, %v1768
      %v1770 = vrot.slane %v1665, 1
      %v1771 = vrot.slane %v1666, 1
      %v1772 = vsel %vm1749, %v1770, %v1771
      %v1773 = vrot.slane %v1667, 1
      %v1774 = vsel %vm1749, %v1771, %v1773
      %v1775 = vrot.slane %v1668, 1
      %v1776 = vrot.slane %v1669, 1
      %v1777 = vsel %vm1749, %v1775, %v1776
      %v1778 = vrot.slane %v1670, 1
      %v1779 = vsel %vm1749, %v1776, %v1778
      %v1780 = vrot.slane %v1671, 1
      %v1781 = vrot.slane %v1672, 1
      %v1782 = vsel %vm1749, %v1780, %v1781
      %v1783 = vrot.slane %v1673, 1
      %v1784 = vsel %vm1749, %v1781, %v1783
      %v1785 = vrot.slane %v1674, 1
      %v1786 = vrot.slane %v1675, 1
      %v1787 = vsel %vm1749, %v1785, %v1786
      %v1788 = vrot.slane %v1676, 1
      %v1789 = vsel %vm1749, %v1786, %v1788
      %v1790 = vrot.slane %v1677, 1
      %v1791 = vrot.slane %v1678, 1
      %v1792 = vsel %vm1749, %v1790, %v1791
      %v1793 = vrot.slane %v1679, 1
      %v1794 = vsel %vm1749, %v1791, %v1793
      %v1795 = vrot.slane %v1680, 1
      %v1796 = vrot.slane %v1681, 1
      %v1797 = vsel %vm1749, %v1795, %v1796
      %v1798 = vrot.slane %v1682, 1
      %v1799 = vsel %vm1749, %v1796, %v1798
      %v1800 = vrot.slane %v1683, 1
      %v1801 = vrot.slane %v1684, 1
      %v1802 = vsel %vm1749, %v1800, %v1801
      %v1803 = vrot.slane %v1685, 1
      %v1804 = vsel %vm1749, %v1801, %v1803
      %v1805 = vrot.slane %v1686, 1
      %v1806 = vrot.slane %v1687, 1
      %v1807 = vsel %vm1749, %v1805, %v1806
      %v1808 = vrot.slane %v1688, 1
      %v1809 = vsel %vm1749, %v1806, %v1808
      %v1810 = vrot.slane %v1689, 1
      %v1811 = vrot.slane %v1690, 1
      %v1812 = vsel %vm1749, %v1810, %v1811
      %v1813 = vrot.slane %v1691, 1
      %v1814 = vsel %vm1749, %v1811, %v1813
      %v1815 = vrot.slane %v1692, 1
      %v1816 = vrot.slane %v1693, 1
      %v1817 = vsel %vm1749, %v1815, %v1816
      %v1818 = vrot.slane %v1694, 1
      %v1819 = vsel %vm1749, %v1816, %v1818
      %v1820 = vrot.slane %v1695, 1
      %v1821 = vrot.slane %v1696, 1
      %v1822 = vsel %vm1749, %v1820, %v1821
      %v1823 = vrot.slane %v1697, 1
      %v1824 = vsel %vm1749, %v1821, %v1823
      %v1825 = vrot.slane %v1698, 1
      %v1826 = vrot.slane %v1699, 1
      %v1827 = vsel %vm1749, %v1825, %v1826
      %v1828 = vrot.slane %v1700, 1
      %v1829 = vsel %vm1749, %v1826, %v1828
      %1862 = vst [vmem:[%s1379 + $0x28] sm:$0xff] %v1752
      %1863 = vst [vmem:[%s1379 + $0x40] sm:$0xff] %v1754
      %1864 = vst [vmem:[%s1379 + $0x88] sm:$0xff] %v1757
      %1865 = vst [vmem:[%s1379 + $0xa0] sm:$0xff] %v1759
      %1866 = vst [vmem:[%s1379 + $0xe8] sm:$0xff] %v1762
      %1867 = vst [vmem:[%s1379 + $0x100] sm:$0xff] %v1764
      %1868 = vst [vmem:[%s1379 + $0x148] sm:$0xff] %v1767
      %1869 = vst [vmem:[%s1379 + $0x160] sm:$0xff] %v1769
      %1870 = vst [vmem:[%s1379 + $0x1a8] sm:$0xff] %v1772
      %1871 = vst [vmem:[%s1379 + $0x1c0] sm:$0xff] %v1774
      %1872 = vst [vmem:[%s1379 + $0x208] sm:$0xff] %v1777
      %1873 = vst [vmem:[%s1379 + $0x220] sm:$0xff] %v1779
      %1874 = vst [vmem:[%s1379 + $0x268] sm:$0xff] %v1782
      %1875 = vst [vmem:[%s1379 + $0x280] sm:$0xff] %v1784
      %1876 = vst [vmem:[%s1379 + $0x2c8] sm:$0xff] %v1787
      %1877 = vst [vmem:[%s1379 + $0x2e0] sm:$0xff] %v1789
      %1878 = vst [vmem:[%s1379 + $0x328] sm:$0xff] %v1792
      %1879 = vst [vmem:[%s1379 + $0x340] sm:$0xff] %v1794
      %1880 = vst [vmem:[%s1379 + $0x388] sm:$0xff] %v1797
      %1881 = vst [vmem:[%s1379 + $0x3a0] sm:$0xff] %v1799
      %1882 = vst [vmem:[%s1379 + $0x3e8] sm:$0xff] %v1802
      %1883 = vst [vmem:[%s1379 + $0x400] sm:$0xff] %v1804
      %1884 = vst [vmem:[%s1379 + $0x448] sm:$0xff] %v1807
      %1885 = vst [vmem:[%s1379 + $0x460] sm:$0xff] %v1809
      %1886 = vst [vmem:[%s1379 + $0x4a8] sm:$0xff] %v1812
      %1887 = vst [vmem:[%s1379 + $0x4c0] sm:$0xff] %v1814
      %1888 = vst [vmem:[%s1379 + $0x508] sm:$0xff] %v1817
      %1889 = vst [vmem:[%s1379 + $0x520] sm:$0xff] %v1819
      %1890 = vst [vmem:[%s1379 + $0x568] sm:$0xff] %v1822
      %1891 = vst [vmem:[%s1379 + $0x580] sm:$0xff] %v1824
      %1892 = vst [vmem:[%s1379 + $0x5c8] sm:$0xff] %v1827
      %1893 = vst [vmem:[%s1379 + $0x5e0] sm:$0xff] %v1829
      %v1894 = vld [vmem:[#allocation3 + $0x18] sm:$0xff]
      %v1895 = vld [vmem:[#allocation3 + $0x20] sm:$0xff]
      %v1896 = vld [vmem:[#allocation3 + $0x28] sm:$0xff]
      %v1897 = vld [vmem:[#allocation3 + $0x30] sm:$0xff]
      %v1898 = vld [vmem:[#allocation3 + $0x38] sm:$0xff]
      %v1899 = vld [vmem:[#allocation3 + $0x40] sm:$0xff]
      %v1900 = vld [vmem:[#allocation3 + $0x78] sm:$0xff]
      %v1901 = vld [vmem:[#allocation3 + $0x80] sm:$0xff]
      %v1902 = vld [vmem:[#allocation3 + $0x88] sm:$0xff]
      %v1903 = vld [vmem:[#allocation3 + $0x90] sm:$0xff]
      %v1904 = vld [vmem:[#allocation3 + $0x98] sm:$0xff]
      %v1905 = vld [vmem:[#allocation3 + $0xa0] sm:$0xff]
      %v1906 = vld [vmem:[#allocation3 + $0xd8] sm:$0xff]
      %v1907 = vld [vmem:[#allocation3 + $0xe0] sm:$0xff]
      %v1908 = vld [vmem:[#allocation3 + $0xe8] sm:$0xff]
      %v1909 = vld [vmem:[#allocation3 + $0xf0] sm:$0xff]
      %v1910 = vld [vmem:[#allocation3 + $0xf8] sm:$0xff]
      %v1911 = vld [vmem:[#allocation3 + $0x100] sm:$0xff]
      %v1912 = vld [vmem:[#allocation3 + $0x138] sm:$0xff]
      %v1913 = vld [vmem:[#allocation3 + $0x140] sm:$0xff]
      %v1914 = vld [vmem:[#allocation3 + $0x148] sm:$0xff]
      %v1915 = vld [vmem:[#allocation3 + $0x150] sm:$0xff]
      %v1916 = vld [vmem:[#allocation3 + $0x158] sm:$0xff]
      %v1917 = vld [vmem:[#allocation3 + $0x160] sm:$0xff]
      %v1918 = vld [vmem:[#allocation3 + $0x198] sm:$0xff]
      %v1919 = vld [vmem:[#allocation3 + $0x1a0] sm:$0xff]
      %v1920 = vld [vmem:[#allocation3 + $0x1a8] sm:$0xff]
      %v1921 = vld [vmem:[#allocation3 + $0x1b0] sm:$0xff]
      %v1922 = vld [vmem:[#allocation3 + $0x1b8] sm:$0xff]
      %v1923 = vld [vmem:[#allocation3 + $0x1c0] sm:$0xff]
      %v1924 = vld [vmem:[#allocation3 + $0x1f8] sm:$0xff]
      %v1925 = vld [vmem:[#allocation3 + $0x200] sm:$0xff]
      %v1926 = vld [vmem:[#allocation3 + $0x208] sm:$0xff]
      %v1927 = vld [vmem:[#allocation3 + $0x210] sm:$0xff]
      %v1928 = vld [vmem:[#allocation3 + $0x218] sm:$0xff]
      %v1929 = vld [vmem:[#allocation3 + $0x220] sm:$0xff]
      %v1930 = vld [vmem:[#allocation3 + $0x258] sm:$0xff]
      %v1931 = vld [vmem:[#allocation3 + $0x260] sm:$0xff]
      %v1932 = vld [vmem:[#allocation3 + $0x268] sm:$0xff]
      %v1933 = vld [vmem:[#allocation3 + $0x270] sm:$0xff]
      %v1934 = vld [vmem:[#allocation3 + $0x278] sm:$0xff]
      %v1935 = vld [vmem:[#allocation3 + $0x280] sm:$0xff]
      %v1936 = vld [vmem:[#allocation3 + $0x2b8] sm:$0xff]
      %v1937 = vld [vmem:[#allocation3 + $0x2c0] sm:$0xff]
      %v1938 = vld [vmem:[#allocation3 + $0x2c8] sm:$0xff]
      %v1939 = vld [vmem:[#allocation3 + $0x2d0] sm:$0xff]
      %v1940 = vld [vmem:[#allocation3 + $0x2d8] sm:$0xff]
      %v1941 = vld [vmem:[#allocation3 + $0x2e0] sm:$0xff]
      %v1942 = vld [vmem:[#allocation3 + $0x318] sm:$0xff]
      %v1943 = vld [vmem:[#allocation3 + $0x320] sm:$0xff]
      %v1944 = vld [vmem:[#allocation3 + $0x328] sm:$0xff]
      %v1945 = vld [vmem:[#allocation3 + $0x330] sm:$0xff]
      %v1946 = vld [vmem:[#allocation3 + $0x338] sm:$0xff]
      %v1947 = vld [vmem:[#allocation3 + $0x340] sm:$0xff]
      %v1948 = vld [vmem:[#allocation3 + $0x378] sm:$0xff]
      %v1949 = vld [vmem:[#allocation3 + $0x380] sm:$0xff]
      %v1950 = vld [vmem:[#allocation3 + $0x388] sm:$0xff]
      %v1951 = vld [vmem:[#allocation3 + $0x390] sm:$0xff]
      %v1952 = vld [vmem:[#allocation3 + $0x398] sm:$0xff]
      %v1953 = vld [vmem:[#allocation3 + $0x3a0] sm:$0xff]
      %v1954 = vld [vmem:[#allocation3 + $0x3d8] sm:$0xff]
      %v1955 = vld [vmem:[#allocation3 + $0x3e0] sm:$0xff]
      %v1956 = vld [vmem:[#allocation3 + $0x3e8] sm:$0xff]
      %v1957 = vld [vmem:[#allocation3 + $0x3f0] sm:$0xff]
      %v1958 = vld [vmem:[#allocation3 + $0x3f8] sm:$0xff]
      %v1959 = vld [vmem:[#allocation3 + $0x400] sm:$0xff]
      %v1960 = vld [vmem:[#allocation3 + $0x438] sm:$0xff]
      %v1961 = vld [vmem:[#allocation3 + $0x440] sm:$0xff]
      %v1962 = vld [vmem:[#allocation3 + $0x448] sm:$0xff]
      %v1963 = vld [vmem:[#allocation3 + $0x450] sm:$0xff]
      %v1964 = vld [vmem:[#allocation3 + $0x458] sm:$0xff]
      %v1965 = vld [vmem:[#allocation3 + $0x460] sm:$0xff]
      %v1966 = vld [vmem:[#allocation3 + $0x498] sm:$0xff]
      %v1967 = vld [vmem:[#allocation3 + $0x4a0] sm:$0xff]
      %v1968 = vld [vmem:[#allocation3 + $0x4a8] sm:$0xff]
      %v1969 = vld [vmem:[#allocation3 + $0x4b0] sm:$0xff]
      %v1970 = vld [vmem:[#allocation3 + $0x4b8] sm:$0xff]
      %v1971 = vld [vmem:[#allocation3 + $0x4c0] sm:$0xff]
      %v1972 = vld [vmem:[#allocation3 + $0x4f8] sm:$0xff]
      %v1973 = vld [vmem:[#allocation3 + $0x500] sm:$0xff]
      %v1974 = vld [vmem:[#allocation3 + $0x508] sm:$0xff]
      %v1975 = vld [vmem:[#allocation3 + $0x510] sm:$0xff]
      %v1976 = vld [vmem:[#allocation3 + $0x518] sm:$0xff]
      %v1977 = vld [vmem:[#allocation3 + $0x520] sm:$0xff]
      %v1978 = vld [vmem:[#allocation3 + $0x558] sm:$0xff]
      %v1979 = vld [vmem:[#allocation3 + $0x560] sm:$0xff]
      %v1980 = vld [vmem:[#allocation3 + $0x568] sm:$0xff]
      %v1981 = vld [vmem:[#allocation3 + $0x570] sm:$0xff]
      %v1982 = vld [vmem:[#allocation3 + $0x578] sm:$0xff]
      %v1983 = vld [vmem:[#allocation3 + $0x580] sm:$0xff]
      %v1984 = vld [vmem:[#allocation3 + $0x5b8] sm:$0xff]
      %v1985 = vld [vmem:[#allocation3 + $0x5c0] sm:$0xff]
      %v1986 = vld [vmem:[#allocation3 + $0x5c8] sm:$0xff]
      %v1987 = vld [vmem:[#allocation3 + $0x5d0] sm:$0xff]
      %v1988 = vld [vmem:[#allocation3 + $0x5d8] sm:$0xff]
      %v1989 = vld [vmem:[#allocation3 + $0x5e0] sm:$0xff]
      %v1990 = vld [vmem:[%s5] sm:$0xff]
      %v1991 = vld [vmem:[%s5 + $0x8] sm:$0xff]
      %v1992 = vld [vmem:[%s5 + $0x10] sm:$0xff]
      %v1993 = vld [vmem:[%s5 + $0x18] sm:$0xff]
      %v1994 = vld [vmem:[%s5 + $0x20] sm:$0xff]
      %v1995 = vld [vmem:[%s5 + $0x28] sm:$0xff]
      %v1996 = vld [vmem:[%s5 + $0x30] sm:$0xff]
      %v1997 = vld [vmem:[%s5 + $0x38] sm:$0xff]
      %v1998 = vld [vmem:[%s5 + $0x40] sm:$0xff]
      %v1999 = vld [vmem:[%s5 + $0x48] sm:$0xff]
      %v2000 = vld [vmem:[%s5 + $0x50] sm:$0xff]
      %v2001 = vld [vmem:[%s5 + $0x58] sm:$0xff]
      %v2002 = vld [vmem:[%s5 + $0x60] sm:$0xff]
      %v2003 = vld [vmem:[%s5 + $0x68] sm:$0xff]
      %v2004 = vld [vmem:[%s5 + $0x70] sm:$0xff]
      %v2005 = vld [vmem:[%s5 + $0x78] sm:$0xff]
      %v2006 = vld [vmem:[%s5 + $0x80] sm:$0xff]
      %v2007 = vld [vmem:[%s5 + $0x88] sm:$0xff]
      %v2008 = vld [vmem:[%s5 + $0x90] sm:$0xff]
      %v2009 = vld [vmem:[%s5 + $0x98] sm:$0xff]
      %v2010 = vld [vmem:[%s5 + $0xa0] sm:$0xff]
      %v2011 = vld [vmem:[%s5 + $0xa8] sm:$0xff]
      %v2012 = vld [vmem:[%s5 + $0xb0] sm:$0xff]
      %v2013 = vld [vmem:[%s5 + $0xb8] sm:$0xff]
      %v2014 = vld [vmem:[%s5 + $0xc0] sm:$0xff]
      %v2015 = vld [vmem:[%s5 + $0xc8] sm:$0xff]
      %v2016 = vld [vmem:[%s5 + $0xd0] sm:$0xff]
      %v2017 = vld [vmem:[%s5 + $0xd8] sm:$0xff]
      %v2018 = vld [vmem:[%s5 + $0xe0] sm:$0xff]
      %v2019 = vld [vmem:[%s5 + $0xe8] sm:$0xff]
      %v2020 = vld [vmem:[%s5 + $0xf0] sm:$0xff]
      %v2021 = vld [vmem:[%s5 + $0xf8] sm:$0xff]
      %v2022 = vld [vmem:[%s5 + $0x100] sm:$0xff]
      %v2023 = vld [vmem:[%s5 + $0x108] sm:$0xff]
      %v2024 = vld [vmem:[%s5 + $0x110] sm:$0xff]
      %v2025 = vld [vmem:[%s5 + $0x118] sm:$0xff]
      %v2026 = vld [vmem:[%s5 + $0x120] sm:$0xff]
      %v2027 = vld [vmem:[%s5 + $0x128] sm:$0xff]
      %v2028 = vld [vmem:[%s5 + $0x130] sm:$0xff]
      %v2029 = vld [vmem:[%s5 + $0x138] sm:$0xff]
      %v2030 = vld [vmem:[%s5 + $0x140] sm:$0xff]
      %v2031 = vld [vmem:[%s5 + $0x148] sm:$0xff]
      %v2032 = vld [vmem:[%s5 + $0x150] sm:$0xff]
      %v2033 = vld [vmem:[%s5 + $0x158] sm:$0xff]
      %v2034 = vld [vmem:[%s5 + $0x160] sm:$0xff]
      %v2035 = vld [vmem:[%s5 + $0x168] sm:$0xff]
      %v2036 = vld [vmem:[%s5 + $0x170] sm:$0xff]
      %v2037 = vld [vmem:[%s5 + $0x178] sm:$0xff]
      %v2038 = vld [vmem:[%s1379 + $0x18] sm:$0xff]
      %v2039 = vld [vmem:[%s1379 + $0x20] sm:$0xff]
      %v2040 = vld [vmem:[%s1379 + $0x28] sm:$0xff]
      %v2041 = vld [vmem:[%s1379 + $0x30] sm:$0xff]
      %v2042 = vld [vmem:[%s1379 + $0x38] sm:$0xff]
      %v2043 = vld [vmem:[%s1379 + $0x40] sm:$0xff]
      %v2044 = vld [vmem:[%s1379 + $0x78] sm:$0xff]
      %v2045 = vld [vmem:[%s1379 + $0x80] sm:$0xff]
      %v2046 = vld [vmem:[%s1379 + $0x88] sm:$0xff]
      %v2047 = vld [vmem:[%s1379 + $0x90] sm:$0xff]
      %v2048 = vld [vmem:[%s1379 + $0x98] sm:$0xff]
      %v2049 = vld [vmem:[%s1379 + $0xa0] sm:$0xff]
      %v2050 = vld [vmem:[%s1379 + $0xd8] sm:$0xff]
      %v2051 = vld [vmem:[%s1379 + $0xe0] sm:$0xff]
      %v2052 = vld [vmem:[%s1379 + $0xe8] sm:$0xff]
      %v2053 = vld [vmem:[%s1379 + $0xf0] sm:$0xff]
      %v2054 = vld [vmem:[%s1379 + $0xf8] sm:$0xff]
      %v2055 = vld [vmem:[%s1379 + $0x100] sm:$0xff]
      %v2056 = vld [vmem:[%s1379 + $0x138] sm:$0xff]
      %v2057 = vld [vmem:[%s1379 + $0x140] sm:$0xff]
      %v2058 = vld [vmem:[%s1379 + $0x148] sm:$0xff]
      %v2059 = vld [vmem:[%s1379 + $0x150] sm:$0xff]
      %v2060 = vld [vmem:[%s1379 + $0x158] sm:$0xff]
      %v2061 = vld [vmem:[%s1379 + $0x160] sm:$0xff]
      %v2062 = vld [vmem:[%s1379 + $0x198] sm:$0xff]
      %v2063 = vld [vmem:[%s1379 + $0x1a0] sm:$0xff]
      %v2064 = vld [vmem:[%s1379 + $0x1a8] sm:$0xff]
      %v2065 = vld [vmem:[%s1379 + $0x1b0] sm:$0xff]
      %v2066 = vld [vmem:[%s1379 + $0x1b8] sm:$0xff]
      %v2067 = vld [vmem:[%s1379 + $0x1c0] sm:$0xff]
      %v2068 = vld [vmem:[%s1379 + $0x1f8] sm:$0xff]
      %v2069 = vld [vmem:[%s1379 + $0x200] sm:$0xff]
      %v2070 = vld [vmem:[%s1379 + $0x208] sm:$0xff]
      %v2071 = vld [vmem:[%s1379 + $0x210] sm:$0xff]
      %v2072 = vld [vmem:[%s1379 + $0x218] sm:$0xff]
      %v2073 = vld [vmem:[%s1379 + $0x220] sm:$0xff]
      %v2074 = vld [vmem:[%s1379 + $0x258] sm:$0xff]
      %v2075 = vld [vmem:[%s1379 + $0x260] sm:$0xff]
      %v2076 = vld [vmem:[%s1379 + $0x268] sm:$0xff]
      %v2077 = vld [vmem:[%s1379 + $0x270] sm:$0xff]
      %v2078 = vld [vmem:[%s1379 + $0x278] sm:$0xff]
      %v2079 = vld [vmem:[%s1379 + $0x280] sm:$0xff]
      %v2080 = vld [vmem:[%s1379 + $0x2b8] sm:$0xff]
      %v2081 = vld [vmem:[%s1379 + $0x2c0] sm:$0xff]
      %v2082 = vld [vmem:[%s1379 + $0x2c8] sm:$0xff]
      %v2083 = vld [vmem:[%s1379 + $0x2d0] sm:$0xff]
      %v2084 = vld [vmem:[%s1379 + $0x2d8] sm:$0xff]
      %v2085 = vld [vmem:[%s1379 + $0x2e0] sm:$0xff]
      %v2086 = vld [vmem:[%s1379 + $0x318] sm:$0xff]
      %v2087 = vld [vmem:[%s1379 + $0x320] sm:$0xff]
      %v2088 = vld [vmem:[%s1379 + $0x328] sm:$0xff]
      %v2089 = vld [vmem:[%s1379 + $0x330] sm:$0xff]
      %v2090 = vld [vmem:[%s1379 + $0x338] sm:$0xff]
      %v2091 = vld [vmem:[%s1379 + $0x340] sm:$0xff]
      %v2092 = vld [vmem:[%s1379 + $0x378] sm:$0xff]
      %v2093 = vld [vmem:[%s1379 + $0x380] sm:$0xff]
      %v2094 = vld [vmem:[%s1379 + $0x388] sm:$0xff]
      %v2095 = vld [vmem:[%s1379 + $0x390] sm:$0xff]
      %v2096 = vld [vmem:[%s1379 + $0x398] sm:$0xff]
      %v2097 = vld [vmem:[%s1379 + $0x3a0] sm:$0xff]
      %v2098 = vld [vmem:[%s1379 + $0x3d8] sm:$0xff]
      %v2099 = vld [vmem:[%s1379 + $0x3e0] sm:$0xff]
      %v2100 = vld [vmem:[%s1379 + $0x3e8] sm:$0xff]
      %v2101 = vld [vmem:[%s1379 + $0x3f0] sm:$0xff]
      %v2102 = vld [vmem:[%s1379 + $0x3f8] sm:$0xff]
      %v2103 = vld [vmem:[%s1379 + $0x400] sm:$0xff]
      %v2104 = vld [vmem:[%s1379 + $0x438] sm:$0xff]
      %v2105 = vld [vmem:[%s1379 + $0x440] sm:$0xff]
      %v2106 = vld [vmem:[%s1379 + $0x448] sm:$0xff]
      %v2107 = vld [vmem:[%s1379 + $0x450] sm:$0xff]
      %v2108 = vld [vmem:[%s1379 + $0x458] sm:$0xff]
      %v2109 = vld [vmem:[%s1379 + $0x460] sm:$0xff]
      %v2110 = vld [vmem:[%s1379 + $0x498] sm:$0xff]
      %v2111 = vld [vmem:[%s1379 + $0x4a0] sm:$0xff]
      %v2112 = vld [vmem:[%s1379 + $0x4a8] sm:$0xff]
      %v2113 = vld [vmem:[%s1379 + $0x4b0] sm:$0xff]
      %v2114 = vld [vmem:[%s1379 + $0x4b8] sm:$0xff]
      %v2115 = vld [vmem:[%s1379 + $0x4c0] sm:$0xff]
      %v2116 = vld [vmem:[%s1379 + $0x4f8] sm:$0xff]
      %v2117 = vld [vmem:[%s1379 + $0x500] sm:$0xff]
      %v2118 = vld [vmem:[%s1379 + $0x508] sm:$0xff]
      %v2119 = vld [vmem:[%s1379 + $0x510] sm:$0xff]
      %v2120 = vld [vmem:[%s1379 + $0x518] sm:$0xff]
      %v2121 = vld [vmem:[%s1379 + $0x520] sm:$0xff]
      %v2122 = vld [vmem:[%s1379 + $0x558] sm:$0xff]
      %v2123 = vld [vmem:[%s1379 + $0x560] sm:$0xff]
      %v2124 = vld [vmem:[%s1379 + $0x568] sm:$0xff]
      %v2125 = vld [vmem:[%s1379 + $0x570] sm:$0xff]
      %v2126 = vld [vmem:[%s1379 + $0x578] sm:$0xff]
      %v2127 = vld [vmem:[%s1379 + $0x580] sm:$0xff]
      %v2128 = vld [vmem:[%s1379 + $0x5b8] sm:$0xff]
      %v2129 = vld [vmem:[%s1379 + $0x5c0] sm:$0xff]
      %v2130 = vld [vmem:[%s1379 + $0x5c8] sm:$0xff]
      %v2131 = vld [vmem:[%s1379 + $0x5d0] sm:$0xff]
      %v2132 = vld [vmem:[%s1379 + $0x5d8] sm:$0xff]
      %v2133 = vld [vmem:[%s1379 + $0x5e0] sm:$0xff]
      %s2134 = scalar_lea.vmem %s5, 384
      %v2135 = vld [vmem:[%s2134] sm:$0xff]
      %v2136 = vld [vmem:[%s2134 + $0x8] sm:$0xff]
      %v2137 = vld [vmem:[%s2134 + $0x10] sm:$0xff]
      %v2138 = vld [vmem:[%s2134 + $0x18] sm:$0xff]
      %v2139 = vld [vmem:[%s2134 + $0x20] sm:$0xff]
      %v2140 = vld [vmem:[%s2134 + $0x28] sm:$0xff]
      %v2141 = vld [vmem:[%s2134 + $0x30] sm:$0xff]
      %v2142 = vld [vmem:[%s2134 + $0x38] sm:$0xff]
      %v2143 = vld [vmem:[%s2134 + $0x40] sm:$0xff]
      %v2144 = vld [vmem:[%s2134 + $0x48] sm:$0xff]
      %v2145 = vld [vmem:[%s2134 + $0x50] sm:$0xff]
      %v2146 = vld [vmem:[%s2134 + $0x58] sm:$0xff]
      %v2147 = vld [vmem:[%s2134 + $0x60] sm:$0xff]
      %v2148 = vld [vmem:[%s2134 + $0x68] sm:$0xff]
      %v2149 = vld [vmem:[%s2134 + $0x70] sm:$0xff]
      %v2150 = vld [vmem:[%s2134 + $0x78] sm:$0xff]
      %v2151 = vld [vmem:[%s2134 + $0x80] sm:$0xff]
      %v2152 = vld [vmem:[%s2134 + $0x88] sm:$0xff]
      %v2153 = vld [vmem:[%s2134 + $0x90] sm:$0xff]
      %v2154 = vld [vmem:[%s2134 + $0x98] sm:$0xff]
      %v2155 = vld [vmem:[%s2134 + $0xa0] sm:$0xff]
      %v2156 = vld [vmem:[%s2134 + $0xa8] sm:$0xff]
      %v2157 = vld [vmem:[%s2134 + $0xb0] sm:$0xff]
      %v2158 = vld [vmem:[%s2134 + $0xb8] sm:$0xff]
      %v2159 = vld [vmem:[%s2134 + $0xc0] sm:$0xff]
      %v2160 = vld [vmem:[%s2134 + $0xc8] sm:$0xff]
      %v2161 = vld [vmem:[%s2134 + $0xd0] sm:$0xff]
      %v2162 = vld [vmem:[%s2134 + $0xd8] sm:$0xff]
      %v2163 = vld [vmem:[%s2134 + $0xe0] sm:$0xff]
      %v2164 = vld [vmem:[%s2134 + $0xe8] sm:$0xff]
      %v2165 = vld [vmem:[%s2134 + $0xf0] sm:$0xff]
      %v2166 = vld [vmem:[%s2134 + $0xf8] sm:$0xff]
      %v2167 = vld [vmem:[%s2134 + $0x100] sm:$0xff]
      %v2168 = vld [vmem:[%s2134 + $0x108] sm:$0xff]
      %v2169 = vld [vmem:[%s2134 + $0x110] sm:$0xff]
      %v2170 = vld [vmem:[%s2134 + $0x118] sm:$0xff]
      %v2171 = vld [vmem:[%s2134 + $0x120] sm:$0xff]
      %v2172 = vld [vmem:[%s2134 + $0x128] sm:$0xff]
      %v2173 = vld [vmem:[%s2134 + $0x130] sm:$0xff]
      %v2174 = vld [vmem:[%s2134 + $0x138] sm:$0xff]
      %v2175 = vld [vmem:[%s2134 + $0x140] sm:$0xff]
      %v2176 = vld [vmem:[%s2134 + $0x148] sm:$0xff]
      %v2177 = vld [vmem:[%s2134 + $0x150] sm:$0xff]
      %v2178 = vld [vmem:[%s2134 + $0x158] sm:$0xff]
      %v2179 = vld [vmem:[%s2134 + $0x160] sm:$0xff]
      %v2180 = vld [vmem:[%s2134 + $0x168] sm:$0xff]
      %v2181 = vld [vmem:[%s2134 + $0x170] sm:$0xff]
      %v2182 = vld [vmem:[%s2134 + $0x178] sm:$0xff]
      %2183 = vmatpush.msra.mxu0 %v2150
      %2184 = vmatpush.msra.mxu0 %v2149
      %2185 = vmatpush.msra.mxu0 %v2148
      %2186 = vmatpush.msra.mxu0 %v2147
      %2187 = vmatpush.msra.mxu0 %v2146
      %2188 = vmatpush.msra.mxu0 %v2145
      %2189 = vmatpush.msra.mxu0 %v2144
      %2190 = vmatpush.msra.mxu0 %v2143
      %2191 = vmatpush.msra.mxu0 %v2142
      %2192 = vmatpush.msra.mxu0 %v2141
      %2193 = vmatpush.msra.mxu0 %v2140
      %2194 = vmatpush.msra.mxu0 %v2139
      %2195 = vmatpush.msra.mxu0 %v2138
      %2196 = vmatpush.msra.mxu0 %v2137
      %2197 = vmatpush.msra.mxu0 %v2136
      %2198 = vmatpush.msra.mxu0 %v2135
      %2199 = vmatmul.f32.gmra.mxu0 %v2038
      %v2200 = vpop.f32.mrf.mxu0
      %v2201 = vadd.f32 0.0, %v2200
      %2202 = vmatmul.f32.gmra.mxu0 %v2041
      %v2203 = vpop.f32.mrf.mxu0
      %v2204 = vadd.f32 0.0, %v2203
      %2205 = vmatmul.f32.gmra.mxu0 %v2044
      %v2206 = vpop.f32.mrf.mxu0
      %v2207 = vadd.f32 0.0, %v2206
      %2208 = vmatmul.f32.gmra.mxu0 %v2047
      %v2209 = vpop.f32.mrf.mxu0
      %v2210 = vadd.f32 0.0, %v2209
      %2211 = vmatmul.f32.gmra.mxu0 %v2050
      %v2212 = vpop.f32.mrf.mxu0
      %v2213 = vadd.f32 0.0, %v2212
      %2214 = vmatmul.f32.gmra.mxu0 %v2053
      %v2215 = vpop.f32.mrf.mxu0
      %v2216 = vadd.f32 0.0, %v2215
      %2217 = vmatmul.f32.gmra.mxu0 %v2056
      %v2218 = vpop.f32.mrf.mxu0
      %v2219 = vadd.f32 0.0, %v2218
      %2220 = vmatmul.f32.gmra.mxu0 %v2059
      %v2221 = vpop.f32.mrf.mxu0
      %v2222 = vadd.f32 0.0, %v2221
      %2223 = vmatmul.f32.gmra.mxu0 %v2062
      %v2224 = vpop.f32.mrf.mxu0
      %v2225 = vadd.f32 0.0, %v2224
      %2226 = vmatmul.f32.gmra.mxu0 %v2065
      %v2227 = vpop.f32.mrf.mxu0
      %v2228 = vadd.f32 0.0, %v2227
      %2229 = vmatmul.f32.gmra.mxu0 %v2068
      %v2230 = vpop.f32.mrf.mxu0
      %v2231 = vadd.f32 0.0, %v2230
      %2232 = vmatmul.f32.gmra.mxu0 %v2071
      %v2233 = vpop.f32.mrf.mxu0
      %v2234 = vadd.f32 0.0, %v2233
      %2235 = vmatmul.f32.gmra.mxu0 %v2074
      %v2236 = vpop.f32.mrf.mxu0
      %v2237 = vadd.f32 0.0, %v2236
      %2238 = vmatmul.f32.gmra.mxu0 %v2077
      %v2239 = vpop.f32.mrf.mxu0
      %v2240 = vadd.f32 0.0, %v2239
      %2241 = vmatmul.f32.gmra.mxu0 %v2080
      %v2242 = vpop.f32.mrf.mxu0
      %v2243 = vadd.f32 0.0, %v2242
      %2244 = vmatmul.f32.gmra.mxu0 %v2083
      %v2245 = vpop.f32.mrf.mxu0
      %v2246 = vadd.f32 0.0, %v2245
      %2247 = vmatmul.f32.gmra.mxu0 %v2086
      %v2248 = vpop.f32.mrf.mxu0
      %v2249 = vadd.f32 0.0, %v2248
      %2250 = vmatmul.f32.gmra.mxu0 %v2089
      %v2251 = vpop.f32.mrf.mxu0
      %v2252 = vadd.f32 0.0, %v2251
      %2253 = vmatmul.f32.gmra.mxu0 %v2092
      %v2254 = vpop.f32.mrf.mxu0
      %v2255 = vadd.f32 0.0, %v2254
      %2256 = vmatmul.f32.gmra.mxu0 %v2095
      %v2257 = vpop.f32.mrf.mxu0
      %v2258 = vadd.f32 0.0, %v2257
      %2259 = vmatmul.f32.gmra.mxu0 %v2098
      %v2260 = vpop.f32.mrf.mxu0
      %v2261 = vadd.f32 0.0, %v2260
      %2262 = vmatmul.f32.gmra.mxu0 %v2101
      %v2263 = vpop.f32.mrf.mxu0
      %v2264 = vadd.f32 0.0, %v2263
      %2265 = vmatmul.f32.gmra.mxu0 %v2104
      %v2266 = vpop.f32.mrf.mxu0
      %v2267 = vadd.f32 0.0, %v2266
      %2268 = vmatmul.f32.gmra.mxu0 %v2107
      %v2269 = vpop.f32.mrf.mxu0
      %v2270 = vadd.f32 0.0, %v2269
      %2271 = vmatmul.f32.gmra.mxu0 %v2110
      %v2272 = vpop.f32.mrf.mxu0
      %v2273 = vadd.f32 0.0, %v2272
      %2274 = vmatmul.f32.gmra.mxu0 %v2113
      %v2275 = vpop.f32.mrf.mxu0
      %v2276 = vadd.f32 0.0, %v2275
      %2277 = vmatmul.f32.gmra.mxu0 %v2116
      %v2278 = vpop.f32.mrf.mxu0
      %v2279 = vadd.f32 0.0, %v2278
      %2280 = vmatmul.f32.gmra.mxu0 %v2119
      %v2281 = vpop.f32.mrf.mxu0
      %v2282 = vadd.f32 0.0, %v2281
      %2283 = vmatmul.f32.gmra.mxu0 %v2122
      %v2284 = vpop.f32.mrf.mxu0
      %v2285 = vadd.f32 0.0, %v2284
      %2286 = vmatmul.f32.gmra.mxu0 %v2125
      %v2287 = vpop.f32.mrf.mxu0
      %v2288 = vadd.f32 0.0, %v2287
      %2289 = vmatmul.f32.gmra.mxu0 %v2128
      %v2290 = vpop.f32.mrf.mxu0
      %v2291 = vadd.f32 0.0, %v2290
      %2292 = vmatmul.f32.gmra.mxu0 %v2131
      %v2293 = vpop.f32.mrf.mxu0
      %v2294 = vadd.f32 0.0, %v2293
      %2295 = vdwg.mxu0
      %2296 = vmatpush.msra.mxu0 %v2166
      %2297 = vmatpush.msra.mxu0 %v2165
      %2298 = vmatpush.msra.mxu0 %v2164
      %2299 = vmatpush.msra.mxu0 %v2163
      %2300 = vmatpush.msra.mxu0 %v2162
      %2301 = vmatpush.msra.mxu0 %v2161
      %2302 = vmatpush.msra.mxu0 %v2160
      %2303 = vmatpush.msra.mxu0 %v2159
      %2304 = vmatpush.msra.mxu0 %v2158
      %2305 = vmatpush.msra.mxu0 %v2157
      %2306 = vmatpush.msra.mxu0 %v2156
      %2307 = vmatpush.msra.mxu0 %v2155
      %2308 = vmatpush.msra.mxu0 %v2154
      %2309 = vmatpush.msra.mxu0 %v2153
      %2310 = vmatpush.msra.mxu0 %v2152
      %2311 = vmatpush.msra.mxu0 %v2151
      %2312 = vmatmul.f32.gmra.mxu0 %v2039
      %v2313 = vpop.f32.mrf.mxu0
      %v2314 = vadd.f32 %v2201, %v2313
      %2315 = vmatmul.f32.gmra.mxu0 %v2042
      %v2316 = vpop.f32.mrf.mxu0
      %v2317 = vadd.f32 %v2204, %v2316
      %2318 = vmatmul.f32.gmra.mxu0 %v2045
      %v2319 = vpop.f32.mrf.mxu0
      %v2320 = vadd.f32 %v2207, %v2319
      %2321 = vmatmul.f32.gmra.mxu0 %v2048
      %v2322 = vpop.f32.mrf.mxu0
      %v2323 = vadd.f32 %v2210, %v2322
      %2324 = vmatmul.f32.gmra.mxu0 %v2051
      %v2325 = vpop.f32.mrf.mxu0
      %v2326 = vadd.f32 %v2213, %v2325
      %2327 = vmatmul.f32.gmra.mxu0 %v2054
      %v2328 = vpop.f32.mrf.mxu0
      %v2329 = vadd.f32 %v2216, %v2328
      %2330 = vmatmul.f32.gmra.mxu0 %v2057
      %v2331 = vpop.f32.mrf.mxu0
      %v2332 = vadd.f32 %v2219, %v2331
      %2333 = vmatmul.f32.gmra.mxu0 %v2060
      %v2334 = vpop.f32.mrf.mxu0
      %v2335 = vadd.f32 %v2222, %v2334
      %2336 = vmatmul.f32.gmra.mxu0 %v2063
      %v2337 = vpop.f32.mrf.mxu0
      %v2338 = vadd.f32 %v2225, %v2337
      %2339 = vmatmul.f32.gmra.mxu0 %v2066
      %v2340 = vpop.f32.mrf.mxu0
      %v2341 = vadd.f32 %v2228, %v2340
      %2342 = vmatmul.f32.gmra.mxu0 %v2069
      %v2343 = vpop.f32.mrf.mxu0
      %v2344 = vadd.f32 %v2231, %v2343
      %2345 = vmatmul.f32.gmra.mxu0 %v2072
      %v2346 = vpop.f32.mrf.mxu0
      %v2347 = vadd.f32 %v2234, %v2346
      %2348 = vmatmul.f32.gmra.mxu0 %v2075
      %v2349 = vpop.f32.mrf.mxu0
      %v2350 = vadd.f32 %v2237, %v2349
      %2351 = vmatmul.f32.gmra.mxu0 %v2078
      %v2352 = vpop.f32.mrf.mxu0
      %v2353 = vadd.f32 %v2240, %v2352
      %2354 = vmatmul.f32.gmra.mxu0 %v2081
      %v2355 = vpop.f32.mrf.mxu0
      %v2356 = vadd.f32 %v2243, %v2355
      %2357 = vmatmul.f32.gmra.mxu0 %v2084
      %v2358 = vpop.f32.mrf.mxu0
      %v2359 = vadd.f32 %v2246, %v2358
      %2360 = vmatmul.f32.gmra.mxu0 %v2087
      %v2361 = vpop.f32.mrf.mxu0
      %v2362 = vadd.f32 %v2249, %v2361
      %2363 = vmatmul.f32.gmra.mxu0 %v2090
      %v2364 = vpop.f32.mrf.mxu0
      %v2365 = vadd.f32 %v2252, %v2364
      %2366 = vmatmul.f32.gmra.mxu0 %v2093
      %v2367 = vpop.f32.mrf.mxu0
      %v2368 = vadd.f32 %v2255, %v2367
      %2369 = vmatmul.f32.gmra.mxu0 %v2096
      %v2370 = vpop.f32.mrf.mxu0
      %v2371 = vadd.f32 %v2258, %v2370
      %2372 = vmatmul.f32.gmra.mxu0 %v2099
      %v2373 = vpop.f32.mrf.mxu0
      %v2374 = vadd.f32 %v2261, %v2373
      %2375 = vmatmul.f32.gmra.mxu0 %v2102
      %v2376 = vpop.f32.mrf.mxu0
      %v2377 = vadd.f32 %v2264, %v2376
      %2378 = vmatmul.f32.gmra.mxu0 %v2105
      %v2379 = vpop.f32.mrf.mxu0
      %v2380 = vadd.f32 %v2267, %v2379
      %2381 = vmatmul.f32.gmra.mxu0 %v2108
      %v2382 = vpop.f32.mrf.mxu0
      %v2383 = vadd.f32 %v2270, %v2382
      %2384 = vmatmul.f32.gmra.mxu0 %v2111
      %v2385 = vpop.f32.mrf.mxu0
      %v2386 = vadd.f32 %v2273, %v2385
      %2387 = vmatmul.f32.gmra.mxu0 %v2114
      %v2388 = vpop.f32.mrf.mxu0
      %v2389 = vadd.f32 %v2276, %v2388
      %2390 = vmatmul.f32.gmra.mxu0 %v2117
      %v2391 = vpop.f32.mrf.mxu0
      %v2392 = vadd.f32 %v2279, %v2391
      %2393 = vmatmul.f32.gmra.mxu0 %v2120
      %v2394 = vpop.f32.mrf.mxu0
      %v2395 = vadd.f32 %v2282, %v2394
      %2396 = vmatmul.f32.gmra.mxu0 %v2123
      %v2397 = vpop.f32.mrf.mxu0
      %v2398 = vadd.f32 %v2285, %v2397
      %2399 = vmatmul.f32.gmra.mxu0 %v2126
      %v2400 = vpop.f32.mrf.mxu0
      %v2401 = vadd.f32 %v2288, %v2400
      %2402 = vmatmul.f32.gmra.mxu0 %v2129
      %v2403 = vpop.f32.mrf.mxu0
      %v2404 = vadd.f32 %v2291, %v2403
      %2405 = vmatmul.f32.gmra.mxu0 %v2132
      %v2406 = vpop.f32.mrf.mxu0
      %v2407 = vadd.f32 %v2294, %v2406
      %2408 = vdwg.mxu0
      %2409 = vmatpush.msra.mxu0 %v2182
      %2410 = vmatpush.msra.mxu0 %v2181
      %2411 = vmatpush.msra.mxu0 %v2180
      %2412 = vmatpush.msra.mxu0 %v2179
      %2413 = vmatpush.msra.mxu0 %v2178
      %2414 = vmatpush.msra.mxu0 %v2177
      %2415 = vmatpush.msra.mxu0 %v2176
      %2416 = vmatpush.msra.mxu0 %v2175
      %2417 = vmatpush.msra.mxu0 %v2174
      %2418 = vmatpush.msra.mxu0 %v2173
      %2419 = vmatpush.msra.mxu0 %v2172
      %2420 = vmatpush.msra.mxu0 %v2171
      %2421 = vmatpush.msra.mxu0 %v2170
      %2422 = vmatpush.msra.mxu0 %v2169
      %2423 = vmatpush.msra.mxu0 %v2168
      %2424 = vmatpush.msra.mxu0 %v2167
      %2425 = vmatmul.f32.gmra.mxu0 %v2040
      %v2426 = vpop.f32.mrf.mxu0
      %v2427 = vadd.f32 %v2314, %v2426
      %2428 = vmatmul.f32.gmra.mxu0 %v2043
      %v2429 = vpop.f32.mrf.mxu0
      %v2430 = vadd.f32 %v2317, %v2429
      %2431 = vmatmul.f32.gmra.mxu0 %v2046
      %v2432 = vpop.f32.mrf.mxu0
      %v2433 = vadd.f32 %v2320, %v2432
      %2434 = vmatmul.f32.gmra.mxu0 %v2049
      %v2435 = vpop.f32.mrf.mxu0
      %v2436 = vadd.f32 %v2323, %v2435
      %2437 = vmatmul.f32.gmra.mxu0 %v2052
      %v2438 = vpop.f32.mrf.mxu0
      %v2439 = vadd.f32 %v2326, %v2438
      %2440 = vmatmul.f32.gmra.mxu0 %v2055
      %v2441 = vpop.f32.mrf.mxu0
      %v2442 = vadd.f32 %v2329, %v2441
      %2443 = vmatmul.f32.gmra.mxu0 %v2058
      %v2444 = vpop.f32.mrf.mxu0
      %v2445 = vadd.f32 %v2332, %v2444
      %2446 = vmatmul.f32.gmra.mxu0 %v2061
      %v2447 = vpop.f32.mrf.mxu0
      %v2448 = vadd.f32 %v2335, %v2447
      %2449 = vmatmul.f32.gmra.mxu0 %v2064
      %v2450 = vpop.f32.mrf.mxu0
      %v2451 = vadd.f32 %v2338, %v2450
      %2452 = vmatmul.f32.gmra.mxu0 %v2067
      %v2453 = vpop.f32.mrf.mxu0
      %v2454 = vadd.f32 %v2341, %v2453
      %2455 = vmatmul.f32.gmra.mxu0 %v2070
      %v2456 = vpop.f32.mrf.mxu0
      %v2457 = vadd.f32 %v2344, %v2456
      %2458 = vmatmul.f32.gmra.mxu0 %v2073
      %v2459 = vpop.f32.mrf.mxu0
      %v2460 = vadd.f32 %v2347, %v2459
      %2461 = vmatmul.f32.gmra.mxu0 %v2076
      %v2462 = vpop.f32.mrf.mxu0
      %v2463 = vadd.f32 %v2350, %v2462
      %2464 = vmatmul.f32.gmra.mxu0 %v2079
      %v2465 = vpop.f32.mrf.mxu0
      %v2466 = vadd.f32 %v2353, %v2465
      %2467 = vmatmul.f32.gmra.mxu0 %v2082
      %v2468 = vpop.f32.mrf.mxu0
      %v2469 = vadd.f32 %v2356, %v2468
      %2470 = vmatmul.f32.gmra.mxu0 %v2085
      %v2471 = vpop.f32.mrf.mxu0
      %v2472 = vadd.f32 %v2359, %v2471
      %2473 = vmatmul.f32.gmra.mxu0 %v2088
      %v2474 = vpop.f32.mrf.mxu0
      %v2475 = vadd.f32 %v2362, %v2474
      %2476 = vmatmul.f32.gmra.mxu0 %v2091
      %v2477 = vpop.f32.mrf.mxu0
      %v2478 = vadd.f32 %v2365, %v2477
      %2479 = vmatmul.f32.gmra.mxu0 %v2094
      %v2480 = vpop.f32.mrf.mxu0
      %v2481 = vadd.f32 %v2368, %v2480
      %2482 = vmatmul.f32.gmra.mxu0 %v2097
      %v2483 = vpop.f32.mrf.mxu0
      %v2484 = vadd.f32 %v2371, %v2483
      %2485 = vmatmul.f32.gmra.mxu0 %v2100
      %v2486 = vpop.f32.mrf.mxu0
      %v2487 = vadd.f32 %v2374, %v2486
      %2488 = vmatmul.f32.gmra.mxu0 %v2103
      %v2489 = vpop.f32.mrf.mxu0
      %v2490 = vadd.f32 %v2377, %v2489
      %2491 = vmatmul.f32.gmra.mxu0 %v2106
      %v2492 = vpop.f32.mrf.mxu0
      %v2493 = vadd.f32 %v2380, %v2492
      %2494 = vmatmul.f32.gmra.mxu0 %v2109
      %v2495 = vpop.f32.mrf.mxu0
      %v2496 = vadd.f32 %v2383, %v2495
      %2497 = vmatmul.f32.gmra.mxu0 %v2112
      %v2498 = vpop.f32.mrf.mxu0
      %v2499 = vadd.f32 %v2386, %v2498
      %2500 = vmatmul.f32.gmra.mxu0 %v2115
      %v2501 = vpop.f32.mrf.mxu0
      %v2502 = vadd.f32 %v2389, %v2501
      %2503 = vmatmul.f32.gmra.mxu0 %v2118
      %v2504 = vpop.f32.mrf.mxu0
      %v2505 = vadd.f32 %v2392, %v2504
      %2506 = vmatmul.f32.gmra.mxu0 %v2121
      %v2507 = vpop.f32.mrf.mxu0
      %v2508 = vadd.f32 %v2395, %v2507
      %2509 = vmatmul.f32.gmra.mxu0 %v2124
      %v2510 = vpop.f32.mrf.mxu0
      %v2511 = vadd.f32 %v2398, %v2510
      %2512 = vmatmul.f32.gmra.mxu0 %v2127
      %v2513 = vpop.f32.mrf.mxu0
      %v2514 = vadd.f32 %v2401, %v2513
      %2515 = vmatmul.f32.gmra.mxu0 %v2130
      %v2516 = vpop.f32.mrf.mxu0
      %v2517 = vadd.f32 %v2404, %v2516
      %2518 = vmatmul.f32.gmra.mxu0 %v2133
      %v2519 = vpop.f32.mrf.mxu0
      %v2520 = vadd.f32 %v2407, %v2519
      %2521 = vdwg.mxu0
      %2522 = vmatpush.msra.mxu0 %v2005
      %2523 = vmatpush.msra.mxu0 %v2004
      %2524 = vmatpush.msra.mxu0 %v2003
      %2525 = vmatpush.msra.mxu0 %v2002
      %2526 = vmatpush.msra.mxu0 %v2001
      %2527 = vmatpush.msra.mxu0 %v2000
      %2528 = vmatpush.msra.mxu0 %v1999
      %2529 = vmatpush.msra.mxu0 %v1998
      %2530 = vmatpush.msra.mxu0 %v1997
      %2531 = vmatpush.msra.mxu0 %v1996
      %2532 = vmatpush.msra.mxu0 %v1995
      %2533 = vmatpush.msra.mxu0 %v1994
      %2534 = vmatpush.msra.mxu0 %v1993
      %2535 = vmatpush.msra.mxu0 %v1992
      %2536 = vmatpush.msra.mxu0 %v1991
      %2537 = vmatpush.msra.mxu0 %v1990
      %2538 = vmatmul.f32.gmra.mxu0 %v1894
      %v2539 = vpop.f32.mrf.mxu0
      %v2540 = vadd.f32 %v2427, %v2539
      %2541 = vmatmul.f32.gmra.mxu0 %v1897
      %v2542 = vpop.f32.mrf.mxu0
      %v2543 = vadd.f32 %v2430, %v2542
      %2544 = vmatmul.f32.gmra.mxu0 %v1900
      %v2545 = vpop.f32.mrf.mxu0
      %v2546 = vadd.f32 %v2433, %v2545
      %2547 = vmatmul.f32.gmra.mxu0 %v1903
      %v2548 = vpop.f32.mrf.mxu0
      %v2549 = vadd.f32 %v2436, %v2548
      %2550 = vmatmul.f32.gmra.mxu0 %v1906
      %v2551 = vpop.f32.mrf.mxu0
      %v2552 = vadd.f32 %v2439, %v2551
      %2553 = vmatmul.f32.gmra.mxu0 %v1909
      %v2554 = vpop.f32.mrf.mxu0
      %v2555 = vadd.f32 %v2442, %v2554
      %2556 = vmatmul.f32.gmra.mxu0 %v1912
      %v2557 = vpop.f32.mrf.mxu0
      %v2558 = vadd.f32 %v2445, %v2557
      %2559 = vmatmul.f32.gmra.mxu0 %v1915
      %v2560 = vpop.f32.mrf.mxu0
      %v2561 = vadd.f32 %v2448, %v2560
      %2562 = vmatmul.f32.gmra.mxu0 %v1918
      %v2563 = vpop.f32.mrf.mxu0
      %v2564 = vadd.f32 %v2451, %v2563
      %2565 = vmatmul.f32.gmra.mxu0 %v1921
      %v2566 = vpop.f32.mrf.mxu0
      %v2567 = vadd.f32 %v2454, %v2566
      %2568 = vmatmul.f32.gmra.mxu0 %v1924
      %v2569 = vpop.f32.mrf.mxu0
      %v2570 = vadd.f32 %v2457, %v2569
      %2571 = vmatmul.f32.gmra.mxu0 %v1927
      %v2572 = vpop.f32.mrf.mxu0
      %v2573 = vadd.f32 %v2460, %v2572
      %2574 = vmatmul.f32.gmra.mxu0 %v1930
      %v2575 = vpop.f32.mrf.mxu0
      %v2576 = vadd.f32 %v2463, %v2575
      %2577 = vmatmul.f32.gmra.mxu0 %v1933
      %v2578 = vpop.f32.mrf.mxu0
      %v2579 = vadd.f32 %v2466, %v2578
      %2580 = vmatmul.f32.gmra.mxu0 %v1936
      %v2581 = vpop.f32.mrf.mxu0
      %v2582 = vadd.f32 %v2469, %v2581
      %2583 = vmatmul.f32.gmra.mxu0 %v1939
      %v2584 = vpop.f32.mrf.mxu0
      %v2585 = vadd.f32 %v2472, %v2584
      %2586 = vmatmul.f32.gmra.mxu0 %v1942
      %v2587 = vpop.f32.mrf.mxu0
      %v2588 = vadd.f32 %v2475, %v2587
      %2589 = vmatmul.f32.gmra.mxu0 %v1945
      %v2590 = vpop.f32.mrf.mxu0
      %v2591 = vadd.f32 %v2478, %v2590
      %2592 = vmatmul.f32.gmra.mxu0 %v1948
      %v2593 = vpop.f32.mrf.mxu0
      %v2594 = vadd.f32 %v2481, %v2593
      %2595 = vmatmul.f32.gmra.mxu0 %v1951
      %v2596 = vpop.f32.mrf.mxu0
      %v2597 = vadd.f32 %v2484, %v2596
      %2598 = vmatmul.f32.gmra.mxu0 %v1954
      %v2599 = vpop.f32.mrf.mxu0
      %v2600 = vadd.f32 %v2487, %v2599
      %2601 = vmatmul.f32.gmra.mxu0 %v1957
      %v2602 = vpop.f32.mrf.mxu0
      %v2603 = vadd.f32 %v2490, %v2602
      %2604 = vmatmul.f32.gmra.mxu0 %v1960
      %v2605 = vpop.f32.mrf.mxu0
      %v2606 = vadd.f32 %v2493, %v2605
      %2607 = vmatmul.f32.gmra.mxu0 %v1963
      %v2608 = vpop.f32.mrf.mxu0
      %v2609 = vadd.f32 %v2496, %v2608
      %2610 = vmatmul.f32.gmra.mxu0 %v1966
      %v2611 = vpop.f32.mrf.mxu0
      %v2612 = vadd.f32 %v2499, %v2611
      %2613 = vmatmul.f32.gmra.mxu0 %v1969
      %v2614 = vpop.f32.mrf.mxu0
      %v2615 = vadd.f32 %v2502, %v2614
      %2616 = vmatmul.f32.gmra.mxu0 %v1972
      %v2617 = vpop.f32.mrf.mxu0
      %v2618 = vadd.f32 %v2505, %v2617
      %2619 = vmatmul.f32.gmra.mxu0 %v1975
      %v2620 = vpop.f32.mrf.mxu0
      %v2621 = vadd.f32 %v2508, %v2620
      %2622 = vmatmul.f32.gmra.mxu0 %v1978
      %v2623 = vpop.f32.mrf.mxu0
      %v2624 = vadd.f32 %v2511, %v2623
      %2625 = vmatmul.f32.gmra.mxu0 %v1981
      %v2626 = vpop.f32.mrf.mxu0
      %v2627 = vadd.f32 %v2514, %v2626
      %2628 = vmatmul.f32.gmra.mxu0 %v1984
      %v2629 = vpop.f32.mrf.mxu0
      %v2630 = vadd.f32 %v2517, %v2629
      %2631 = vmatmul.f32.gmra.mxu0 %v1987
      %v2632 = vpop.f32.mrf.mxu0
      %v2633 = vadd.f32 %v2520, %v2632
      %2634 = vdwg.mxu0
      %2635 = vmatpush.msra.mxu0 %v2021
      %2636 = vmatpush.msra.mxu0 %v2020
      %2637 = vmatpush.msra.mxu0 %v2019
      %2638 = vmatpush.msra.mxu0 %v2018
      %2639 = vmatpush.msra.mxu0 %v2017
      %2640 = vmatpush.msra.mxu0 %v2016
      %2641 = vmatpush.msra.mxu0 %v2015
      %2642 = vmatpush.msra.mxu0 %v2014
      %2643 = vmatpush.msra.mxu0 %v2013
      %2644 = vmatpush.msra.mxu0 %v2012
      %2645 = vmatpush.msra.mxu0 %v2011
      %2646 = vmatpush.msra.mxu0 %v2010
      %2647 = vmatpush.msra.mxu0 %v2009
      %2648 = vmatpush.msra.mxu0 %v2008
      %2649 = vmatpush.msra.mxu0 %v2007
      %2650 = vmatpush.msra.mxu0 %v2006
      %2651 = vmatmul.f32.gmra.mxu0 %v1895
      %v2652 = vpop.f32.mrf.mxu0
      %v2653 = vadd.f32 %v2540, %v2652
      %2654 = vmatmul.f32.gmra.mxu0 %v1898
      %v2655 = vpop.f32.mrf.mxu0
      %v2656 = vadd.f32 %v2543, %v2655
      %2657 = vmatmul.f32.gmra.mxu0 %v1901
      %v2658 = vpop.f32.mrf.mxu0
      %v2659 = vadd.f32 %v2546, %v2658
      %2660 = vmatmul.f32.gmra.mxu0 %v1904
      %v2661 = vpop.f32.mrf.mxu0
      %v2662 = vadd.f32 %v2549, %v2661
      %2663 = vmatmul.f32.gmra.mxu0 %v1907
      %v2664 = vpop.f32.mrf.mxu0
      %v2665 = vadd.f32 %v2552, %v2664
      %2666 = vmatmul.f32.gmra.mxu0 %v1910
      %v2667 = vpop.f32.mrf.mxu0
      %v2668 = vadd.f32 %v2555, %v2667
      %2669 = vmatmul.f32.gmra.mxu0 %v1913
      %v2670 = vpop.f32.mrf.mxu0
      %v2671 = vadd.f32 %v2558, %v2670
      %2672 = vmatmul.f32.gmra.mxu0 %v1916
      %v2673 = vpop.f32.mrf.mxu0
      %v2674 = vadd.f32 %v2561, %v2673
      %2675 = vmatmul.f32.gmra.mxu0 %v1919
      %v2676 = vpop.f32.mrf.mxu0
      %v2677 = vadd.f32 %v2564, %v2676
      %2678 = vmatmul.f32.gmra.mxu0 %v1922
      %v2679 = vpop.f32.mrf.mxu0
      %v2680 = vadd.f32 %v2567, %v2679
      %2681 = vmatmul.f32.gmra.mxu0 %v1925
      %v2682 = vpop.f32.mrf.mxu0
      %v2683 = vadd.f32 %v2570, %v2682
      %2684 = vmatmul.f32.gmra.mxu0 %v1928
      %v2685 = vpop.f32.mrf.mxu0
      %v2686 = vadd.f32 %v2573, %v2685
      %2687 = vmatmul.f32.gmra.mxu0 %v1931
      %v2688 = vpop.f32.mrf.mxu0
      %v2689 = vadd.f32 %v2576, %v2688
      %2690 = vmatmul.f32.gmra.mxu0 %v1934
      %v2691 = vpop.f32.mrf.mxu0
      %v2692 = vadd.f32 %v2579, %v2691
      %2693 = vmatmul.f32.gmra.mxu0 %v1937
      %v2694 = vpop.f32.mrf.mxu0
      %v2695 = vadd.f32 %v2582, %v2694
      %2696 = vmatmul.f32.gmra.mxu0 %v1940
      %v2697 = vpop.f32.mrf.mxu0
      %v2698 = vadd.f32 %v2585, %v2697
      %2699 = vmatmul.f32.gmra.mxu0 %v1943
      %v2700 = vpop.f32.mrf.mxu0
      %v2701 = vadd.f32 %v2588, %v2700
      %2702 = vmatmul.f32.gmra.mxu0 %v1946
      %v2703 = vpop.f32.mrf.mxu0
      %v2704 = vadd.f32 %v2591, %v2703
      %2705 = vmatmul.f32.gmra.mxu0 %v1949
      %v2706 = vpop.f32.mrf.mxu0
      %v2707 = vadd.f32 %v2594, %v2706
      %2708 = vmatmul.f32.gmra.mxu0 %v1952
      %v2709 = vpop.f32.mrf.mxu0
      %v2710 = vadd.f32 %v2597, %v2709
      %2711 = vmatmul.f32.gmra.mxu0 %v1955
      %v2712 = vpop.f32.mrf.mxu0
      %v2713 = vadd.f32 %v2600, %v2712
      %2714 = vmatmul.f32.gmra.mxu0 %v1958
      %v2715 = vpop.f32.mrf.mxu0
      %v2716 = vadd.f32 %v2603, %v2715
      %2717 = vmatmul.f32.gmra.mxu0 %v1961
      %v2718 = vpop.f32.mrf.mxu0
      %v2719 = vadd.f32 %v2606, %v2718
      %2720 = vmatmul.f32.gmra.mxu0 %v1964
      %v2721 = vpop.f32.mrf.mxu0
      %v2722 = vadd.f32 %v2609, %v2721
      %2723 = vmatmul.f32.gmra.mxu0 %v1967
      %v2724 = vpop.f32.mrf.mxu0
      %v2725 = vadd.f32 %v2612, %v2724
      %2726 = vmatmul.f32.gmra.mxu0 %v1970
      %v2727 = vpop.f32.mrf.mxu0
      %v2728 = vadd.f32 %v2615, %v2727
      %2729 = vmatmul.f32.gmra.mxu0 %v1973
      %v2730 = vpop.f32.mrf.mxu0
      %v2731 = vadd.f32 %v2618, %v2730
      %2732 = vmatmul.f32.gmra.mxu0 %v1976
      %v2733 = vpop.f32.mrf.mxu0
      %v2734 = vadd.f32 %v2621, %v2733
      %2735 = vmatmul.f32.gmra.mxu0 %v1979
      %v2736 = vpop.f32.mrf.mxu0
      %v2737 = vadd.f32 %v2624, %v2736
      %2738 = vmatmul.f32.gmra.mxu0 %v1982
      %v2739 = vpop.f32.mrf.mxu0
      %v2740 = vadd.f32 %v2627, %v2739
      %2741 = vmatmul.f32.gmra.mxu0 %v1985
      %v2742 = vpop.f32.mrf.mxu0
      %v2743 = vadd.f32 %v2630, %v2742
      %2744 = vmatmul.f32.gmra.mxu0 %v1988
      %v2745 = vpop.f32.mrf.mxu0
      %v2746 = vadd.f32 %v2633, %v2745
      %2747 = vdwg.mxu0
      %2748 = vmatpush.msra.mxu0 %v2037
      %2749 = vmatpush.msra.mxu0 %v2036
      %2750 = vmatpush.msra.mxu0 %v2035
      %2751 = vmatpush.msra.mxu0 %v2034
      %2752 = vmatpush.msra.mxu0 %v2033
      %2753 = vmatpush.msra.mxu0 %v2032
      %2754 = vmatpush.msra.mxu0 %v2031
      %2755 = vmatpush.msra.mxu0 %v2030
      %2756 = vmatpush.msra.mxu0 %v2029
      %2757 = vmatpush.msra.mxu0 %v2028
      %2758 = vmatpush.msra.mxu0 %v2027
      %2759 = vmatpush.msra.mxu0 %v2026
      %2760 = vmatpush.msra.mxu0 %v2025
      %2761 = vmatpush.msra.mxu0 %v2024
      %2762 = vmatpush.msra.mxu0 %v2023
      %2763 = vmatpush.msra.mxu0 %v2022
      %2764 = vmatmul.f32.gmra.mxu0 %v1896
      %v2765 = vpop.f32.mrf.mxu0
      %v2766 = vadd.f32 %v2653, %v2765
      %2767 = vmatmul.f32.gmra.mxu0 %v1899
      %v2768 = vpop.f32.mrf.mxu0
      %v2769 = vadd.f32 %v2656, %v2768
      %2770 = vmatmul.f32.gmra.mxu0 %v1902
      %v2771 = vpop.f32.mrf.mxu0
      %v2772 = vadd.f32 %v2659, %v2771
      %2773 = vmatmul.f32.gmra.mxu0 %v1905
      %v2774 = vpop.f32.mrf.mxu0
      %v2775 = vadd.f32 %v2662, %v2774
      %2776 = vmatmul.f32.gmra.mxu0 %v1908
      %v2777 = vpop.f32.mrf.mxu0
      %v2778 = vadd.f32 %v2665, %v2777
      %2779 = vmatmul.f32.gmra.mxu0 %v1911
      %v2780 = vpop.f32.mrf.mxu0
      %v2781 = vadd.f32 %v2668, %v2780
      %2782 = vmatmul.f32.gmra.mxu0 %v1914
      %v2783 = vpop.f32.mrf.mxu0
      %v2784 = vadd.f32 %v2671, %v2783
      %2785 = vmatmul.f32.gmra.mxu0 %v1917
      %v2786 = vpop.f32.mrf.mxu0
      %v2787 = vadd.f32 %v2674, %v2786
      %2788 = vmatmul.f32.gmra.mxu0 %v1920
      %v2789 = vpop.f32.mrf.mxu0
      %v2790 = vadd.f32 %v2677, %v2789
      %2791 = vmatmul.f32.gmra.mxu0 %v1923
      %v2792 = vpop.f32.mrf.mxu0
      %v2793 = vadd.f32 %v2680, %v2792
      %2794 = vmatmul.f32.gmra.mxu0 %v1926
      %v2795 = vpop.f32.mrf.mxu0
      %v2796 = vadd.f32 %v2683, %v2795
      %2797 = vmatmul.f32.gmra.mxu0 %v1929
      %v2798 = vpop.f32.mrf.mxu0
      %v2799 = vadd.f32 %v2686, %v2798
      %2800 = vmatmul.f32.gmra.mxu0 %v1932
      %v2801 = vpop.f32.mrf.mxu0
      %v2802 = vadd.f32 %v2689, %v2801
      %2803 = vmatmul.f32.gmra.mxu0 %v1935
      %v2804 = vpop.f32.mrf.mxu0
      %v2805 = vadd.f32 %v2692, %v2804
      %2806 = vmatmul.f32.gmra.mxu0 %v1938
      %v2807 = vpop.f32.mrf.mxu0
      %v2808 = vadd.f32 %v2695, %v2807
      %2809 = vmatmul.f32.gmra.mxu0 %v1941
      %v2810 = vpop.f32.mrf.mxu0
      %v2811 = vadd.f32 %v2698, %v2810
      %2812 = vmatmul.f32.gmra.mxu0 %v1944
      %v2813 = vpop.f32.mrf.mxu0
      %v2814 = vadd.f32 %v2701, %v2813
      %2815 = vmatmul.f32.gmra.mxu0 %v1947
      %v2816 = vpop.f32.mrf.mxu0
      %v2817 = vadd.f32 %v2704, %v2816
      %2818 = vmatmul.f32.gmra.mxu0 %v1950
      %v2819 = vpop.f32.mrf.mxu0
      %v2820 = vadd.f32 %v2707, %v2819
      %2821 = vmatmul.f32.gmra.mxu0 %v1953
      %v2822 = vpop.f32.mrf.mxu0
      %v2823 = vadd.f32 %v2710, %v2822
      %2824 = vmatmul.f32.gmra.mxu0 %v1956
      %v2825 = vpop.f32.mrf.mxu0
      %v2826 = vadd.f32 %v2713, %v2825
      %2827 = vmatmul.f32.gmra.mxu0 %v1959
      %v2828 = vpop.f32.mrf.mxu0
      %v2829 = vadd.f32 %v2716, %v2828
      %2830 = vmatmul.f32.gmra.mxu0 %v1962
      %v2831 = vpop.f32.mrf.mxu0
      %v2832 = vadd.f32 %v2719, %v2831
      %2833 = vmatmul.f32.gmra.mxu0 %v1965
      %v2834 = vpop.f32.mrf.mxu0
      %v2835 = vadd.f32 %v2722, %v2834
      %2836 = vmatmul.f32.gmra.mxu0 %v1968
      %v2837 = vpop.f32.mrf.mxu0
      %v2838 = vadd.f32 %v2725, %v2837
      %2839 = vmatmul.f32.gmra.mxu0 %v1971
      %v2840 = vpop.f32.mrf.mxu0
      %v2841 = vadd.f32 %v2728, %v2840
      %2842 = vmatmul.f32.gmra.mxu0 %v1974
      %v2843 = vpop.f32.mrf.mxu0
      %v2844 = vadd.f32 %v2731, %v2843
      %2845 = vmatmul.f32.gmra.mxu0 %v1977
      %v2846 = vpop.f32.mrf.mxu0
      %v2847 = vadd.f32 %v2734, %v2846
      %2848 = vmatmul.f32.gmra.mxu0 %v1980
      %v2849 = vpop.f32.mrf.mxu0
      %v2850 = vadd.f32 %v2737, %v2849
      %2851 = vmatmul.f32.gmra.mxu0 %v1983
      %v2852 = vpop.f32.mrf.mxu0
      %v2853 = vadd.f32 %v2740, %v2852
      %2854 = vmatmul.f32.gmra.mxu0 %v1986
      %v2855 = vpop.f32.mrf.mxu0
      %v2856 = vadd.f32 %v2743, %v2855
      %2857 = vmatmul.f32.gmra.mxu0 %v1989
      %v2858 = vpop.f32.mrf.mxu0
      %v2859 = vadd.f32 %v2746, %v2858
      %2860 = vdwg.mxu0
      %s2861 = scalar_lea.vmem [#allocation3], 192
      %v2862 = vld [vmem:[%s2861 + $0x18] sm:$0xff]
      %v2863 = vld [vmem:[%s2861 + $0x20] sm:$0xff]
      %v2864 = vld [vmem:[%s2861 + $0x28] sm:$0xff]
      %v2865 = vld [vmem:[%s2861 + $0x30] sm:$0xff]
      %v2866 = vld [vmem:[%s2861 + $0x38] sm:$0xff]
      %v2867 = vld [vmem:[%s2861 + $0x40] sm:$0xff]
      %v2868 = vld [vmem:[%s2861 + $0x78] sm:$0xff]
      %v2869 = vld [vmem:[%s2861 + $0x80] sm:$0xff]
      %v2870 = vld [vmem:[%s2861 + $0x88] sm:$0xff]
      %v2871 = vld [vmem:[%s2861 + $0x90] sm:$0xff]
      %v2872 = vld [vmem:[%s2861 + $0x98] sm:$0xff]
      %v2873 = vld [vmem:[%s2861 + $0xa0] sm:$0xff]
      %v2874 = vld [vmem:[%s2861 + $0xd8] sm:$0xff]
      %v2875 = vld [vmem:[%s2861 + $0xe0] sm:$0xff]
      %v2876 = vld [vmem:[%s2861 + $0xe8] sm:$0xff]
      %v2877 = vld [vmem:[%s2861 + $0xf0] sm:$0xff]
      %v2878 = vld [vmem:[%s2861 + $0xf8] sm:$0xff]
      %v2879 = vld [vmem:[%s2861 + $0x100] sm:$0xff]
      %v2880 = vld [vmem:[%s2861 + $0x138] sm:$0xff]
      %v2881 = vld [vmem:[%s2861 + $0x140] sm:$0xff]
      %v2882 = vld [vmem:[%s2861 + $0x148] sm:$0xff]
      %v2883 = vld [vmem:[%s2861 + $0x150] sm:$0xff]
      %v2884 = vld [vmem:[%s2861 + $0x158] sm:$0xff]
      %v2885 = vld [vmem:[%s2861 + $0x160] sm:$0xff]
      %v2886 = vld [vmem:[%s2861 + $0x198] sm:$0xff]
      %v2887 = vld [vmem:[%s2861 + $0x1a0] sm:$0xff]
      %v2888 = vld [vmem:[%s2861 + $0x1a8] sm:$0xff]
      %v2889 = vld [vmem:[%s2861 + $0x1b0] sm:$0xff]
      %v2890 = vld [vmem:[%s2861 + $0x1b8] sm:$0xff]
      %v2891 = vld [vmem:[%s2861 + $0x1c0] sm:$0xff]
      %v2892 = vld [vmem:[%s2861 + $0x1f8] sm:$0xff]
      %v2893 = vld [vmem:[%s2861 + $0x200] sm:$0xff]
      %v2894 = vld [vmem:[%s2861 + $0x208] sm:$0xff]
      %v2895 = vld [vmem:[%s2861 + $0x210] sm:$0xff]
      %v2896 = vld [vmem:[%s2861 + $0x218] sm:$0xff]
      %v2897 = vld [vmem:[%s2861 + $0x220] sm:$0xff]
      %v2898 = vld [vmem:[%s2861 + $0x258] sm:$0xff]
      %v2899 = vld [vmem:[%s2861 + $0x260] sm:$0xff]
      %v2900 = vld [vmem:[%s2861 + $0x268] sm:$0xff]
      %v2901 = vld [vmem:[%s2861 + $0x270] sm:$0xff]
      %v2902 = vld [vmem:[%s2861 + $0x278] sm:$0xff]
      %v2903 = vld [vmem:[%s2861 + $0x280] sm:$0xff]
      %v2904 = vld [vmem:[%s2861 + $0x2b8] sm:$0xff]
      %v2905 = vld [vmem:[%s2861 + $0x2c0] sm:$0xff]
      %v2906 = vld [vmem:[%s2861 + $0x2c8] sm:$0xff]
      %v2907 = vld [vmem:[%s2861 + $0x2d0] sm:$0xff]
      %v2908 = vld [vmem:[%s2861 + $0x2d8] sm:$0xff]
      %v2909 = vld [vmem:[%s2861 + $0x2e0] sm:$0xff]
      %v2910 = vld [vmem:[%s2861 + $0x318] sm:$0xff]
      %v2911 = vld [vmem:[%s2861 + $0x320] sm:$0xff]
      %v2912 = vld [vmem:[%s2861 + $0x328] sm:$0xff]
      %v2913 = vld [vmem:[%s2861 + $0x330] sm:$0xff]
      %v2914 = vld [vmem:[%s2861 + $0x338] sm:$0xff]
      %v2915 = vld [vmem:[%s2861 + $0x340] sm:$0xff]
      %v2916 = vld [vmem:[%s2861 + $0x378] sm:$0xff]
      %v2917 = vld [vmem:[%s2861 + $0x380] sm:$0xff]
      %v2918 = vld [vmem:[%s2861 + $0x388] sm:$0xff]
      %v2919 = vld [vmem:[%s2861 + $0x390] sm:$0xff]
      %v2920 = vld [vmem:[%s2861 + $0x398] sm:$0xff]
      %v2921 = vld [vmem:[%s2861 + $0x3a0] sm:$0xff]
      %v2922 = vld [vmem:[%s2861 + $0x3d8] sm:$0xff]
      %v2923 = vld [vmem:[%s2861 + $0x3e0] sm:$0xff]
      %v2924 = vld [vmem:[%s2861 + $0x3e8] sm:$0xff]
      %v2925 = vld [vmem:[%s2861 + $0x3f0] sm:$0xff]
      %v2926 = vld [vmem:[%s2861 + $0x3f8] sm:$0xff]
      %v2927 = vld [vmem:[%s2861 + $0x400] sm:$0xff]
      %v2928 = vld [vmem:[%s2861 + $0x438] sm:$0xff]
      %v2929 = vld [vmem:[%s2861 + $0x440] sm:$0xff]
      %v2930 = vld [vmem:[%s2861 + $0x448] sm:$0xff]
      %v2931 = vld [vmem:[%s2861 + $0x450] sm:$0xff]
      %v2932 = vld [vmem:[%s2861 + $0x458] sm:$0xff]
      %v2933 = vld [vmem:[%s2861 + $0x460] sm:$0xff]
      %v2934 = vld [vmem:[%s2861 + $0x498] sm:$0xff]
      %v2935 = vld [vmem:[%s2861 + $0x4a0] sm:$0xff]
      %v2936 = vld [vmem:[%s2861 + $0x4a8] sm:$0xff]
      %v2937 = vld [vmem:[%s2861 + $0x4b0] sm:$0xff]
      %v2938 = vld [vmem:[%s2861 + $0x4b8] sm:$0xff]
      %v2939 = vld [vmem:[%s2861 + $0x4c0] sm:$0xff]
      %v2940 = vld [vmem:[%s2861 + $0x4f8] sm:$0xff]
      %v2941 = vld [vmem:[%s2861 + $0x500] sm:$0xff]
      %v2942 = vld [vmem:[%s2861 + $0x508] sm:$0xff]
      %v2943 = vld [vmem:[%s2861 + $0x510] sm:$0xff]
      %v2944 = vld [vmem:[%s2861 + $0x518] sm:$0xff]
      %v2945 = vld [vmem:[%s2861 + $0x520] sm:$0xff]
      %v2946 = vld [vmem:[%s2861 + $0x558] sm:$0xff]
      %v2947 = vld [vmem:[%s2861 + $0x560] sm:$0xff]
      %v2948 = vld [vmem:[%s2861 + $0x568] sm:$0xff]
      %v2949 = vld [vmem:[%s2861 + $0x570] sm:$0xff]
      %v2950 = vld [vmem:[%s2861 + $0x578] sm:$0xff]
      %v2951 = vld [vmem:[%s2861 + $0x580] sm:$0xff]
      %v2952 = vld [vmem:[%s2861 + $0x5b8] sm:$0xff]
      %v2953 = vld [vmem:[%s2861 + $0x5c0] sm:$0xff]
      %v2954 = vld [vmem:[%s2861 + $0x5c8] sm:$0xff]
      %v2955 = vld [vmem:[%s2861 + $0x5d0] sm:$0xff]
      %v2956 = vld [vmem:[%s2861 + $0x5d8] sm:$0xff]
      %v2957 = vld [vmem:[%s2861 + $0x5e0] sm:$0xff]
      %s2958 = scalar_lea.vmem %s5, 768
      %v2959 = vld [vmem:[%s2958] sm:$0xff]
      %v2960 = vld [vmem:[%s2958 + $0x8] sm:$0xff]
      %v2961 = vld [vmem:[%s2958 + $0x10] sm:$0xff]
      %v2962 = vld [vmem:[%s2958 + $0x18] sm:$0xff]
      %v2963 = vld [vmem:[%s2958 + $0x20] sm:$0xff]
      %v2964 = vld [vmem:[%s2958 + $0x28] sm:$0xff]
      %v2965 = vld [vmem:[%s2958 + $0x30] sm:$0xff]
      %v2966 = vld [vmem:[%s2958 + $0x38] sm:$0xff]
      %v2967 = vld [vmem:[%s2958 + $0x40] sm:$0xff]
      %v2968 = vld [vmem:[%s2958 + $0x48] sm:$0xff]
      %v2969 = vld [vmem:[%s2958 + $0x50] sm:$0xff]
      %v2970 = vld [vmem:[%s2958 + $0x58] sm:$0xff]
      %v2971 = vld [vmem:[%s2958 + $0x60] sm:$0xff]
      %v2972 = vld [vmem:[%s2958 + $0x68] sm:$0xff]
      %v2973 = vld [vmem:[%s2958 + $0x70] sm:$0xff]
      %v2974 = vld [vmem:[%s2958 + $0x78] sm:$0xff]
      %v2975 = vld [vmem:[%s2958 + $0x80] sm:$0xff]
      %v2976 = vld [vmem:[%s2958 + $0x88] sm:$0xff]
      %v2977 = vld [vmem:[%s2958 + $0x90] sm:$0xff]
      %v2978 = vld [vmem:[%s2958 + $0x98] sm:$0xff]
      %v2979 = vld [vmem:[%s2958 + $0xa0] sm:$0xff]
      %v2980 = vld [vmem:[%s2958 + $0xa8] sm:$0xff]
      %v2981 = vld [vmem:[%s2958 + $0xb0] sm:$0xff]
      %v2982 = vld [vmem:[%s2958 + $0xb8] sm:$0xff]
      %v2983 = vld [vmem:[%s2958 + $0xc0] sm:$0xff]
      %v2984 = vld [vmem:[%s2958 + $0xc8] sm:$0xff]
      %v2985 = vld [vmem:[%s2958 + $0xd0] sm:$0xff]
      %v2986 = vld [vmem:[%s2958 + $0xd8] sm:$0xff]
      %v2987 = vld [vmem:[%s2958 + $0xe0] sm:$0xff]
      %v2988 = vld [vmem:[%s2958 + $0xe8] sm:$0xff]
      %v2989 = vld [vmem:[%s2958 + $0xf0] sm:$0xff]
      %v2990 = vld [vmem:[%s2958 + $0xf8] sm:$0xff]
      %v2991 = vld [vmem:[%s2958 + $0x100] sm:$0xff]
      %v2992 = vld [vmem:[%s2958 + $0x108] sm:$0xff]
      %v2993 = vld [vmem:[%s2958 + $0x110] sm:$0xff]
      %v2994 = vld [vmem:[%s2958 + $0x118] sm:$0xff]
      %v2995 = vld [vmem:[%s2958 + $0x120] sm:$0xff]
      %v2996 = vld [vmem:[%s2958 + $0x128] sm:$0xff]
      %v2997 = vld [vmem:[%s2958 + $0x130] sm:$0xff]
      %v2998 = vld [vmem:[%s2958 + $0x138] sm:$0xff]
      %v2999 = vld [vmem:[%s2958 + $0x140] sm:$0xff]
      %v3000 = vld [vmem:[%s2958 + $0x148] sm:$0xff]
      %v3001 = vld [vmem:[%s2958 + $0x150] sm:$0xff]
      %v3002 = vld [vmem:[%s2958 + $0x158] sm:$0xff]
      %v3003 = vld [vmem:[%s2958 + $0x160] sm:$0xff]
      %v3004 = vld [vmem:[%s2958 + $0x168] sm:$0xff]
      %v3005 = vld [vmem:[%s2958 + $0x170] sm:$0xff]
      %v3006 = vld [vmem:[%s2958 + $0x178] sm:$0xff]
      %3007 = vmatpush.msra.mxu0 %v2974
      %3008 = vmatpush.msra.mxu0 %v2973
      %3009 = vmatpush.msra.mxu0 %v2972
      %3010 = vmatpush.msra.mxu0 %v2971
      %3011 = vmatpush.msra.mxu0 %v2970
      %3012 = vmatpush.msra.mxu0 %v2969
      %3013 = vmatpush.msra.mxu0 %v2968
      %3014 = vmatpush.msra.mxu0 %v2967
      %3015 = vmatpush.msra.mxu0 %v2966
      %3016 = vmatpush.msra.mxu0 %v2965
      %3017 = vmatpush.msra.mxu0 %v2964
      %3018 = vmatpush.msra.mxu0 %v2963
      %3019 = vmatpush.msra.mxu0 %v2962
      %3020 = vmatpush.msra.mxu0 %v2961
      %3021 = vmatpush.msra.mxu0 %v2960
      %3022 = vmatpush.msra.mxu0 %v2959
      %3023 = vmatmul.f32.gmra.mxu0 %v2862
      %v3024 = vpop.f32.mrf.mxu0
      %v3025 = vadd.f32 0.0, %v3024
      %3026 = vmatmul.f32.gmra.mxu0 %v2865
      %v3027 = vpop.f32.mrf.mxu0
      %v3028 = vadd.f32 0.0, %v3027
      %3029 = vmatmul.f32.gmra.mxu0 %v2868
      %v3030 = vpop.f32.mrf.mxu0
      %v3031 = vadd.f32 0.0, %v3030
      %3032 = vmatmul.f32.gmra.mxu0 %v2871
      %v3033 = vpop.f32.mrf.mxu0
      %v3034 = vadd.f32 0.0, %v3033
      %3035 = vmatmul.f32.gmra.mxu0 %v2874
      %v3036 = vpop.f32.mrf.mxu0
      %v3037 = vadd.f32 0.0, %v3036
      %3038 = vmatmul.f32.gmra.mxu0 %v2877
      %v3039 = vpop.f32.mrf.mxu0
      %v3040 = vadd.f32 0.0, %v3039
      %3041 = vmatmul.f32.gmra.mxu0 %v2880
      %v3042 = vpop.f32.mrf.mxu0
      %v3043 = vadd.f32 0.0, %v3042
      %3044 = vmatmul.f32.gmra.mxu0 %v2883
      %v3045 = vpop.f32.mrf.mxu0
      %v3046 = vadd.f32 0.0, %v3045
      %3047 = vmatmul.f32.gmra.mxu0 %v2886
      %v3048 = vpop.f32.mrf.mxu0
      %v3049 = vadd.f32 0.0, %v3048
      %3050 = vmatmul.f32.gmra.mxu0 %v2889
      %v3051 = vpop.f32.mrf.mxu0
      %v3052 = vadd.f32 0.0, %v3051
      %3053 = vmatmul.f32.gmra.mxu0 %v2892
      %v3054 = vpop.f32.mrf.mxu0
      %v3055 = vadd.f32 0.0, %v3054
      %3056 = vmatmul.f32.gmra.mxu0 %v2895
      %v3057 = vpop.f32.mrf.mxu0
      %v3058 = vadd.f32 0.0, %v3057
      %3059 = vmatmul.f32.gmra.mxu0 %v2898
      %v3060 = vpop.f32.mrf.mxu0
      %v3061 = vadd.f32 0.0, %v3060
      %3062 = vmatmul.f32.gmra.mxu0 %v2901
      %v3063 = vpop.f32.mrf.mxu0
      %v3064 = vadd.f32 0.0, %v3063
      %3065 = vmatmul.f32.gmra.mxu0 %v2904
      %v3066 = vpop.f32.mrf.mxu0
      %v3067 = vadd.f32 0.0, %v3066
      %3068 = vmatmul.f32.gmra.mxu0 %v2907
      %v3069 = vpop.f32.mrf.mxu0
      %v3070 = vadd.f32 0.0, %v3069
      %3071 = vmatmul.f32.gmra.mxu0 %v2910
      %v3072 = vpop.f32.mrf.mxu0
      %v3073 = vadd.f32 0.0, %v3072
      %3074 = vmatmul.f32.gmra.mxu0 %v2913
      %v3075 = vpop.f32.mrf.mxu0
      %v3076 = vadd.f32 0.0, %v3075
      %3077 = vmatmul.f32.gmra.mxu0 %v2916
      %v3078 = vpop.f32.mrf.mxu0
      %v3079 = vadd.f32 0.0, %v3078
      %3080 = vmatmul.f32.gmra.mxu0 %v2919
      %v3081 = vpop.f32.mrf.mxu0
      %v3082 = vadd.f32 0.0, %v3081
      %3083 = vmatmul.f32.gmra.mxu0 %v2922
      %v3084 = vpop.f32.mrf.mxu0
      %v3085 = vadd.f32 0.0, %v3084
      %3086 = vmatmul.f32.gmra.mxu0 %v2925
      %v3087 = vpop.f32.mrf.mxu0
      %v3088 = vadd.f32 0.0, %v3087
      %3089 = vmatmul.f32.gmra.mxu0 %v2928
      %v3090 = vpop.f32.mrf.mxu0
      %v3091 = vadd.f32 0.0, %v3090
      %3092 = vmatmul.f32.gmra.mxu0 %v2931
      %v3093 = vpop.f32.mrf.mxu0
      %v3094 = vadd.f32 0.0, %v3093
      %3095 = vmatmul.f32.gmra.mxu0 %v2934
      %v3096 = vpop.f32.mrf.mxu0
      %v3097 = vadd.f32 0.0, %v3096
      %3098 = vmatmul.f32.gmra.mxu0 %v2937
      %v3099 = vpop.f32.mrf.mxu0
      %v3100 = vadd.f32 0.0, %v3099
      %3101 = vmatmul.f32.gmra.mxu0 %v2940
      %v3102 = vpop.f32.mrf.mxu0
      %v3103 = vadd.f32 0.0, %v3102
      %3104 = vmatmul.f32.gmra.mxu0 %v2943
      %v3105 = vpop.f32.mrf.mxu0
      %v3106 = vadd.f32 0.0, %v3105
      %3107 = vmatmul.f32.gmra.mxu0 %v2946
      %v3108 = vpop.f32.mrf.mxu0
      %v3109 = vadd.f32 0.0, %v3108
      %3110 = vmatmul.f32.gmra.mxu0 %v2949
      %v3111 = vpop.f32.mrf.mxu0
      %v3112 = vadd.f32 0.0, %v3111
      %3113 = vmatmul.f32.gmra.mxu0 %v2952
      %v3114 = vpop.f32.mrf.mxu0
      %v3115 = vadd.f32 0.0, %v3114
      %3116 = vmatmul.f32.gmra.mxu0 %v2955
      %v3117 = vpop.f32.mrf.mxu0
      %v3118 = vadd.f32 0.0, %v3117
      %3119 = vdwg.mxu0
      %3120 = vmatpush.msra.mxu0 %v2990
      %3121 = vmatpush.msra.mxu0 %v2989
      %3122 = vmatpush.msra.mxu0 %v2988
      %3123 = vmatpush.msra.mxu0 %v2987
      %3124 = vmatpush.msra.mxu0 %v2986
      %3125 = vmatpush.msra.mxu0 %v2985
      %3126 = vmatpush.msra.mxu0 %v2984
      %3127 = vmatpush.msra.mxu0 %v2983
      %3128 = vmatpush.msra.mxu0 %v2982
      %3129 = vmatpush.msra.mxu0 %v2981
      %3130 = vmatpush.msra.mxu0 %v2980
      %3131 = vmatpush.msra.mxu0 %v2979
      %3132 = vmatpush.msra.mxu0 %v2978
      %3133 = vmatpush.msra.mxu0 %v2977
      %3134 = vmatpush.msra.mxu0 %v2976
      %3135 = vmatpush.msra.mxu0 %v2975
      %3136 = vmatmul.f32.gmra.mxu0 %v2863
      %v3137 = vpop.f32.mrf.mxu0
      %v3138 = vadd.f32 %v3025, %v3137
      %3139 = vmatmul.f32.gmra.mxu0 %v2866
      %v3140 = vpop.f32.mrf.mxu0
      %v3141 = vadd.f32 %v3028, %v3140
      %3142 = vmatmul.f32.gmra.mxu0 %v2869
      %v3143 = vpop.f32.mrf.mxu0
      %v3144 = vadd.f32 %v3031, %v3143
      %3145 = vmatmul.f32.gmra.mxu0 %v2872
      %v3146 = vpop.f32.mrf.mxu0
      %v3147 = vadd.f32 %v3034, %v3146
      %3148 = vmatmul.f32.gmra.mxu0 %v2875
      %v3149 = vpop.f32.mrf.mxu0
      %v3150 = vadd.f32 %v3037, %v3149
      %3151 = vmatmul.f32.gmra.mxu0 %v2878
      %v3152 = vpop.f32.mrf.mxu0
      %v3153 = vadd.f32 %v3040, %v3152
      %3154 = vmatmul.f32.gmra.mxu0 %v2881
      %v3155 = vpop.f32.mrf.mxu0
      %v3156 = vadd.f32 %v3043, %v3155
      %3157 = vmatmul.f32.gmra.mxu0 %v2884
      %v3158 = vpop.f32.mrf.mxu0
      %v3159 = vadd.f32 %v3046, %v3158
      %3160 = vmatmul.f32.gmra.mxu0 %v2887
      %v3161 = vpop.f32.mrf.mxu0
      %v3162 = vadd.f32 %v3049, %v3161
      %3163 = vmatmul.f32.gmra.mxu0 %v2890
      %v3164 = vpop.f32.mrf.mxu0
      %v3165 = vadd.f32 %v3052, %v3164
      %3166 = vmatmul.f32.gmra.mxu0 %v2893
      %v3167 = vpop.f32.mrf.mxu0
      %v3168 = vadd.f32 %v3055, %v3167
      %3169 = vmatmul.f32.gmra.mxu0 %v2896
      %v3170 = vpop.f32.mrf.mxu0
      %v3171 = vadd.f32 %v3058, %v3170
      %3172 = vmatmul.f32.gmra.mxu0 %v2899
      %v3173 = vpop.f32.mrf.mxu0
      %v3174 = vadd.f32 %v3061, %v3173
      %3175 = vmatmul.f32.gmra.mxu0 %v2902
      %v3176 = vpop.f32.mrf.mxu0
      %v3177 = vadd.f32 %v3064, %v3176
      %3178 = vmatmul.f32.gmra.mxu0 %v2905
      %v3179 = vpop.f32.mrf.mxu0
      %v3180 = vadd.f32 %v3067, %v3179
      %3181 = vmatmul.f32.gmra.mxu0 %v2908
      %v3182 = vpop.f32.mrf.mxu0
      %v3183 = vadd.f32 %v3070, %v3182
      %3184 = vmatmul.f32.gmra.mxu0 %v2911
      %v3185 = vpop.f32.mrf.mxu0
      %v3186 = vadd.f32 %v3073, %v3185
      %3187 = vmatmul.f32.gmra.mxu0 %v2914
      %v3188 = vpop.f32.mrf.mxu0
      %v3189 = vadd.f32 %v3076, %v3188
      %3190 = vmatmul.f32.gmra.mxu0 %v2917
      %v3191 = vpop.f32.mrf.mxu0
      %v3192 = vadd.f32 %v3079, %v3191
      %3193 = vmatmul.f32.gmra.mxu0 %v2920
      %v3194 = vpop.f32.mrf.mxu0
      %v3195 = vadd.f32 %v3082, %v3194
      %3196 = vmatmul.f32.gmra.mxu0 %v2923
      %v3197 = vpop.f32.mrf.mxu0
      %v3198 = vadd.f32 %v3085, %v3197
      %3199 = vmatmul.f32.gmra.mxu0 %v2926
      %v3200 = vpop.f32.mrf.mxu0
      %v3201 = vadd.f32 %v3088, %v3200
      %3202 = vmatmul.f32.gmra.mxu0 %v2929
      %v3203 = vpop.f32.mrf.mxu0
      %v3204 = vadd.f32 %v3091, %v3203
      %3205 = vmatmul.f32.gmra.mxu0 %v2932
      %v3206 = vpop.f32.mrf.mxu0
      %v3207 = vadd.f32 %v3094, %v3206
      %3208 = vmatmul.f32.gmra.mxu0 %v2935
      %v3209 = vpop.f32.mrf.mxu0
      %v3210 = vadd.f32 %v3097, %v3209
      %3211 = vmatmul.f32.gmra.mxu0 %v2938
      %v3212 = vpop.f32.mrf.mxu0
      %v3213 = vadd.f32 %v3100, %v3212
      %3214 = vmatmul.f32.gmra.mxu0 %v2941
      %v3215 = vpop.f32.mrf.mxu0
      %v3216 = vadd.f32 %v3103, %v3215
      %3217 = vmatmul.f32.gmra.mxu0 %v2944
      %v3218 = vpop.f32.mrf.mxu0
      %v3219 = vadd.f32 %v3106, %v3218
      %3220 = vmatmul.f32.gmra.mxu0 %v2947
      %v3221 = vpop.f32.mrf.mxu0
      %v3222 = vadd.f32 %v3109, %v3221
      %3223 = vmatmul.f32.gmra.mxu0 %v2950
      %v3224 = vpop.f32.mrf.mxu0
      %v3225 = vadd.f32 %v3112, %v3224
      %3226 = vmatmul.f32.gmra.mxu0 %v2953
      %v3227 = vpop.f32.mrf.mxu0
      %v3228 = vadd.f32 %v3115, %v3227
      %3229 = vmatmul.f32.gmra.mxu0 %v2956
      %v3230 = vpop.f32.mrf.mxu0
      %v3231 = vadd.f32 %v3118, %v3230
      %3232 = vdwg.mxu0
      %3233 = vmatpush.msra.mxu0 %v3006
      %3234 = vmatpush.msra.mxu0 %v3005
      %3235 = vmatpush.msra.mxu0 %v3004
      %3236 = vmatpush.msra.mxu0 %v3003
      %3237 = vmatpush.msra.mxu0 %v3002
      %3238 = vmatpush.msra.mxu0 %v3001
      %3239 = vmatpush.msra.mxu0 %v3000
      %3240 = vmatpush.msra.mxu0 %v2999
      %3241 = vmatpush.msra.mxu0 %v2998
      %3242 = vmatpush.msra.mxu0 %v2997
      %3243 = vmatpush.msra.mxu0 %v2996
      %3244 = vmatpush.msra.mxu0 %v2995
      %3245 = vmatpush.msra.mxu0 %v2994
      %3246 = vmatpush.msra.mxu0 %v2993
      %3247 = vmatpush.msra.mxu0 %v2992
      %3248 = vmatpush.msra.mxu0 %v2991
      %3249 = vmatmul.f32.gmra.mxu0 %v2864
      %v3250 = vpop.f32.mrf.mxu0
      %v3251 = vadd.f32 %v3138, %v3250
      %3252 = vmatmul.f32.gmra.mxu0 %v2867
      %v3253 = vpop.f32.mrf.mxu0
      %v3254 = vadd.f32 %v3141, %v3253
      %3255 = vmatmul.f32.gmra.mxu0 %v2870
      %v3256 = vpop.f32.mrf.mxu0
      %v3257 = vadd.f32 %v3144, %v3256
      %3258 = vmatmul.f32.gmra.mxu0 %v2873
      %v3259 = vpop.f32.mrf.mxu0
      %v3260 = vadd.f32 %v3147, %v3259
      %3261 = vmatmul.f32.gmra.mxu0 %v2876
      %v3262 = vpop.f32.mrf.mxu0
      %v3263 = vadd.f32 %v3150, %v3262
      %3264 = vmatmul.f32.gmra.mxu0 %v2879
      %v3265 = vpop.f32.mrf.mxu0
      %v3266 = vadd.f32 %v3153, %v3265
      %3267 = vmatmul.f32.gmra.mxu0 %v2882
      %v3268 = vpop.f32.mrf.mxu0
      %v3269 = vadd.f32 %v3156, %v3268
      %3270 = vmatmul.f32.gmra.mxu0 %v2885
      %v3271 = vpop.f32.mrf.mxu0
      %v3272 = vadd.f32 %v3159, %v3271
      %3273 = vmatmul.f32.gmra.mxu0 %v2888
      %v3274 = vpop.f32.mrf.mxu0
      %v3275 = vadd.f32 %v3162, %v3274
      %3276 = vmatmul.f32.gmra.mxu0 %v2891
      %v3277 = vpop.f32.mrf.mxu0
      %v3278 = vadd.f32 %v3165, %v3277
      %3279 = vmatmul.f32.gmra.mxu0 %v2894
      %v3280 = vpop.f32.mrf.mxu0
      %v3281 = vadd.f32 %v3168, %v3280
      %3282 = vmatmul.f32.gmra.mxu0 %v2897
      %v3283 = vpop.f32.mrf.mxu0
      %v3284 = vadd.f32 %v3171, %v3283
      %3285 = vmatmul.f32.gmra.mxu0 %v2900
      %v3286 = vpop.f32.mrf.mxu0
      %v3287 = vadd.f32 %v3174, %v3286
      %3288 = vmatmul.f32.gmra.mxu0 %v2903
      %v3289 = vpop.f32.mrf.mxu0
      %v3290 = vadd.f32 %v3177, %v3289
      %3291 = vmatmul.f32.gmra.mxu0 %v2906
      %v3292 = vpop.f32.mrf.mxu0
      %v3293 = vadd.f32 %v3180, %v3292
      %3294 = vmatmul.f32.gmra.mxu0 %v2909
      %v3295 = vpop.f32.mrf.mxu0
      %v3296 = vadd.f32 %v3183, %v3295
      %3297 = vmatmul.f32.gmra.mxu0 %v2912
      %v3298 = vpop.f32.mrf.mxu0
      %v3299 = vadd.f32 %v3186, %v3298
      %3300 = vmatmul.f32.gmra.mxu0 %v2915
      %v3301 = vpop.f32.mrf.mxu0
      %v3302 = vadd.f32 %v3189, %v3301
      %3303 = vmatmul.f32.gmra.mxu0 %v2918
      %v3304 = vpop.f32.mrf.mxu0
      %v3305 = vadd.f32 %v3192, %v3304
      %3306 = vmatmul.f32.gmra.mxu0 %v2921
      %v3307 = vpop.f32.mrf.mxu0
      %v3308 = vadd.f32 %v3195, %v3307
      %3309 = vmatmul.f32.gmra.mxu0 %v2924
      %v3310 = vpop.f32.mrf.mxu0
      %v3311 = vadd.f32 %v3198, %v3310
      %3312 = vmatmul.f32.gmra.mxu0 %v2927
      %v3313 = vpop.f32.mrf.mxu0
      %v3314 = vadd.f32 %v3201, %v3313
      %3315 = vmatmul.f32.gmra.mxu0 %v2930
      %v3316 = vpop.f32.mrf.mxu0
      %v3317 = vadd.f32 %v3204, %v3316
      %3318 = vmatmul.f32.gmra.mxu0 %v2933
      %v3319 = vpop.f32.mrf.mxu0
      %v3320 = vadd.f32 %v3207, %v3319
      %3321 = vmatmul.f32.gmra.mxu0 %v2936
      %v3322 = vpop.f32.mrf.mxu0
      %v3323 = vadd.f32 %v3210, %v3322
      %3324 = vmatmul.f32.gmra.mxu0 %v2939
      %v3325 = vpop.f32.mrf.mxu0
      %v3326 = vadd.f32 %v3213, %v3325
      %3327 = vmatmul.f32.gmra.mxu0 %v2942
      %v3328 = vpop.f32.mrf.mxu0
      %v3329 = vadd.f32 %v3216, %v3328
      %3330 = vmatmul.f32.gmra.mxu0 %v2945
      %v3331 = vpop.f32.mrf.mxu0
      %v3332 = vadd.f32 %v3219, %v3331
      %3333 = vmatmul.f32.gmra.mxu0 %v2948
      %v3334 = vpop.f32.mrf.mxu0
      %v3335 = vadd.f32 %v3222, %v3334
      %3336 = vmatmul.f32.gmra.mxu0 %v2951
      %v3337 = vpop.f32.mrf.mxu0
      %v3338 = vadd.f32 %v3225, %v3337
      %3339 = vmatmul.f32.gmra.mxu0 %v2954
      %v3340 = vpop.f32.mrf.mxu0
      %v3341 = vadd.f32 %v3228, %v3340
      %3342 = vmatmul.f32.gmra.mxu0 %v2957
      %v3343 = vpop.f32.mrf.mxu0
      %v3344 = vadd.f32 %v3231, %v3343
      %3345 = vdwg.mxu0
      %v3346 = vadd.f32 %v2766, %v3251
      %v3347 = vadd.f32 %v2769, %v3254
      %v3348 = vadd.f32 %v2772, %v3257
      %v3349 = vadd.f32 %v2775, %v3260
      %v3350 = vadd.f32 %v2778, %v3263
      %v3351 = vadd.f32 %v2781, %v3266
      %v3352 = vadd.f32 %v2784, %v3269
      %v3353 = vadd.f32 %v2787, %v3272
      %v3354 = vadd.f32 %v2790, %v3275
      %v3355 = vadd.f32 %v2793, %v3278
      %v3356 = vadd.f32 %v2796, %v3281
      %v3357 = vadd.f32 %v2799, %v3284
      %v3358 = vadd.f32 %v2802, %v3287
      %v3359 = vadd.f32 %v2805, %v3290
      %v3360 = vadd.f32 %v2808, %v3293
      %v3361 = vadd.f32 %v2811, %v3296
      %v3362 = vadd.f32 %v2814, %v3299
      %v3363 = vadd.f32 %v2817, %v3302
      %v3364 = vadd.f32 %v2820, %v3305
      %v3365 = vadd.f32 %v2823, %v3308
      %v3366 = vadd.f32 %v2826, %v3311
      %v3367 = vadd.f32 %v2829, %v3314
      %v3368 = vadd.f32 %v2832, %v3317
      %v3369 = vadd.f32 %v2835, %v3320
      %v3370 = vadd.f32 %v2838, %v3323
      %v3371 = vadd.f32 %v2841, %v3326
      %v3372 = vadd.f32 %v2844, %v3329
      %v3373 = vadd.f32 %v2847, %v3332
      %v3374 = vadd.f32 %v2850, %v3335
      %v3375 = vadd.f32 %v2853, %v3338
      %v3376 = vadd.f32 %v2856, %v3341
      %v3377 = vadd.f32 %v2859, %v3344
      %v3378 = vld [vmem:[%s6] sm:$0x1]
      %v3380 = vperm.slane %v3378, 0
      %v3382 = vadd.f32 %v3346, %v3380
      %v3383 = vadd.f32 %v3347, %v3380
      %v3384 = vadd.f32 %v3348, %v3380
      %v3385 = vadd.f32 %v3349, %v3380
      %v3386 = vadd.f32 %v3350, %v3380
      %v3387 = vadd.f32 %v3351, %v3380
      %v3388 = vadd.f32 %v3352, %v3380
      %v3389 = vadd.f32 %v3353, %v3380
      %v3390 = vadd.f32 %v3354, %v3380
      %v3391 = vadd.f32 %v3355, %v3380
      %v3392 = vadd.f32 %v3356, %v3380
      %v3393 = vadd.f32 %v3357, %v3380
      %v3394 = vadd.f32 %v3358, %v3380
      %v3395 = vadd.f32 %v3359, %v3380
      %v3396 = vadd.f32 %v3360, %v3380
      %v3397 = vadd.f32 %v3361, %v3380
      %v3398 = vadd.f32 %v3362, %v3380
      %v3399 = vadd.f32 %v3363, %v3380
      %v3400 = vadd.f32 %v3364, %v3380
      %v3401 = vadd.f32 %v3365, %v3380
      %v3402 = vadd.f32 %v3366, %v3380
      %v3403 = vadd.f32 %v3367, %v3380
      %v3404 = vadd.f32 %v3368, %v3380
      %v3405 = vadd.f32 %v3369, %v3380
      %v3406 = vadd.f32 %v3370, %v3380
      %v3407 = vadd.f32 %v3371, %v3380
      %v3408 = vadd.f32 %v3372, %v3380
      %v3409 = vadd.f32 %v3373, %v3380
      %v3410 = vadd.f32 %v3374, %v3380
      %v3411 = vadd.f32 %v3375, %v3380
      %v3412 = vadd.f32 %v3376, %v3380
      %v3413 = vadd.f32 %v3377, %v3380
      %v3414 = vmax.f32 %v3382, 0.0
      %v3415 = vmax.f32 %v3383, 0.0
      %v3416 = vmax.f32 %v3384, 0.0
      %v3417 = vmax.f32 %v3385, 0.0
      %v3418 = vmax.f32 %v3386, 0.0
      %v3419 = vmax.f32 %v3387, 0.0
      %v3420 = vmax.f32 %v3388, 0.0
      %v3421 = vmax.f32 %v3389, 0.0
      %v3422 = vmax.f32 %v3390, 0.0
      %v3423 = vmax.f32 %v3391, 0.0
      %v3424 = vmax.f32 %v3392, 0.0
      %v3425 = vmax.f32 %v3393, 0.0
      %v3426 = vmax.f32 %v3394, 0.0
      %v3427 = vmax.f32 %v3395, 0.0
      %v3428 = vmax.f32 %v3396, 0.0
      %v3429 = vmax.f32 %v3397, 0.0
      %v3430 = vmax.f32 %v3398, 0.0
      %v3431 = vmax.f32 %v3399, 0.0
      %v3432 = vmax.f32 %v3400, 0.0
      %v3433 = vmax.f32 %v3401, 0.0
      %v3434 = vmax.f32 %v3402, 0.0
      %v3435 = vmax.f32 %v3403, 0.0
      %v3436 = vmax.f32 %v3404, 0.0
      %v3437 = vmax.f32 %v3405, 0.0
      %v3438 = vmax.f32 %v3406, 0.0
      %v3439 = vmax.f32 %v3407, 0.0
      %v3440 = vmax.f32 %v3408, 0.0
      %v3441 = vmax.f32 %v3409, 0.0
      %v3442 = vmax.f32 %v3410, 0.0
      %v3443 = vmax.f32 %v3411, 0.0
      %v3444 = vmax.f32 %v3412, 0.0
      %v3445 = vmax.f32 %v3413, 0.0
      %v3446 = vld [vmem:[%s7] sm:$0x1]
      %v3448 = vperm.slane %v3446, 0
      %v3450 = vmul.f32 %v3414, %v3448
      %v3451 = vmul.f32 %v3415, %v3448
      %v3452 = vmul.f32 %v3416, %v3448
      %v3453 = vmul.f32 %v3417, %v3448
      %v3454 = vmul.f32 %v3418, %v3448
      %v3455 = vmul.f32 %v3419, %v3448
      %v3456 = vmul.f32 %v3420, %v3448
      %v3457 = vmul.f32 %v3421, %v3448
      %v3458 = vmul.f32 %v3422, %v3448
      %v3459 = vmul.f32 %v3423, %v3448
      %v3460 = vmul.f32 %v3424, %v3448
      %v3461 = vmul.f32 %v3425, %v3448
      %v3462 = vmul.f32 %v3426, %v3448
      %v3463 = vmul.f32 %v3427, %v3448
      %v3464 = vmul.f32 %v3428, %v3448
      %v3465 = vmul.f32 %v3429, %v3448
      %v3466 = vmul.f32 %v3430, %v3448
      %v3467 = vmul.f32 %v3431, %v3448
      %v3468 = vmul.f32 %v3432, %v3448
      %v3469 = vmul.f32 %v3433, %v3448
      %v3470 = vmul.f32 %v3434, %v3448
      %v3471 = vmul.f32 %v3435, %v3448
      %v3472 = vmul.f32 %v3436, %v3448
      %v3473 = vmul.f32 %v3437, %v3448
      %v3474 = vmul.f32 %v3438, %v3448
      %v3475 = vmul.f32 %v3439, %v3448
      %v3476 = vmul.f32 %v3440, %v3448
      %v3477 = vmul.f32 %v3441, %v3448
      %v3478 = vmul.f32 %v3442, %v3448
      %v3479 = vmul.f32 %v3443, %v3448
      %v3480 = vmul.f32 %v3444, %v3448
      %v3481 = vmul.f32 %v3445, %v3448
      %v3482 = vld [vmem:[%s8] sm:$0x1]
      %v3484 = vperm.slane %v3482, 0
      %v3486 = vadd.f32 %v3450, %v3484
      %v3487 = vadd.f32 %v3451, %v3484
      %v3488 = vadd.f32 %v3452, %v3484
      %v3489 = vadd.f32 %v3453, %v3484
      %v3490 = vadd.f32 %v3454, %v3484
      %v3491 = vadd.f32 %v3455, %v3484
      %v3492 = vadd.f32 %v3456, %v3484
      %v3493 = vadd.f32 %v3457, %v3484
      %v3494 = vadd.f32 %v3458, %v3484
      %v3495 = vadd.f32 %v3459, %v3484
      %v3496 = vadd.f32 %v3460, %v3484
      %v3497 = vadd.f32 %v3461, %v3484
      %v3498 = vadd.f32 %v3462, %v3484
      %v3499 = vadd.f32 %v3463, %v3484
      %v3500 = vadd.f32 %v3464, %v3484
      %v3501 = vadd.f32 %v3465, %v3484
      %v3502 = vadd.f32 %v3466, %v3484
      %v3503 = vadd.f32 %v3467, %v3484
      %v3504 = vadd.f32 %v3468, %v3484
      %v3505 = vadd.f32 %v3469, %v3484
      %v3506 = vadd.f32 %v3470, %v3484
      %v3507 = vadd.f32 %v3471, %v3484
      %v3508 = vadd.f32 %v3472, %v3484
      %v3509 = vadd.f32 %v3473, %v3484
      %v3510 = vadd.f32 %v3474, %v3484
      %v3511 = vadd.f32 %v3475, %v3484
      %v3512 = vadd.f32 %v3476, %v3484
      %v3513 = vadd.f32 %v3477, %v3484
      %v3514 = vadd.f32 %v3478, %v3484
      %v3515 = vadd.f32 %v3479, %v3484
      %v3516 = vadd.f32 %v3480, %v3484
      %v3517 = vadd.f32 %v3481, %v3484
      %v3518 = vmax.f32 %v3486, %v3488
      %v3519 = vmax.f32 %v3487, %v3489
      %v3520 = vmax.f32 %v3490, %v3492
      %v3521 = vmax.f32 %v3491, %v3493
      %v3522 = vmax.f32 %v3494, %v3496
      %v3523 = vmax.f32 %v3495, %v3497
      %v3524 = vmax.f32 %v3498, %v3500
      %v3525 = vmax.f32 %v3499, %v3501
      %v3526 = vmax.f32 %v3502, %v3504
      %v3527 = vmax.f32 %v3503, %v3505
      %v3528 = vmax.f32 %v3506, %v3508
      %v3529 = vmax.f32 %v3507, %v3509
      %v3530 = vmax.f32 %v3510, %v3512
      %v3531 = vmax.f32 %v3511, %v3513
      %v3532 = vmax.f32 %v3514, %v3516
      %v3533 = vmax.f32 %v3515, %v3517
      %3534 = vst [vmem:[#allocation4] sm:$0xff] %v3518
      %3535 = vst [vmem:[#allocation4 + $0x8] sm:$0xff] %v3519
      %3536 = vst [vmem:[#allocation4 + $0x10] sm:$0xff] %v3520
      %3537 = vst [vmem:[#allocation4 + $0x18] sm:$0xff] %v3521
      %3538 = vst [vmem:[#allocation4 + $0x20] sm:$0xff] %v3522
      %3539 = vst [vmem:[#allocation4 + $0x28] sm:$0xff] %v3523
      %3540 = vst [vmem:[#allocation4 + $0x30] sm:$0xff] %v3524
      %3541 = vst [vmem:[#allocation4 + $0x38] sm:$0xff] %v3525
      %3542 = vst [vmem:[#allocation4 + $0x40] sm:$0xff] %v3526
      %3543 = vst [vmem:[#allocation4 + $0x48] sm:$0xff] %v3527
      %3544 = vst [vmem:[#allocation4 + $0x50] sm:$0xff] %v3528
      %3545 = vst [vmem:[#allocation4 + $0x58] sm:$0xff] %v3529
      %3546 = vst [vmem:[#allocation4 + $0x60] sm:$0xff] %v3530
      %3547 = vst [vmem:[#allocation4 + $0x68] sm:$0xff] %v3531
      %3548 = vst [vmem:[#allocation4 + $0x70] sm:$0xff] %v3532
      %3549 = vst [vmem:[#allocation4 + $0x78] sm:$0xff] %v3533
      %v3550 = vld [vmem:[#allocation4] ss:$2 sm:$0xff]
      %s3551 = scalar_lea.vmem [#allocation4], 16
      %v3552 = vld [vmem:[%s3551] ss:$2 sm:$0xff]
      %s3553 = scalar_lea.vmem [#allocation4], 32
      %v3554 = vld [vmem:[%s3553] ss:$2 sm:$0xff]
      %s3555 = scalar_lea.vmem [#allocation4], 48
      %v3556 = vld [vmem:[%s3555] ss:$2 sm:$0xff]
      %s3557 = scalar_lea.vmem [#allocation4], 64
      %v3558 = vld [vmem:[%s3557] ss:$2 sm:$0xff]
      %s3559 = scalar_lea.vmem [#allocation4], 80
      %v3560 = vld [vmem:[%s3559] ss:$2 sm:$0xff]
      %s3561 = scalar_lea.vmem [#allocation4], 96
      %v3562 = vld [vmem:[%s3561] ss:$2 sm:$0xff]
      %s3563 = scalar_lea.vmem [#allocation4], 112
      %v3564 = vld [vmem:[%s3563] ss:$2 sm:$0xff]
      %s3565 = scalar_lea.vmem [#allocation4], 1
      %v3566 = vld [vmem:[%s3565] ss:$2 sm:$0xff]
      %s3567 = scalar_lea.vmem [#allocation4], 17
      %v3568 = vld [vmem:[%s3567] ss:$2 sm:$0xff]
      %s3569 = scalar_lea.vmem [#allocation4], 33
      %v3570 = vld [vmem:[%s3569] ss:$2 sm:$0xff]
      %s3571 = scalar_lea.vmem [#allocation4], 49
      %v3572 = vld [vmem:[%s3571] ss:$2 sm:$0xff]
      %s3573 = scalar_lea.vmem [#allocation4], 65
      %v3574 = vld [vmem:[%s3573] ss:$2 sm:$0xff]
      %s3575 = scalar_lea.vmem [#allocation4], 81
      %v3576 = vld [vmem:[%s3575] ss:$2 sm:$0xff]
      %s3577 = scalar_lea.vmem [#allocation4], 97
      %v3578 = vld [vmem:[%s3577] ss:$2 sm:$0xff]
      %s3579 = scalar_lea.vmem [#allocation4], 113
      %v3580 = vld [vmem:[%s3579] ss:$2 sm:$0xff]
      %v3581 = vmax.f32 %v3550, %v3566
      %v3582 = vmax.f32 %v3552, %v3568
      %v3583 = vmax.f32 %v3554, %v3570
      %v3584 = vmax.f32 %v3556, %v3572
      %v3585 = vmax.f32 %v3558, %v3574
      %v3586 = vmax.f32 %v3560, %v3576
      %v3587 = vmax.f32 %v3562, %v3578
      %v3588 = vmax.f32 %v3564, %v3580
      %3589 = vst [vmem:[%s332] sm:$0xff] %v3581
      %3590 = vst [vmem:[%s332 + $0x8] sm:$0xff] %v3582
      %3591 = vst [vmem:[%s332 + $0x10] sm:$0xff] %v3583
      %3592 = vst [vmem:[%s332 + $0x18] sm:$0xff] %v3584
      %3593 = vst [vmem:[%s332 + $0x20] sm:$0xff] %v3585
      %3594 = vst [vmem:[%s332 + $0x28] sm:$0xff] %v3586
      %3595 = vst [vmem:[%s332 + $0x30] sm:$0xff] %v3587
      %3596 = vst [vmem:[%s332 + $0x38] sm:$0xff] %v3588
      %p3597 = scmp.lt.s32.totalorder %s20, 1
      %s3598 = scalar_select %p3597, %s20, 1
      %s3599 = smul.addr %s3598, 8
      %s3600 = smul.addr %s3599, 8
      %s3601 = scalar_lea.vmem %s9, %s3600
      // Predicated region
      $region57: #{conv_block_forward.1} parent=55 // pred_check
        %p3602 = pneg %p232
      $region58: #{conv_block_forward.1} parent=55 // pred_check_branch
        %3604 = sbr.rel (%p3602) target = $region60
      $region59: #{conv_block_forward.1} parent=55 // pred_region
        _
      $region60: #{conv_block_forward.1} parent=55 // pred_fallthru
        _
    $region56: #{conv_block_forward.1} parent=5 // pred_fallthru
      _
    %p3605 = scmp.le.s32.totalorder 2, %s15
    // Predicated region
    $region61: #{conv_block_forward.1} parent=5 // pred_check
      %p3606 = pneg %p3605
    $region62: #{conv_block_forward.1} parent=5 // pred_check_branch
      %3608 = sbr.rel (%p3606) target = $region64
    $region63: #{conv_block_forward.1} parent=5 // pred_region
      %s3609 = ssub.s32 %s15, 2
      // Predicated region
      $region65: #{conv_block_forward.1} parent=63 // pred_check
        %p3610 = pneg %p238
      $region66: #{conv_block_forward.1} parent=63 // pred_check_branch
        %3612 = sbr.rel (%p3610) target = $region68
      $region67: #{conv_block_forward.1} parent=63 // pred_region
        %p3613 = scmp.lt.s32.totalorder %s21, 1
        %s3614 = scalar_select %p3613, %s21, 1
        %s3615 = smul.addr %s3614, 8
        %s3616 = smul.addr %s3615, 8
        %s3617 = scalar_lea.vmem %s9, %s3616
      $region68: #{conv_block_forward.1} parent=63 // pred_fallthru
        _
    $region64: #{conv_block_forward.1} parent=5 // pred_fallthru
      _
  $region6: #{conv_block_forward.1} parent=0 // loop_footer
    %s19 = sadd.s32 1, %s15
  $region7: #{conv_block_forward.1} parent=0 // loop_footer_branch
    %14 = sbr.rel target = $region3
  $region8: #{conv_block_forward.1} parent=0 // loop_exit
    _

</llo_original>
